<compile_context>
chip_gen: v5e
topology: v5e:2x2
jax: 0.10.0
libtpu: 0.0.40
codegen_flags: <defaults>
</compile_context>

<pallas_src>
import functools

import jax
import jax.numpy as jnp
from jax import lax
from jax.experimental import pallas as pl
from jax.experimental.pallas import tpu as pltpu

_BN_EPS = 1e-6  # matches nn.BatchNorm2d(..., eps=1e-06) in the module


def _round_up(x, m):
    return ((x + m - 1) // m) * m


def _choose_point_tile(n_pts, row_bytes, target_bytes=2 * 1024 * 1024, max_tile=1024):
    """Rows-per-tile (multiple of 8) targeting ~2 MiB blocks and >= 2 grid steps."""
    m8 = _round_up(max(n_pts, 8), 8)
    cap = max(8, (target_bytes // max(row_bytes, 1)) // 8 * 8)
    tile = min(max_tile, cap, m8)
    if m8 > 8:  # keep at least two grid steps so both v7x TensorCores get work
        tile = min(tile, _round_up((m8 + 1) // 2, 8))
    return tile, _round_up(m8, tile)


# ----------------------------------------------------------------------------
# Kernel 1: fused 1x1 conv over the (implicit) 10-channel spatial encoding
#           + per-tile partial BatchNorm statistics.
# ----------------------------------------------------------------------------
def _lse_mlp_stats_kernel(center_ref, neigh_ref, dist_ref,
                          wc_ref, wn_ref, wd_ref, b_ref,
                          y_ref, stats_ref, *, valid_rows):
    # center (TN,1,3)  neigh (TN,K,3)  dist (TN,K,1)
    # wc/wn (3,1,d)    wd/b (1,1,d)
    # y (TN,K,d)       stats (1,2,d) = per-tile [sum, sum_sq] over valid rows
    tn = neigh_ref.shape[0]

    center = center_ref[...]
    neigh = neigh_ref[...]
    dist = dist_ref[...]
    wc = wc_ref[...]
    wn = wn_ref[...]

    # Contraction dim is only 3 -> per-channel VPU MACs (no MXU padding, no reshapes).
    yc = (center[:, :, 0:1] * wc[0:1] +
          center[:, :, 1:2] * wc[1:2] +
          center[:, :, 2:3] * wc[2:3])                       # (TN, 1, d)
    yn = (neigh[:, :, 0:1] * wn[0:1] +
          neigh[:, :, 1:2] * wn[1:2] +
          neigh[:, :, 2:3] * wn[2:3])                        # (TN, K, d)
    y = yn + yc + dist * wd_ref[...] + b_ref[...]            # (TN, K, d)
    y_ref[...] = y

    # Partial BatchNorm statistics for this tile (padded rows masked out).
    s_rows = jnp.sum(y, axis=1)                              # (TN, d)
    ss_rows = jnp.sum(y * y, axis=1)                         # (TN, d)
    row = lax.broadcasted_iota(jnp.int32, (tn, 1), 0) + pl.program_id(0) * tn
    valid = row < valid_rows                                 # (TN, 1)
    s_tot = jnp.sum(jnp.where(valid, s_rows, 0.0), axis=0, keepdims=True)    # (1, d)
    ss_tot = jnp.sum(jnp.where(valid, ss_rows, 0.0), axis=0, keepdims=True)  # (1, d)
    stats_ref[...] = jnp.concatenate([s_tot, ss_tot], axis=0)[None, :, :]    # (1, 2, d)


# ----------------------------------------------------------------------------
# Kernel 2: fused BatchNorm affine + ReLU + concat with K-broadcast features.
# ----------------------------------------------------------------------------
def _bn_relu_concat_kernel(y_ref, f_ref, scale_ref, shift_ref, o_ref):
    # y (TN,K,d)  f (TN,1,d)  scale/shift (1,1,d)  o (TN,K,2d)
    tn, k, d = y_ref.shape
    act = jnp.maximum(y_ref[...] * scale_ref[...] + shift_ref[...], 0.0)   # (TN, K, d)
    feat = jnp.broadcast_to(f_ref[...], (tn, k, d))                        # (TN, K, d)
    o_ref[...] = jnp.concatenate([act, feat], axis=-1)                     # (TN, K, 2d)


# ----------------------------------------------------------------------------
# Module wrapper
# ----------------------------------------------------------------------------
def local_spatial_encoding(coords, features, knn_output, params):
    """JAX/Pallas equivalent of LocalSpatialEncoding.forward.

    coords (B, N, 3), features (B, d, N, 1),
    knn_output = (idx (B, N, K) int, dist (B, N, K)).
    params: w (10, d) [Conv2d 1x1 weight, stored (C_in, C_out)], b (d,),
            gamma (d,), beta (d,).
    Returns (B, 2*d, N, K).
    """
    idx, dist = knn_output
    B, N, K = idx.shape
    d = features.shape[1]

    # Neighbor coordinate gather is data-dependent -> plain JAX.
    # TODO(synk): could become a scalar-prefetch Pallas DMA gather for very large N.
    neigh = jax.vmap(lambda c, i: c[i])(coords, idx)                        # (B, N, K, 3)

    bn = B * N
    center = coords.reshape(bn, 1, 3).astype(jnp.float32)
    neigh = neigh.reshape(bn, K, 3).astype(jnp.float32)
    dist = dist.reshape(bn, K, 1).astype(jnp.float32)
    feats = jnp.transpose(features[..., 0], (0, 2, 1)).reshape(bn, 1, d).astype(jnp.float32)

    # Fold the [center, neigh, center - neigh, dist] concat into the conv weight.
    w = params['w'].astype(jnp.float32)                                     # (10, d)
    wc = (w[0:3] + w[6:9]).reshape(3, 1, d)
    wn = (w[3:6] - w[6:9]).reshape(3, 1, d)
    wd = w[9:10].reshape(1, 1, d)
    bias = params['b'].astype(jnp.float32).reshape(1, 1, d)

    row_bytes = max(4 * (3 + 3 * K + K + K * d),        # kernel 1 blocks / point
                    4 * (K * d + d + 2 * K * d))        # kernel 2 blocks / point
    tn, bnp = _choose_point_tile(bn, row_bytes)
    if bnp != bn:
        pad = bnp - bn
        center = jnp.pad(center, ((0, pad), (0, 0), (0, 0)))
        neigh = jnp.pad(neigh, ((0, pad), (0, 0), (0, 0)))
        dist = jnp.pad(dist, ((0, pad), (0, 0), (0, 0)))
        feats = jnp.pad(feats, ((0, pad), (0, 0), (0, 0)))
    n_tiles = bnp // tn
    cparams = pltpu.CompilerParams(dimension_semantics=("parallel",))

    y, stats = pl.pallas_call(
        functools.partial(_lse_mlp_stats_kernel, valid_rows=bn),
        out_shape=(jax.ShapeDtypeStruct((bnp, K, d), jnp.float32),
                   jax.ShapeDtypeStruct((n_tiles, 2, d), jnp.float32)),
        grid=(n_tiles,),
        in_specs=[
            pl.BlockSpec((tn, 1, 3), lambda i: (i, 0, 0)),
            pl.BlockSpec((tn, K, 3), lambda i: (i, 0, 0)),
            pl.BlockSpec((tn, K, 1), lambda i: (i, 0, 0)),
            pl.BlockSpec((3, 1, d), lambda i: (0, 0, 0)),
            pl.BlockSpec((3, 1, d), lambda i: (0, 0, 0)),
            pl.BlockSpec((1, 1, d), lambda i: (0, 0, 0)),
            pl.BlockSpec((1, 1, d), lambda i: (0, 0, 0)),
        ],
        out_specs=(
            pl.BlockSpec((tn, K, d), lambda i: (i, 0, 0)),
            pl.BlockSpec((1, 2, d), lambda i: (i, 0, 0)),
        ),
        compiler_params=cparams,
    )(center, neigh, dist, wc, wn, wd, bias)

    # Finalize training-mode BatchNorm2d statistics (tiny per-channel math in JAX).
    # TODO(synk): eval-mode running_mean/running_var is not modeled (batch stats only).
    total = jnp.float32(bn * K)
    mean = jnp.sum(stats[:, 0, :], axis=0) / total
    var = jnp.maximum(jnp.sum(stats[:, 1, :], axis=0) / total - mean * mean, 0.0)
    scale = params['gamma'].astype(jnp.float32) / jnp.sqrt(var + _BN_EPS)
    shift = params['beta'].astype(jnp.float32) - mean * scale

    out = pl.pallas_call(
        _bn_relu_concat_kernel,
        out_shape=jax.ShapeDtypeStruct((bnp, K, 2 * d), jnp.float32),
        grid=(n_tiles,),
        in_specs=[
            pl.BlockSpec((tn, K, d), lambda i: (i, 0, 0)),
            pl.BlockSpec((tn, 1, d), lambda i: (i, 0, 0)),
            pl.BlockSpec((1, 1, d), lambda i: (0, 0, 0)),
            pl.BlockSpec((1, 1, d), lambda i: (0, 0, 0)),
        ],
        out_specs=pl.BlockSpec((tn, K, 2 * d), lambda i: (i, 0, 0)),
        compiler_params=cparams,
    )(y, feats, scale.reshape(1, 1, d), shift.reshape(1, 1, d))

    out = out[:bn].reshape(B, N, K, 2 * d)
    # Single layout conversion back to the PyTorch (B, 2d, N, K) convention.
    return jnp.transpose(out, (0, 3, 1, 2))


# ----------------------------------------------------------------------------
# Pure-JAX reference (mirrors LocalSpatialEncoding.forward) for verification.
# ----------------------------------------------------------------------------
def _reference(coords, features, knn_output, params):
    idx, dist = knn_output
    B, N, K = idx.shape
    d = features.shape[1]
    neigh = jax.vmap(lambda c, i: c[i])(coords, idx)                        # (B,N,K,3)
    center = jnp.broadcast_to(coords[:, :, None, :], (B, N, K, 3))
    concat = jnp.concatenate([center, neigh, center - neigh, dist[..., None]], axis=-1)
    y = concat.reshape(-1, 10) @ params['w'] + params['b']
    mean = jnp.mean(y, axis=0)
    var = jnp.mean(jnp.square(y - mean), axis=0)
    y = (y - mean) / jnp.sqrt(var + _BN_EPS) * params['gamma'] + params['beta']
    y = jnp.maximum(y, 0.0).reshape(B, N, K, d)
    mlp_out = jnp.transpose(y, (0, 3, 1, 2))                                # (B,d,N,K)
    feat = jnp.broadcast_to(features, (B, d, N, K))
    return jnp.concatenate([mlp_out, feat], axis=1)                         # (B,2d,N,K)


if __name__ == "__main__":
    B, N, K, d = 2, 64, 16, 8
    key = jax.random.PRNGKey(0)
    kc, kf, kw, kb, kg, kbt = jax.random.split(key, 6)
    coords = jax.random.normal(kc, (B, N, 3), jnp.float32)
    features = jax.random.normal(kf, (B, d, N, 1), jnp.float32)
    params = {
        'w': 0.1 * jax.random.normal(kw, (10, d), jnp.float32),  # Conv2d 1x1 weight, (C_in, C_out)
        'b': 0.1 * jax.random.normal(kb, (d,), jnp.float32),
        'gamma': 1.0 + 0.1 * jax.random.normal(kg, (d,), jnp.float32),
        'beta': 0.1 * jax.random.normal(kbt, (d,), jnp.float32),
    }

    # TODO(synk): the reference `knn` op is an external CUDA kernel; emulate its
    # output here with a brute-force L2 KNN (Euclidean distances, self included).
    d2 = jnp.sum(jnp.square(coords[:, :, None, :] - coords[:, None, :, :]), axis=-1)
    neg, idx = lax.top_k(-d2, K)
    knn_output = (idx.astype(jnp.int32), jnp.sqrt(jnp.maximum(-neg, 0.0)))

    out = local_spatial_encoding(coords, features, knn_output, params)
    jax.block_until_ready(out)
    assert out.shape == (B, 2 * d, N, K)

    ref = _reference(coords, features, knn_output, params)
    err = float(jnp.max(jnp.abs(out - ref)))
    assert err < 1e-3, f"max abs diff vs reference: {err}"
    print("KERNEL_OK")
</pallas_src>

<mosaic_0001>
module attributes {stable_mosaic.version = 11 : i64} {
  func.func @_lse_mlp_stats_kernel(%arg0: i32, %arg1: memref<64x1x3xf32, #tpu.memory_space<vmem>>, %arg2: memref<64x16x3xf32, #tpu.memory_space<vmem>>, %arg3: memref<64x16x1xf32, #tpu.memory_space<vmem>>, %arg4: memref<3x1x8xf32, #tpu.memory_space<vmem>>, %arg5: memref<3x1x8xf32, #tpu.memory_space<vmem>>, %arg6: memref<1x1x8xf32, #tpu.memory_space<vmem>>, %arg7: memref<1x1x8xf32, #tpu.memory_space<vmem>>, %arg8: memref<64x16x8xf32, #tpu.memory_space<vmem>>, %arg9: memref<1x2x8xf32, #tpu.memory_space<vmem>>) attributes {dimension_semantics = [#tpu.dimension_semantics<parallel>], iteration_bounds = array<i64: 2>, scalar_prefetch = 0 : i64, scratch_operands = 0 : i64, tpu.core_type = #tpu.core_type<tc>, window_params = [{transform_indices = @transform_0, window_bounds = array<i64: 64, 1, 3>}, {transform_indices = @transform_1, window_bounds = array<i64: 64, 16, 3>}, {transform_indices = @transform_2, window_bounds = array<i64: 64, 16, 1>}, {pipeline_mode = #tpu.pipeline_mode<synchronous>, transform_indices = @transform_3, window_bounds = array<i64: 3, 1, 8>}, {pipeline_mode = #tpu.pipeline_mode<synchronous>, transform_indices = @transform_4, window_bounds = array<i64: 3, 1, 8>}, {pipeline_mode = #tpu.pipeline_mode<synchronous>, transform_indices = @transform_5, window_bounds = array<i64: 1, 1, 8>}, {pipeline_mode = #tpu.pipeline_mode<synchronous>, transform_indices = @transform_6, window_bounds = array<i64: 1, 1, 8>}, {transform_indices = @transform_7, window_bounds = array<i64: 64, 16, 8>}, {transform_indices = @transform_8, window_bounds = array<i64: 1, 2, 8>}]} {
    %c0 = arith.constant 0 : index
    %c0_0 = arith.constant 0 : index
    %c0_1 = arith.constant 0 : index
    %0 = vector.load %arg1[%c0, %c0_0, %c0_1] : memref<64x1x3xf32, #tpu.memory_space<vmem>>, vector<64x1x3xf32>
    %c0_2 = arith.constant 0 : index
    %c0_3 = arith.constant 0 : index
    %c0_4 = arith.constant 0 : index
    %1 = vector.load %arg2[%c0_2, %c0_3, %c0_4] : memref<64x16x3xf32, #tpu.memory_space<vmem>>, vector<64x16x3xf32>
    %c0_5 = arith.constant 0 : index
    %c0_6 = arith.constant 0 : index
    %c0_7 = arith.constant 0 : index
    %2 = vector.load %arg3[%c0_5, %c0_6, %c0_7] : memref<64x16x1xf32, #tpu.memory_space<vmem>>, vector<64x16x1xf32>
    %c0_8 = arith.constant 0 : index
    %c0_9 = arith.constant 0 : index
    %c0_10 = arith.constant 0 : index
    %3 = vector.load %arg4[%c0_8, %c0_9, %c0_10] : memref<3x1x8xf32, #tpu.memory_space<vmem>>, vector<3x1x8xf32>
    %c0_11 = arith.constant 0 : index
    %c0_12 = arith.constant 0 : index
    %c0_13 = arith.constant 0 : index
    %4 = vector.load %arg5[%c0_11, %c0_12, %c0_13] : memref<3x1x8xf32, #tpu.memory_space<vmem>>, vector<3x1x8xf32>
    %5 = vector.extract_strided_slice %0 {offsets = [0, 0, 0], sizes = [64, 1, 1], strides = [1, 1, 1]} : vector<64x1x3xf32> to vector<64x1x1xf32>
    %6 = vector.extract_strided_slice %3 {offsets = [0, 0, 0], sizes = [1, 1, 8], strides = [1, 1, 1]} : vector<3x1x8xf32> to vector<1x1x8xf32>
    %7 = vector.broadcast %5 : vector<64x1x1xf32> to vector<64x1x8xf32>
    %8 = vector.broadcast %6 : vector<1x1x8xf32> to vector<64x1x8xf32>
    %9 = arith.mulf %7, %8 : vector<64x1x8xf32>
    %10 = vector.extract_strided_slice %0 {offsets = [0, 0, 1], sizes = [64, 1, 1], strides = [1, 1, 1]} : vector<64x1x3xf32> to vector<64x1x1xf32>
    %11 = vector.extract_strided_slice %3 {offsets = [1, 0, 0], sizes = [1, 1, 8], strides = [1, 1, 1]} : vector<3x1x8xf32> to vector<1x1x8xf32>
    %12 = vector.broadcast %10 : vector<64x1x1xf32> to vector<64x1x8xf32>
    %13 = vector.broadcast %11 : vector<1x1x8xf32> to vector<64x1x8xf32>
    %14 = arith.mulf %12, %13 : vector<64x1x8xf32>
    %15 = arith.addf %9, %14 : vector<64x1x8xf32>
    %16 = vector.extract_strided_slice %0 {offsets = [0, 0, 2], sizes = [64, 1, 1], strides = [1, 1, 1]} : vector<64x1x3xf32> to vector<64x1x1xf32>
    %17 = vector.extract_strided_slice %3 {offsets = [2, 0, 0], sizes = [1, 1, 8], strides = [1, 1, 1]} : vector<3x1x8xf32> to vector<1x1x8xf32>
    %18 = vector.broadcast %16 : vector<64x1x1xf32> to vector<64x1x8xf32>
    %19 = vector.broadcast %17 : vector<1x1x8xf32> to vector<64x1x8xf32>
    %20 = arith.mulf %18, %19 : vector<64x1x8xf32>
    %21 = arith.addf %15, %20 : vector<64x1x8xf32>
    %22 = vector.extract_strided_slice %1 {offsets = [0, 0, 0], sizes = [64, 16, 1], strides = [1, 1, 1]} : vector<64x16x3xf32> to vector<64x16x1xf32>
    %23 = vector.extract_strided_slice %4 {offsets = [0, 0, 0], sizes = [1, 1, 8], strides = [1, 1, 1]} : vector<3x1x8xf32> to vector<1x1x8xf32>
    %24 = vector.broadcast %22 : vector<64x16x1xf32> to vector<64x16x8xf32>
    %25 = vector.broadcast %23 : vector<1x1x8xf32> to vector<64x16x8xf32>
    %26 = arith.mulf %24, %25 : vector<64x16x8xf32>
    %27 = vector.extract_strided_slice %1 {offsets = [0, 0, 1], sizes = [64, 16, 1], strides = [1, 1, 1]} : vector<64x16x3xf32> to vector<64x16x1xf32>
    %28 = vector.extract_strided_slice %4 {offsets = [1, 0, 0], sizes = [1, 1, 8], strides = [1, 1, 1]} : vector<3x1x8xf32> to vector<1x1x8xf32>
    %29 = vector.broadcast %27 : vector<64x16x1xf32> to vector<64x16x8xf32>
    %30 = vector.broadcast %28 : vector<1x1x8xf32> to vector<64x16x8xf32>
    %31 = arith.mulf %29, %30 : vector<64x16x8xf32>
    %32 = arith.addf %26, %31 : vector<64x16x8xf32>
    %33 = vector.extract_strided_slice %1 {offsets = [0, 0, 2], sizes = [64, 16, 1], strides = [1, 1, 1]} : vector<64x16x3xf32> to vector<64x16x1xf32>
    %34 = vector.extract_strided_slice %4 {offsets = [2, 0, 0], sizes = [1, 1, 8], strides = [1, 1, 1]} : vector<3x1x8xf32> to vector<1x1x8xf32>
    %35 = vector.broadcast %33 : vector<64x16x1xf32> to vector<64x16x8xf32>
    %36 = vector.broadcast %34 : vector<1x1x8xf32> to vector<64x16x8xf32>
    %37 = arith.mulf %35, %36 : vector<64x16x8xf32>
    %38 = arith.addf %32, %37 : vector<64x16x8xf32>
    %39 = vector.broadcast %21 : vector<64x1x8xf32> to vector<64x16x8xf32>
    %40 = arith.addf %38, %39 : vector<64x16x8xf32>
    %c0_14 = arith.constant 0 : index
    %c0_15 = arith.constant 0 : index
    %c0_16 = arith.constant 0 : index
    %41 = vector.load %arg6[%c0_14, %c0_15, %c0_16] : memref<1x1x8xf32, #tpu.memory_space<vmem>>, vector<1x1x8xf32>
    %42 = vector.broadcast %2 : vector<64x16x1xf32> to vector<64x16x8xf32>
    %43 = vector.broadcast %41 : vector<1x1x8xf32> to vector<64x16x8xf32>
    %44 = arith.mulf %42, %43 : vector<64x16x8xf32>
    %45 = arith.addf %40, %44 : vector<64x16x8xf32>
    %c0_17 = arith.constant 0 : index
    %c0_18 = arith.constant 0 : index
    %c0_19 = arith.constant 0 : index
    %46 = vector.load %arg7[%c0_17, %c0_18, %c0_19] : memref<1x1x8xf32, #tpu.memory_space<vmem>>, vector<1x1x8xf32>
    %47 = vector.broadcast %46 : vector<1x1x8xf32> to vector<64x16x8xf32>
    %48 = arith.addf %45, %47 : vector<64x16x8xf32>
    %c0_20 = arith.constant 0 : index
    %c0_21 = arith.constant 0 : index
    %c0_22 = arith.constant 0 : index
    %49 = vector.load %arg8[%c0_20, %c0_21, %c0_22] : memref<64x16x8xf32, #tpu.memory_space<vmem>>, vector<64x16x8xf32>
    tpu.vector_store %arg8[%c0_20, %c0_21, %c0_22], %48 {strides = array<i32>} : memref<64x16x8xf32, #tpu.memory_space<vmem>>, vector<64x16x8xf32>,
    %cst = arith.constant dense<0.000000e+00> : vector<64x8xf32>
    %50 = vector.multi_reduction <add>, %48, %cst [1] : vector<64x16x8xf32> to vector<64x8xf32>
    %51 = arith.mulf %48, %48 : vector<64x16x8xf32>
    %cst_23 = arith.constant dense<0.000000e+00> : vector<64x8xf32>
    %52 = vector.multi_reduction <add>, %51, %cst_23 [1] : vector<64x16x8xf32> to vector<64x8xf32>
    %53 = tpu.iota {dimensions = array<i32: 0>} : vector<64x1xi32>
    %c64_i32 = arith.constant 64 : i32
    %54 = arith.muli %arg0, %c64_i32 : i32
    %55 = vector.broadcast %54 : i32 to vector<64x1xi32>
    %56 = arith.addi %53, %55 : vector<64x1xi32>
    %c128_i32 = arith.constant 128 : i32
    %57 = vector.broadcast %c128_i32 : i32 to vector<64x1xi32>
    %58 = arith.cmpi slt, %56, %57 : vector<64x1xi32>
    %cst_24 = arith.constant 0.000000e+00 : f32
    %59 = vector.shape_cast %58 : vector<64x1xi1> to vector<64x1xi1>
    %60 = vector.broadcast %59 : vector<64x1xi1> to vector<64x8xi1>
    %61 = vector.broadcast %cst_24 : f32 to vector<64x8xf32>
    %62 = arith.select %60, %50, %61 : vector<64x8xi1>, vector<64x8xf32>
    %cst_25 = arith.constant dense<0.000000e+00> : vector<8xf32>
    %63 = vector.multi_reduction <add>, %62, %cst_25 [0] : vector<64x8xf32> to vector<8xf32>
    %64 = vector.shape_cast %63 : vector<8xf32> to vector<1x8xf32>
    %cst_26 = arith.constant 0.000000e+00 : f32
    %65 = vector.shape_cast %58 : vector<64x1xi1> to vector<64x1xi1>
    %66 = vector.broadcast %65 : vector<64x1xi1> to vector<64x8xi1>
    %67 = vector.broadcast %cst_26 : f32 to vector<64x8xf32>
    %68 = arith.select %66, %52, %67 : vector<64x8xi1>, vector<64x8xf32>
    %cst_27 = arith.constant dense<0.000000e+00> : vector<8xf32>
    %69 = vector.multi_reduction <add>, %68, %cst_27 [0] : vector<64x8xf32> to vector<8xf32>
    %70 = vector.shape_cast %69 : vector<8xf32> to vector<1x8xf32>
    %71 = tpu.concatenate %64, %70 in 0 : vector<1x8xf32>, vector<1x8xf32> -> vector<2x8xf32>
    %72 = vector.shape_cast %71 : vector<2x8xf32> to vector<1x2x8xf32>
    %c0_28 = arith.constant 0 : index
    %c0_29 = arith.constant 0 : index
    %c0_30 = arith.constant 0 : index
    %73 = vector.load %arg9[%c0_28, %c0_29, %c0_30] : memref<1x2x8xf32, #tpu.memory_space<vmem>>, vector<1x2x8xf32>
    tpu.vector_store %arg9[%c0_28, %c0_29, %c0_30], %72 {strides = array<i32>} : memref<1x2x8xf32, #tpu.memory_space<vmem>>, vector<1x2x8xf32>,
    return
  }
  func.func @transform_0(%arg0: i32) -> (i32, i32, i32) {
    %c0_i32 = arith.constant 0 : i32
    %c0_i32_0 = arith.constant 0 : i32
    %c0_i32_1 = arith.constant 0 : i32
    return %arg0, %c0_i32, %c0_i32_0 : i32, i32, i32
  }
  func.func @transform_1(%arg0: i32) -> (i32, i32, i32) {
    %c0_i32 = arith.constant 0 : i32
    %c0_i32_0 = arith.constant 0 : i32
    %c0_i32_1 = arith.constant 0 : i32
    return %arg0, %c0_i32, %c0_i32_0 : i32, i32, i32
  }
  func.func @transform_2(%arg0: i32) -> (i32, i32, i32) {
    %c0_i32 = arith.constant 0 : i32
    %c0_i32_0 = arith.constant 0 : i32
    %c0_i32_1 = arith.constant 0 : i32
    return %arg0, %c0_i32, %c0_i32_0 : i32, i32, i32
  }
  func.func @transform_3(%arg0: i32) -> (i32, i32, i32) {
    %c0_i32 = arith.constant 0 : i32
    %c0_i32_0 = arith.constant 0 : i32
    %c0_i32_1 = arith.constant 0 : i32
    %c0_i32_2 = arith.constant 0 : i32
    return %c0_i32, %c0_i32_0, %c0_i32_1 : i32, i32, i32
  }
  func.func @transform_4(%arg0: i32) -> (i32, i32, i32) {
    %c0_i32 = arith.constant 0 : i32
    %c0_i32_0 = arith.constant 0 : i32
    %c0_i32_1 = arith.constant 0 : i32
    %c0_i32_2 = arith.constant 0 : i32
    return %c0_i32, %c0_i32_0, %c0_i32_1 : i32, i32, i32
  }
  func.func @transform_5(%arg0: i32) -> (i32, i32, i32) {
    %c0_i32 = arith.constant 0 : i32
    %c0_i32_0 = arith.constant 0 : i32
    %c0_i32_1 = arith.constant 0 : i32
    %c0_i32_2 = arith.constant 0 : i32
    return %c0_i32, %c0_i32_0, %c0_i32_1 : i32, i32, i32
  }
  func.func @transform_6(%arg0: i32) -> (i32, i32, i32) {
    %c0_i32 = arith.constant 0 : i32
    %c0_i32_0 = arith.constant 0 : i32
    %c0_i32_1 = arith.constant 0 : i32
    %c0_i32_2 = arith.constant 0 : i32
    return %c0_i32, %c0_i32_0, %c0_i32_1 : i32, i32, i32
  }
  func.func @transform_7(%arg0: i32) -> (i32, i32, i32) {
    %c0_i32 = arith.constant 0 : i32
    %c0_i32_0 = arith.constant 0 : i32
    %c0_i32_1 = arith.constant 0 : i32
    return %arg0, %c0_i32, %c0_i32_0 : i32, i32, i32
  }
  func.func @transform_8(%arg0: i32) -> (i32, i32, i32) {
    %c0_i32 = arith.constant 0 : i32
    %c0_i32_0 = arith.constant 0 : i32
    %c0_i32_1 = arith.constant 0 : i32
    return %arg0, %c0_i32, %c0_i32_0 : i32, i32, i32
  }
}

</mosaic_0001>

<llo_original>
// kernel: tpu_custom_call.1
$region0: #{tpu_custom_call.1}
  #allocation0 [shape = 'u32[]', space=smem, size = 0x4, offset = 0x4, fixed_abs, tag = 'smem constant byte address 0x4 - core index']
  #allocation1 [shape = 'u32[72,128]{1,0:T(1,128)}', space=vmem, size = 0x9000, scoped, tag = 'internal scratch']
  %s0 = inlined_call_operand.vmem [shape: f32[128,1,3], index: 0, kind: input, shape index: {}]
  %s1 = inlined_call_operand.vmem [shape: f32[128,16,3], index: 1, kind: input, shape index: {}]
  %s2 = inlined_call_operand.vmem [shape: f32[128,16,1], index: 2, kind: input, shape index: {}]
  %s3 = inlined_call_operand.vmem [shape: f32[3,1,8], index: 3, kind: input, shape index: {}]
  %s4 = inlined_call_operand.vmem [shape: f32[3,1,8], index: 4, kind: input, shape index: {}]
  %s5 = inlined_call_operand.vmem [shape: f32[1,1,8], index: 5, kind: input, shape index: {}]
  %s6 = inlined_call_operand.vmem [shape: f32[1,1,8], index: 6, kind: input, shape index: {}]
  %s7 = inlined_call_operand.vmem [shape: f32[128,16,8], index: 7, kind: output, shape index: {0}]
  %s8 = inlined_call_operand.hbm [shape: f32[2,2,8], index: 8, kind: output, shape index: {1}]
  %9 = xla_tuple %s7, %s8
  %s10 = sld [smem:[#allocation0]]
  $region69: #{tpu_custom_call.1} parent=0
    _
  %s12 = ssub.s32 1, %s10
  %s13 = scalar_select 0, %s12, %s10
  $region1: #{tpu_custom_call.1} parent=0
    #allocation2 [shape = 'u8[2048]{0}', space=vmem, size = 0x800, scoped, tag = 'output window, operand 1']
    #allocation3 [shape = 's32[2]{0}', space=sflag, size = 0x8, scoped, tag = 'scoped memory for tpu_custom_call.1']
    %14 = vsyncpa [#allocation3], 0
    %s15 = scalar_lea.sflag [#allocation3], 1
    %16 = vsyncpa %s15, 0
    loop: start=0, step=1, limit=4
    $region2: #{tpu_custom_call.1} parent=1 // loop_pre_header
      _
    $region3: #{tpu_custom_call.1} parent=1 // loop_header
      %s18 = sphi 0, %s22
      %p19 = scmp.ge.s32.totalorder %s18, 4
      %s28 = sphi 0, %s30
      %s31 = sphi 0, %s28
      %s32 = sphi 0, %s31
      %s48 = sphi 0, %s32
      %s54 = sphi 0, %s56
      %s57 = sphi 0, %s54
      %s58 = sphi 0, %s57
      %s74 = sphi 0, %s58
      %s80 = sphi 0, %s82
      %s83 = sphi 0, %s80
      %s84 = sphi 0, %s83
      %s100 = sphi 0, %s84
      %s104 = sphi 0, %s104
      %s106 = sphi 0, %s104
      %s107 = sphi 0, %s106
      %s121 = sphi 0, %s107
      %s125 = sphi 0, %s125
      %s127 = sphi 0, %s125
      %s128 = sphi 0, %s127
      %s142 = sphi 0, %s128
      %s146 = sphi 0, %s146
      %s148 = sphi 0, %s146
      %s149 = sphi 0, %s148
      %s163 = sphi 0, %s149
      %s167 = sphi 0, %s167
      %s169 = sphi 0, %s167
      %s170 = sphi 0, %s169
      %s184 = sphi 0, %s170
      %s190 = sphi 0, %s192
      %s193 = sphi 0, %s190
      %s194 = sphi 0, %s193
      %s210 = sphi 0, %s194
      %s216 = sphi 0, %s218
      %s219 = sphi 0, %s216
      %s220 = sphi 0, %s219
      %s236 = sphi 0, %s220
    $region4: #{tpu_custom_call.1} parent=1 // loop_header_branch
      %21 = sbr.rel (%p19) target = $region8
    $region5: #{tpu_custom_call.1} parent=1 // loop_body
      %s23 = ssub.s32 %s18, 1
      %s24 = ssub.s32 %s18, 2
      %s25 = sadd.s32 %s18, 1
      %s26 = ssub.s32 %s18, %s25
      %p27 = scmp.eq.s32.totalorder %s26, 0
      %s29 = sadd.s32 %s28, 1
      %s30 = scalar_select %p27, %s28, %s29
      %p33 = pneg %p27
      %p34 = scmp.eq.s32.totalorder %s18, 1
      %p35 = por %p33, %p34
      %p36 = scmp.ne.s32.totalorder %s28, %s31
      %p37 = scmp.eq.s32.totalorder %s18, 0
      %p38 = por %p36, %p37
      %p39 = scmp.ne.s32.totalorder %s28, %s31
      %p40 = scmp.eq.s32.totalorder %s23, 1
      %p41 = por %p39, %p40
      %p42 = scmp.ne.s32.totalorder %s31, %s32
      %p43 = scmp.eq.s32.totalorder %s23, 0
      %p44 = por %p42, %p43
      %p45 = scmp.ne.s32.totalorder %s31, %s32
      %p46 = scmp.eq.s32.totalorder %s24, 1
      %p47 = por %p45, %p46
      %p49 = scmp.ne.s32.totalorder %s32, %s48
      %p50 = scmp.eq.s32.totalorder %s24, 0
      %p51 = por %p49, %p50
      %s52 = ssub.s32 %s18, %s25
      %p53 = scmp.eq.s32.totalorder %s52, 0
      %s55 = sadd.s32 %s54, 1
      %s56 = scalar_select %p53, %s54, %s55
      %p59 = pneg %p53
      %p60 = scmp.eq.s32.totalorder %s18, 1
      %p61 = por %p59, %p60
      %p62 = scmp.ne.s32.totalorder %s54, %s57
      %p63 = scmp.eq.s32.totalorder %s18, 0
      %p64 = por %p62, %p63
      %p65 = scmp.ne.s32.totalorder %s54, %s57
      %p66 = scmp.eq.s32.totalorder %s23, 1
      %p67 = por %p65, %p66
      %p68 = scmp.ne.s32.totalorder %s57, %s58
      %p69 = scmp.eq.s32.totalorder %s23, 0
      %p70 = por %p68, %p69
      %p71 = scmp.ne.s32.totalorder %s57, %s58
      %p72 = scmp.eq.s32.totalorder %s24, 1
      %p73 = por %p71, %p72
      %p75 = scmp.ne.s32.totalorder %s58, %s74
      %p76 = scmp.eq.s32.totalorder %s24, 0
      %p77 = por %p75, %p76
      %s78 = ssub.s32 %s18, %s25
      %p79 = scmp.eq.s32.totalorder %s78, 0
      %s81 = sadd.s32 %s80, 1
      %s82 = scalar_select %p79, %s80, %s81
      %p85 = pneg %p79
      %p86 = scmp.eq.s32.totalorder %s18, 1
      %p87 = por %p85, %p86
      %p88 = scmp.ne.s32.totalorder %s80, %s83
      %p89 = scmp.eq.s32.totalorder %s18, 0
      %p90 = por %p88, %p89
      %p91 = scmp.ne.s32.totalorder %s80, %s83
      %p92 = scmp.eq.s32.totalorder %s23, 1
      %p93 = por %p91, %p92
      %p94 = scmp.ne.s32.totalorder %s83, %s84
      %p95 = scmp.eq.s32.totalorder %s23, 0
      %p96 = por %p94, %p95
      %p97 = scmp.ne.s32.totalorder %s83, %s84
      %p98 = scmp.eq.s32.totalorder %s24, 1
      %p99 = por %p97, %p98
      %p101 = scmp.ne.s32.totalorder %s84, %s100
      %p102 = scmp.eq.s32.totalorder %s24, 0
      %p103 = por %p101, %p102
      %s105 = sadd.s32 %s104, 1
      %p108 = scmp.eq.s32.totalorder %s18, 1
      %p109 = scmp.ne.s32.totalorder %s104, %s106
      %p110 = scmp.eq.s32.totalorder %s18, 0
      %p111 = por %p109, %p110
      %p112 = scmp.ne.s32.totalorder %s104, %s106
      %p113 = scmp.eq.s32.totalorder %s23, 1
      %p114 = por %p112, %p113
      %p115 = scmp.ne.s32.totalorder %s106, %s107
      %p116 = scmp.eq.s32.totalorder %s23, 0
      %p117 = por %p115, %p116
      %p118 = scmp.ne.s32.totalorder %s106, %s107
      %p119 = scmp.eq.s32.totalorder %s24, 1
      %p120 = por %p118, %p119
      %p122 = scmp.ne.s32.totalorder %s107, %s121
      %p123 = scmp.eq.s32.totalorder %s24, 0
      %p124 = por %p122, %p123
      %s126 = sadd.s32 %s125, 1
      %p129 = scmp.eq.s32.totalorder %s18, 1
      %p130 = scmp.ne.s32.totalorder %s125, %s127
      %p131 = scmp.eq.s32.totalorder %s18, 0
      %p132 = por %p130, %p131
      %p133 = scmp.ne.s32.totalorder %s125, %s127
      %p134 = scmp.eq.s32.totalorder %s23, 1
      %p135 = por %p133, %p134
      %p136 = scmp.ne.s32.totalorder %s127, %s128
      %p137 = scmp.eq.s32.totalorder %s23, 0
      %p138 = por %p136, %p137
      %p139 = scmp.ne.s32.totalorder %s127, %s128
      %p140 = scmp.eq.s32.totalorder %s24, 1
      %p141 = por %p139, %p140
      %p143 = scmp.ne.s32.totalorder %s128, %s142
      %p144 = scmp.eq.s32.totalorder %s24, 0
      %p145 = por %p143, %p144
      %s147 = sadd.s32 %s146, 1
      %p150 = scmp.eq.s32.totalorder %s18, 1
      %p151 = scmp.ne.s32.totalorder %s146, %s148
      %p152 = scmp.eq.s32.totalorder %s18, 0
      %p153 = por %p151, %p152
      %p154 = scmp.ne.s32.totalorder %s146, %s148
      %p155 = scmp.eq.s32.totalorder %s23, 1
      %p156 = por %p154, %p155
      %p157 = scmp.ne.s32.totalorder %s148, %s149
      %p158 = scmp.eq.s32.totalorder %s23, 0
      %p159 = por %p157, %p158
      %p160 = scmp.ne.s32.totalorder %s148, %s149
      %p161 = scmp.eq.s32.totalorder %s24, 1
      %p162 = por %p160, %p161
      %p164 = scmp.ne.s32.totalorder %s149, %s163
      %p165 = scmp.eq.s32.totalorder %s24, 0
      %p166 = por %p164, %p165
      %s168 = sadd.s32 %s167, 1
      %p171 = scmp.eq.s32.totalorder %s18, 1
      %p172 = scmp.ne.s32.totalorder %s167, %s169
      %p173 = scmp.eq.s32.totalorder %s18, 0
      %p174 = por %p172, %p173
      %p175 = scmp.ne.s32.totalorder %s167, %s169
      %p176 = scmp.eq.s32.totalorder %s23, 1
      %p177 = por %p175, %p176
      %p178 = scmp.ne.s32.totalorder %s169, %s170
      %p179 = scmp.eq.s32.totalorder %s23, 0
      %p180 = por %p178, %p179
      %p181 = scmp.ne.s32.totalorder %s169, %s170
      %p182 = scmp.eq.s32.totalorder %s24, 1
      %p183 = por %p181, %p182
      %p185 = scmp.ne.s32.totalorder %s170, %s184
      %p186 = scmp.eq.s32.totalorder %s24, 0
      %p187 = por %p185, %p186
      %s188 = ssub.s32 %s18, %s25
      %p189 = scmp.eq.s32.totalorder %s188, 0
      %s191 = sadd.s32 %s190, 1
      %s192 = scalar_select %p189, %s190, %s191
      %p195 = pneg %p189
      %p196 = scmp.eq.s32.totalorder %s18, 1
      %p197 = por %p195, %p196
      %p198 = scmp.ne.s32.totalorder %s190, %s193
      %p199 = scmp.eq.s32.totalorder %s18, 0
      %p200 = por %p198, %p199
      %p201 = scmp.ne.s32.totalorder %s190, %s193
      %p202 = scmp.eq.s32.totalorder %s23, 1
      %p203 = por %p201, %p202
      %p204 = scmp.ne.s32.totalorder %s193, %s194
      %p205 = scmp.eq.s32.totalorder %s23, 0
      %p206 = por %p204, %p205
      %p207 = scmp.ne.s32.totalorder %s193, %s194
      %p208 = scmp.eq.s32.totalorder %s24, 1
      %p209 = por %p207, %p208
      %p211 = scmp.ne.s32.totalorder %s194, %s210
      %p212 = scmp.eq.s32.totalorder %s24, 0
      %p213 = por %p211, %p212
      %s214 = ssub.s32 %s18, %s25
      %p215 = scmp.eq.s32.totalorder %s214, 0
      %s217 = sadd.s32 %s216, 1
      %s218 = scalar_select %p215, %s216, %s217
      %p221 = pneg %p215
      %p222 = scmp.eq.s32.totalorder %s18, 1
      %p223 = por %p221, %p222
      %p224 = scmp.ne.s32.totalorder %s216, %s219
      %p225 = scmp.eq.s32.totalorder %s18, 0
      %p226 = por %p224, %p225
      %p227 = scmp.ne.s32.totalorder %s216, %s219
      %p228 = scmp.eq.s32.totalorder %s23, 1
      %p229 = por %p227, %p228
      %p230 = scmp.ne.s32.totalorder %s219, %s220
      %p231 = scmp.eq.s32.totalorder %s23, 0
      %p232 = por %p230, %p231
      %p233 = scmp.ne.s32.totalorder %s219, %s220
      %p234 = scmp.eq.s32.totalorder %s24, 1
      %p235 = por %p233, %p234
      %p237 = scmp.ne.s32.totalorder %s220, %s236
      %p238 = scmp.eq.s32.totalorder %s24, 0
      %p239 = por %p237, %p238
      %p240 = scmp.le.s32.totalorder 1, %s18
      %p241 = scmp.lt.s32.totalorder %s18, 3
      %p242 = pnand %p240, %p241
      %p243 = pneg %p242
      // Predicated region
      $region9: #{tpu_custom_call.1} parent=5 // pred_check
        _
      $region10: #{tpu_custom_call.1} parent=5 // pred_check_branch
        %245 = sbr.rel (%p242) target = $region12
      $region11: #{tpu_custom_call.1} parent=5 // pred_region
        %s246 = ssub.s32 %s18, 1
        // Predicated region
        $region13: #{tpu_custom_call.1} parent=11 // pred_check
          %p247 = pneg %p117
        $region14: #{tpu_custom_call.1} parent=11 // pred_check_branch
          %249 = sbr.rel (%p247) target = $region16
        $region15: #{tpu_custom_call.1} parent=11 // pred_region
          _
        $region16: #{tpu_custom_call.1} parent=11 // pred_fallthru
          _
        // Predicated region
        $region17: #{tpu_custom_call.1} parent=11 // pred_check
          %p250 = pneg %p138
        $region18: #{tpu_custom_call.1} parent=11 // pred_check_branch
          %252 = sbr.rel (%p250) target = $region20
        $region19: #{tpu_custom_call.1} parent=11 // pred_region
          _
        $region20: #{tpu_custom_call.1} parent=11 // pred_fallthru
          _
        // Predicated region
        $region21: #{tpu_custom_call.1} parent=11 // pred_check
          %p253 = pneg %p159
        $region22: #{tpu_custom_call.1} parent=11 // pred_check_branch
          %255 = sbr.rel (%p253) target = $region24
        $region23: #{tpu_custom_call.1} parent=11 // pred_region
          _
        $region24: #{tpu_custom_call.1} parent=11 // pred_fallthru
          _
        // Predicated region
        $region25: #{tpu_custom_call.1} parent=11 // pred_check
          %p256 = pneg %p180
        $region26: #{tpu_custom_call.1} parent=11 // pred_check_branch
          %258 = sbr.rel (%p256) target = $region28
        $region27: #{tpu_custom_call.1} parent=11 // pred_region
          _
        $region28: #{tpu_custom_call.1} parent=11 // pred_fallthru
          _
      $region12: #{tpu_custom_call.1} parent=5 // pred_fallthru
        _
      %p259 = scmp.lt.s32.totalorder %s18, 2
      // Predicated region
      $region29: #{tpu_custom_call.1} parent=5 // pred_check
        %p260 = pneg %p259
      $region30: #{tpu_custom_call.1} parent=5 // pred_check_branch
        %262 = sbr.rel (%p260) target = $region32
      $region31: #{tpu_custom_call.1} parent=5 // pred_region
        // Predicated region
        $region33: #{tpu_custom_call.1} parent=31 // pred_check
          %p263 = pneg %p38
        $region34: #{tpu_custom_call.1} parent=31 // pred_check_branch
          %265 = sbr.rel (%p263) target = $region36
        $region35: #{tpu_custom_call.1} parent=31 // pred_region
          %s266 = smul.u32 64, %s18
          %p267 = scmp.lt.s32.totalorder %s266, 127
          %s268 = scalar_select %p267, %s266, 127
          %s269 = scalar_lea.vmem %s0, %s268
          %s270 = smul.u32 64, %s18
        $region36: #{tpu_custom_call.1} parent=31 // pred_fallthru
          _
        // Predicated region
        $region37: #{tpu_custom_call.1} parent=31 // pred_check
          %p271 = pneg %p64
        $region38: #{tpu_custom_call.1} parent=31 // pred_check_branch
          %273 = sbr.rel (%p271) target = $region40
        $region39: #{tpu_custom_call.1} parent=31 // pred_region
          %s274 = smul.u32 64, %s18
          %p275 = scmp.lt.s32.totalorder %s274, 127
          %s276 = scalar_select %p275, %s274, 127
          %s277 = smul.addr %s276, 2
          %s278 = smul.addr %s277, 8
          %s279 = scalar_lea.vmem %s1, %s278
          %s280 = smul.u32 64, %s18
        $region40: #{tpu_custom_call.1} parent=31 // pred_fallthru
          _
        // Predicated region
        $region41: #{tpu_custom_call.1} parent=31 // pred_check
          %p281 = pneg %p90
        $region42: #{tpu_custom_call.1} parent=31 // pred_check_branch
          %283 = sbr.rel (%p281) target = $region44
        $region43: #{tpu_custom_call.1} parent=31 // pred_region
          %s284 = smul.u32 64, %s18
          %p285 = scmp.lt.s32.totalorder %s284, 127
          %s286 = scalar_select %p285, %s284, 127
          %s287 = smul.addr %s286, 2
          %s288 = smul.addr %s287, 8
          %s289 = scalar_lea.vmem %s2, %s288
          %s290 = smul.u32 64, %s18
        $region44: #{tpu_custom_call.1} parent=31 // pred_fallthru
          _
      $region32: #{tpu_custom_call.1} parent=5 // pred_fallthru
        _
      %p291 = scmp.le.s32.totalorder 1, %s18
      %p292 = scmp.lt.s32.totalorder %s18, 3
      %p293 = pnand %p291, %p292
      %p294 = pneg %p293
      // Predicated region
      $region45: #{tpu_custom_call.1} parent=5 // pred_check
        _
      $region46: #{tpu_custom_call.1} parent=5 // pred_check_branch
        %296 = sbr.rel (%p293) target = $region48
      $region47: #{tpu_custom_call.1} parent=5 // pred_region
        %s297 = ssub.s32 %s18, 1
        %s298 = smul.u32 64, %s23
        %p299 = scmp.lt.s32.totalorder %s298, 127
        %s300 = scalar_select %p299, %s298, 127
        %s301 = scalar_lea.vmem %s0, %s300
        %p302 = pneg %p44
        %p303 = pneg %p41
        %s304 = smul.u32 64, %s23
        %p305 = scmp.lt.s32.totalorder %s304, 127
        %s306 = scalar_select %p305, %s304, 127
        %s307 = smul.addr %s306, 2
        %s308 = smul.addr %s307, 8
        %s309 = scalar_lea.vmem %s1, %s308
        %p310 = pneg %p70
        %p311 = pneg %p67
        %s312 = smul.u32 64, %s23
        %p313 = scmp.lt.s32.totalorder %s312, 127
        %s314 = scalar_select %p313, %s312, 127
        %s315 = smul.addr %s314, 2
        %s316 = smul.addr %s315, 8
        %s317 = scalar_lea.vmem %s2, %s316
        %p318 = pneg %p96
        %p319 = pneg %p93
        %p320 = pneg %p117
        %p321 = pneg %p114
        %p322 = pneg %p138
        %p323 = pneg %p135
        %p324 = pneg %p159
        %p325 = pneg %p156
        %p326 = pneg %p180
        %p327 = pneg %p177
        %p328 = pneg %p206
        %p329 = pneg %p203
        %s330 = smul.u32 64, %s23
        %p331 = scmp.lt.s32.totalorder %s330, 127
        %s332 = scalar_select %p331, %s330, 127
        %s333 = smul.addr %s332, 2
        %s334 = smul.addr %s333, 8
        %s335 = scalar_lea.vmem %s7, %s334
        %p336 = pneg %p232
        %p337 = pneg %p229
        %s338 = sand.u32 %s219, 1
        %s339 = scalar_lea.sflag [#allocation3], %s338
        %s340 = sand.u32 %s219, 1
        %s341 = smul.addr %s340, 2
        %s342 = scalar_lea.vmem [#allocation2], %s341
        %s343 = smul.u32 64, %s23
        %p344 = scmp.lt.s32.totalorder %s343, 127
        %s345 = scalar_select %p344, %s343, 127
        %s346 = scalar_lea.vmem %s0, %s345
        %s347 = smul.u32 64, %s23
        %s348 = smul.u32 64, %s23
        %p349 = scmp.lt.s32.totalorder %s348, 127
        %s350 = scalar_select %p349, %s348, 127
        %s351 = smul.addr %s350, 2
        %s352 = smul.addr %s351, 8
        %s353 = scalar_lea.vmem %s1, %s352
        %s354 = smul.u32 64, %s23
        %s355 = smul.u32 64, %s23
        %p356 = scmp.lt.s32.totalorder %s355, 127
        %s357 = scalar_select %p356, %s355, 127
        %s358 = smul.addr %s357, 2
        %s359 = smul.addr %s358, 8
        %s360 = scalar_lea.vmem %s2, %s359
        %s361 = smul.u32 64, %s23
        %s362 = smul.u32 64, %s23
        %p363 = scmp.lt.s32.totalorder %s362, 127
        %s364 = scalar_select %p363, %s362, 127
        %s365 = smul.addr %s364, 2
        %s366 = smul.addr %s365, 8
        %s367 = scalar_lea.vmem %s7, %s366
        %s368 = smul.u32 64, %s23
        %v369 = vld [vmem:[%s346] sm:$0x1]
        %v370 = vld [vmem:[%s346 + $0x1] sm:$0x1]
        %v371 = vld [vmem:[%s346 + $0x2] sm:$0x1]
        %v372 = vld [vmem:[%s346 + $0x3] sm:$0x1]
        %v373 = vld [vmem:[%s346 + $0x4] sm:$0x1]
        %v374 = vld [vmem:[%s346 + $0x5] sm:$0x1]
        %v375 = vld [vmem:[%s346 + $0x6] sm:$0x1]
        %v376 = vld [vmem:[%s346 + $0x7] sm:$0x1]
        %v377 = vld [vmem:[%s346 + $0x8] sm:$0x1]
        %v378 = vld [vmem:[%s346 + $0x9] sm:$0x1]
        %v379 = vld [vmem:[%s346 + $0xa] sm:$0x1]
        %v380 = vld [vmem:[%s346 + $0xb] sm:$0x1]
        %v381 = vld [vmem:[%s346 + $0xc] sm:$0x1]
        %v382 = vld [vmem:[%s346 + $0xd] sm:$0x1]
        %v383 = vld [vmem:[%s346 + $0xe] sm:$0x1]
        %v384 = vld [vmem:[%s346 + $0xf] sm:$0x1]
        %v385 = vld [vmem:[%s346 + $0x10] sm:$0x1]
        %v386 = vld [vmem:[%s346 + $0x11] sm:$0x1]
        %v387 = vld [vmem:[%s346 + $0x12] sm:$0x1]
        %v388 = vld [vmem:[%s346 + $0x13] sm:$0x1]
        %v389 = vld [vmem:[%s346 + $0x14] sm:$0x1]
        %v390 = vld [vmem:[%s346 + $0x15] sm:$0x1]
        %v391 = vld [vmem:[%s346 + $0x16] sm:$0x1]
        %v392 = vld [vmem:[%s346 + $0x17] sm:$0x1]
        %v393 = vld [vmem:[%s346 + $0x18] sm:$0x1]
        %v394 = vld [vmem:[%s346 + $0x19] sm:$0x1]
        %v395 = vld [vmem:[%s346 + $0x1a] sm:$0x1]
        %v396 = vld [vmem:[%s346 + $0x1b] sm:$0x1]
        %v397 = vld [vmem:[%s346 + $0x1c] sm:$0x1]
        %v398 = vld [vmem:[%s346 + $0x1d] sm:$0x1]
        %v399 = vld [vmem:[%s346 + $0x1e] sm:$0x1]
        %v400 = vld [vmem:[%s346 + $0x1f] sm:$0x1]
        %v401 = vld [vmem:[%s346 + $0x20] sm:$0x1]
        %v402 = vld [vmem:[%s346 + $0x21] sm:$0x1]
        %v403 = vld [vmem:[%s346 + $0x22] sm:$0x1]
        %v404 = vld [vmem:[%s346 + $0x23] sm:$0x1]
        %v405 = vld [vmem:[%s346 + $0x24] sm:$0x1]
        %v406 = vld [vmem:[%s346 + $0x25] sm:$0x1]
        %v407 = vld [vmem:[%s346 + $0x26] sm:$0x1]
        %v408 = vld [vmem:[%s346 + $0x27] sm:$0x1]
        %v409 = vld [vmem:[%s346 + $0x28] sm:$0x1]
        %v410 = vld [vmem:[%s346 + $0x29] sm:$0x1]
        %v411 = vld [vmem:[%s346 + $0x2a] sm:$0x1]
        %v412 = vld [vmem:[%s346 + $0x2b] sm:$0x1]
        %v413 = vld [vmem:[%s346 + $0x2c] sm:$0x1]
        %v414 = vld [vmem:[%s346 + $0x2d] sm:$0x1]
        %v415 = vld [vmem:[%s346 + $0x2e] sm:$0x1]
        %v416 = vld [vmem:[%s346 + $0x2f] sm:$0x1]
        %v417 = vld [vmem:[%s346 + $0x30] sm:$0x1]
        %v418 = vld [vmem:[%s346 + $0x31] sm:$0x1]
        %v419 = vld [vmem:[%s346 + $0x32] sm:$0x1]
        %v420 = vld [vmem:[%s346 + $0x33] sm:$0x1]
        %v421 = vld [vmem:[%s346 + $0x34] sm:$0x1]
        %v422 = vld [vmem:[%s346 + $0x35] sm:$0x1]
        %v423 = vld [vmem:[%s346 + $0x36] sm:$0x1]
        %v424 = vld [vmem:[%s346 + $0x37] sm:$0x1]
        %v425 = vld [vmem:[%s346 + $0x38] sm:$0x1]
        %v426 = vld [vmem:[%s346 + $0x39] sm:$0x1]
        %v427 = vld [vmem:[%s346 + $0x3a] sm:$0x1]
        %v428 = vld [vmem:[%s346 + $0x3b] sm:$0x1]
        %v429 = vld [vmem:[%s346 + $0x3c] sm:$0x1]
        %v430 = vld [vmem:[%s346 + $0x3d] sm:$0x1]
        %v431 = vld [vmem:[%s346 + $0x3e] sm:$0x1]
        %v432 = vld [vmem:[%s346 + $0x3f] sm:$0x1]
        %v433 = vld [vmem:[%s353] sm:$0xff]
        %v434 = vld [vmem:[%s353 + $0x8] sm:$0xff]
        %v435 = vld [vmem:[%s353 + $0x10] sm:$0xff]
        %v436 = vld [vmem:[%s353 + $0x18] sm:$0xff]
        %v437 = vld [vmem:[%s353 + $0x20] sm:$0xff]
        %v438 = vld [vmem:[%s353 + $0x28] sm:$0xff]
        %v439 = vld [vmem:[%s353 + $0x30] sm:$0xff]
        %v440 = vld [vmem:[%s353 + $0x38] sm:$0xff]
        %v441 = vld [vmem:[%s353 + $0x40] sm:$0xff]
        %v442 = vld [vmem:[%s353 + $0x48] sm:$0xff]
        %v443 = vld [vmem:[%s353 + $0x50] sm:$0xff]
        %v444 = vld [vmem:[%s353 + $0x58] sm:$0xff]
        %v445 = vld [vmem:[%s353 + $0x60] sm:$0xff]
        %v446 = vld [vmem:[%s353 + $0x68] sm:$0xff]
        %v447 = vld [vmem:[%s353 + $0x70] sm:$0xff]
        %v448 = vld [vmem:[%s353 + $0x78] sm:$0xff]
        %v449 = vld [vmem:[%s353 + $0x80] sm:$0xff]
        %v450 = vld [vmem:[%s353 + $0x88] sm:$0xff]
        %v451 = vld [vmem:[%s353 + $0x90] sm:$0xff]
        %v452 = vld [vmem:[%s353 + $0x98] sm:$0xff]
        %v453 = vld [vmem:[%s353 + $0xa0] sm:$0xff]
        %v454 = vld [vmem:[%s353 + $0xa8] sm:$0xff]
        %v455 = vld [vmem:[%s353 + $0xb0] sm:$0xff]
        %v456 = vld [vmem:[%s353 + $0xb8] sm:$0xff]
        %v457 = vld [vmem:[%s353 + $0xc0] sm:$0xff]
        %v458 = vld [vmem:[%s353 + $0xc8] sm:$0xff]
        %v459 = vld [vmem:[%s353 + $0xd0] sm:$0xff]
        %v460 = vld [vmem:[%s353 + $0xd8] sm:$0xff]
        %v461 = vld [vmem:[%s353 + $0xe0] sm:$0xff]
        %v462 = vld [vmem:[%s353 + $0xe8] sm:$0xff]
        %v463 = vld [vmem:[%s353 + $0xf0] sm:$0xff]
        %v464 = vld [vmem:[%s353 + $0xf8] sm:$0xff]
        %v465 = vld [vmem:[%s353 + $0x100] sm:$0xff]
        %v466 = vld [vmem:[%s353 + $0x108] sm:$0xff]
        %v467 = vld [vmem:[%s353 + $0x110] sm:$0xff]
        %v468 = vld [vmem:[%s353 + $0x118] sm:$0xff]
        %v469 = vld [vmem:[%s353 + $0x120] sm:$0xff]
        %v470 = vld [vmem:[%s353 + $0x128] sm:$0xff]
        %v471 = vld [vmem:[%s353 + $0x130] sm:$0xff]
        %v472 = vld [vmem:[%s353 + $0x138] sm:$0xff]
        %v473 = vld [vmem:[%s353 + $0x140] sm:$0xff]
        %v474 = vld [vmem:[%s353 + $0x148] sm:$0xff]
        %v475 = vld [vmem:[%s353 + $0x150] sm:$0xff]
        %v476 = vld [vmem:[%s353 + $0x158] sm:$0xff]
        %v477 = vld [vmem:[%s353 + $0x160] sm:$0xff]
        %v478 = vld [vmem:[%s353 + $0x168] sm:$0xff]
        %v479 = vld [vmem:[%s353 + $0x170] sm:$0xff]
        %v480 = vld [vmem:[%s353 + $0x178] sm:$0xff]
        %v481 = vld [vmem:[%s353 + $0x180] sm:$0xff]
        %v482 = vld [vmem:[%s353 + $0x188] sm:$0xff]
        %v483 = vld [vmem:[%s353 + $0x190] sm:$0xff]
        %v484 = vld [vmem:[%s353 + $0x198] sm:$0xff]
        %v485 = vld [vmem:[%s353 + $0x1a0] sm:$0xff]
        %v486 = vld [vmem:[%s353 + $0x1a8] sm:$0xff]
        %v487 = vld [vmem:[%s353 + $0x1b0] sm:$0xff]
        %v488 = vld [vmem:[%s353 + $0x1b8] sm:$0xff]
        %v489 = vld [vmem:[%s353 + $0x1c0] sm:$0xff]
        %v490 = vld [vmem:[%s353 + $0x1c8] sm:$0xff]
        %v491 = vld [vmem:[%s353 + $0x1d0] sm:$0xff]
        %v492 = vld [vmem:[%s353 + $0x1d8] sm:$0xff]
        %v493 = vld [vmem:[%s353 + $0x1e0] sm:$0xff]
        %v494 = vld [vmem:[%s353 + $0x1e8] sm:$0xff]
        %v495 = vld [vmem:[%s353 + $0x1f0] sm:$0xff]
        %v496 = vld [vmem:[%s353 + $0x1f8] sm:$0xff]
        %v497 = vld [vmem:[%s353 + $0x200] sm:$0xff]
        %v498 = vld [vmem:[%s353 + $0x208] sm:$0xff]
        %v499 = vld [vmem:[%s353 + $0x210] sm:$0xff]
        %v500 = vld [vmem:[%s353 + $0x218] sm:$0xff]
        %v501 = vld [vmem:[%s353 + $0x220] sm:$0xff]
        %v502 = vld [vmem:[%s353 + $0x228] sm:$0xff]
        %v503 = vld [vmem:[%s353 + $0x230] sm:$0xff]
        %v504 = vld [vmem:[%s353 + $0x238] sm:$0xff]
        %v505 = vld [vmem:[%s353 + $0x240] sm:$0xff]
        %v506 = vld [vmem:[%s353 + $0x248] sm:$0xff]
        %v507 = vld [vmem:[%s353 + $0x250] sm:$0xff]
        %v508 = vld [vmem:[%s353 + $0x258] sm:$0xff]
        %v509 = vld [vmem:[%s353 + $0x260] sm:$0xff]
        %v510 = vld [vmem:[%s353 + $0x268] sm:$0xff]
        %v511 = vld [vmem:[%s353 + $0x270] sm:$0xff]
        %v512 = vld [vmem:[%s353 + $0x278] sm:$0xff]
        %v513 = vld [vmem:[%s353 + $0x280] sm:$0xff]
        %v514 = vld [vmem:[%s353 + $0x288] sm:$0xff]
        %v515 = vld [vmem:[%s353 + $0x290] sm:$0xff]
        %v516 = vld [vmem:[%s353 + $0x298] sm:$0xff]
        %v517 = vld [vmem:[%s353 + $0x2a0] sm:$0xff]
        %v518 = vld [vmem:[%s353 + $0x2a8] sm:$0xff]
        %v519 = vld [vmem:[%s353 + $0x2b0] sm:$0xff]
        %v520 = vld [vmem:[%s353 + $0x2b8] sm:$0xff]
        %v521 = vld [vmem:[%s353 + $0x2c0] sm:$0xff]
        %v522 = vld [vmem:[%s353 + $0x2c8] sm:$0xff]
        %v523 = vld [vmem:[%s353 + $0x2d0] sm:$0xff]
        %v524 = vld [vmem:[%s353 + $0x2d8] sm:$0xff]
        %v525 = vld [vmem:[%s353 + $0x2e0] sm:$0xff]
        %v526 = vld [vmem:[%s353 + $0x2e8] sm:$0xff]
        %v527 = vld [vmem:[%s353 + $0x2f0] sm:$0xff]
        %v528 = vld [vmem:[%s353 + $0x2f8] sm:$0xff]
        %v529 = vld [vmem:[%s353 + $0x300] sm:$0xff]
        %v530 = vld [vmem:[%s353 + $0x308] sm:$0xff]
        %v531 = vld [vmem:[%s353 + $0x310] sm:$0xff]
        %v532 = vld [vmem:[%s353 + $0x318] sm:$0xff]
        %v533 = vld [vmem:[%s353 + $0x320] sm:$0xff]
        %v534 = vld [vmem:[%s353 + $0x328] sm:$0xff]
        %v535 = vld [vmem:[%s353 + $0x330] sm:$0xff]
        %v536 = vld [vmem:[%s353 + $0x338] sm:$0xff]
        %v537 = vld [vmem:[%s353 + $0x340] sm:$0xff]
        %v538 = vld [vmem:[%s353 + $0x348] sm:$0xff]
        %v539 = vld [vmem:[%s353 + $0x350] sm:$0xff]
        %v540 = vld [vmem:[%s353 + $0x358] sm:$0xff]
        %v541 = vld [vmem:[%s353 + $0x360] sm:$0xff]
        %v542 = vld [vmem:[%s353 + $0x368] sm:$0xff]
        %v543 = vld [vmem:[%s353 + $0x370] sm:$0xff]
        %v544 = vld [vmem:[%s353 + $0x378] sm:$0xff]
        %v545 = vld [vmem:[%s353 + $0x380] sm:$0xff]
        %v546 = vld [vmem:[%s353 + $0x388] sm:$0xff]
        %v547 = vld [vmem:[%s353 + $0x390] sm:$0xff]
        %v548 = vld [vmem:[%s353 + $0x398] sm:$0xff]
        %v549 = vld [vmem:[%s353 + $0x3a0] sm:$0xff]
        %v550 = vld [vmem:[%s353 + $0x3a8] sm:$0xff]
        %v551 = vld [vmem:[%s353 + $0x3b0] sm:$0xff]
        %v552 = vld [vmem:[%s353 + $0x3b8] sm:$0xff]
        %v553 = vld [vmem:[%s353 + $0x3c0] sm:$0xff]
        %v554 = vld [vmem:[%s353 + $0x3c8] sm:$0xff]
        %v555 = vld [vmem:[%s353 + $0x3d0] sm:$0xff]
        %v556 = vld [vmem:[%s353 + $0x3d8] sm:$0xff]
        %v557 = vld [vmem:[%s353 + $0x3e0] sm:$0xff]
        %v558 = vld [vmem:[%s353 + $0x3e8] sm:$0xff]
        %v559 = vld [vmem:[%s353 + $0x3f0] sm:$0xff]
        %v560 = vld [vmem:[%s353 + $0x3f8] sm:$0xff]
        %v561 = vld [vmem:[%s360] sm:$0xff]
        %v562 = vld [vmem:[%s360 + $0x8] sm:$0xff]
        %v563 = vld [vmem:[%s360 + $0x10] sm:$0xff]
        %v564 = vld [vmem:[%s360 + $0x18] sm:$0xff]
        %v565 = vld [vmem:[%s360 + $0x20] sm:$0xff]
        %v566 = vld [vmem:[%s360 + $0x28] sm:$0xff]
        %v567 = vld [vmem:[%s360 + $0x30] sm:$0xff]
        %v568 = vld [vmem:[%s360 + $0x38] sm:$0xff]
        %v569 = vld [vmem:[%s360 + $0x40] sm:$0xff]
        %v570 = vld [vmem:[%s360 + $0x48] sm:$0xff]
        %v571 = vld [vmem:[%s360 + $0x50] sm:$0xff]
        %v572 = vld [vmem:[%s360 + $0x58] sm:$0xff]
        %v573 = vld [vmem:[%s360 + $0x60] sm:$0xff]
        %v574 = vld [vmem:[%s360 + $0x68] sm:$0xff]
        %v575 = vld [vmem:[%s360 + $0x70] sm:$0xff]
        %v576 = vld [vmem:[%s360 + $0x78] sm:$0xff]
        %v577 = vld [vmem:[%s360 + $0x80] sm:$0xff]
        %v578 = vld [vmem:[%s360 + $0x88] sm:$0xff]
        %v579 = vld [vmem:[%s360 + $0x90] sm:$0xff]
        %v580 = vld [vmem:[%s360 + $0x98] sm:$0xff]
        %v581 = vld [vmem:[%s360 + $0xa0] sm:$0xff]
        %v582 = vld [vmem:[%s360 + $0xa8] sm:$0xff]
        %v583 = vld [vmem:[%s360 + $0xb0] sm:$0xff]
        %v584 = vld [vmem:[%s360 + $0xb8] sm:$0xff]
        %v585 = vld [vmem:[%s360 + $0xc0] sm:$0xff]
        %v586 = vld [vmem:[%s360 + $0xc8] sm:$0xff]
        %v587 = vld [vmem:[%s360 + $0xd0] sm:$0xff]
        %v588 = vld [vmem:[%s360 + $0xd8] sm:$0xff]
        %v589 = vld [vmem:[%s360 + $0xe0] sm:$0xff]
        %v590 = vld [vmem:[%s360 + $0xe8] sm:$0xff]
        %v591 = vld [vmem:[%s360 + $0xf0] sm:$0xff]
        %v592 = vld [vmem:[%s360 + $0xf8] sm:$0xff]
        %v593 = vld [vmem:[%s360 + $0x100] sm:$0xff]
        %v594 = vld [vmem:[%s360 + $0x108] sm:$0xff]
        %v595 = vld [vmem:[%s360 + $0x110] sm:$0xff]
        %v596 = vld [vmem:[%s360 + $0x118] sm:$0xff]
        %v597 = vld [vmem:[%s360 + $0x120] sm:$0xff]
        %v598 = vld [vmem:[%s360 + $0x128] sm:$0xff]
        %v599 = vld [vmem:[%s360 + $0x130] sm:$0xff]
        %v600 = vld [vmem:[%s360 + $0x138] sm:$0xff]
        %v601 = vld [vmem:[%s360 + $0x140] sm:$0xff]
        %v602 = vld [vmem:[%s360 + $0x148] sm:$0xff]
        %v603 = vld [vmem:[%s360 + $0x150] sm:$0xff]
        %v604 = vld [vmem:[%s360 + $0x158] sm:$0xff]
        %v605 = vld [vmem:[%s360 + $0x160] sm:$0xff]
        %v606 = vld [vmem:[%s360 + $0x168] sm:$0xff]
        %v607 = vld [vmem:[%s360 + $0x170] sm:$0xff]
        %v608 = vld [vmem:[%s360 + $0x178] sm:$0xff]
        %v609 = vld [vmem:[%s360 + $0x180] sm:$0xff]
        %v610 = vld [vmem:[%s360 + $0x188] sm:$0xff]
        %v611 = vld [vmem:[%s360 + $0x190] sm:$0xff]
        %v612 = vld [vmem:[%s360 + $0x198] sm:$0xff]
        %v613 = vld [vmem:[%s360 + $0x1a0] sm:$0xff]
        %v614 = vld [vmem:[%s360 + $0x1a8] sm:$0xff]
        %v615 = vld [vmem:[%s360 + $0x1b0] sm:$0xff]
        %v616 = vld [vmem:[%s360 + $0x1b8] sm:$0xff]
        %v617 = vld [vmem:[%s360 + $0x1c0] sm:$0xff]
        %v618 = vld [vmem:[%s360 + $0x1c8] sm:$0xff]
        %v619 = vld [vmem:[%s360 + $0x1d0] sm:$0xff]
        %v620 = vld [vmem:[%s360 + $0x1d8] sm:$0xff]
        %v621 = vld [vmem:[%s360 + $0x1e0] sm:$0xff]
        %v622 = vld [vmem:[%s360 + $0x1e8] sm:$0xff]
        %v623 = vld [vmem:[%s360 + $0x1f0] sm:$0xff]
        %v624 = vld [vmem:[%s360 + $0x1f8] sm:$0xff]
        %v625 = vld [vmem:[%s360 + $0x200] sm:$0xff]
        %v626 = vld [vmem:[%s360 + $0x208] sm:$0xff]
        %v627 = vld [vmem:[%s360 + $0x210] sm:$0xff]
        %v628 = vld [vmem:[%s360 + $0x218] sm:$0xff]
        %v629 = vld [vmem:[%s360 + $0x220] sm:$0xff]
        %v630 = vld [vmem:[%s360 + $0x228] sm:$0xff]
        %v631 = vld [vmem:[%s360 + $0x230] sm:$0xff]
        %v632 = vld [vmem:[%s360 + $0x238] sm:$0xff]
        %v633 = vld [vmem:[%s360 + $0x240] sm:$0xff]
        %v634 = vld [vmem:[%s360 + $0x248] sm:$0xff]
        %v635 = vld [vmem:[%s360 + $0x250] sm:$0xff]
        %v636 = vld [vmem:[%s360 + $0x258] sm:$0xff]
        %v637 = vld [vmem:[%s360 + $0x260] sm:$0xff]
        %v638 = vld [vmem:[%s360 + $0x268] sm:$0xff]
        %v639 = vld [vmem:[%s360 + $0x270] sm:$0xff]
        %v640 = vld [vmem:[%s360 + $0x278] sm:$0xff]
        %v641 = vld [vmem:[%s360 + $0x280] sm:$0xff]
        %v642 = vld [vmem:[%s360 + $0x288] sm:$0xff]
        %v643 = vld [vmem:[%s360 + $0x290] sm:$0xff]
        %v644 = vld [vmem:[%s360 + $0x298] sm:$0xff]
        %v645 = vld [vmem:[%s360 + $0x2a0] sm:$0xff]
        %v646 = vld [vmem:[%s360 + $0x2a8] sm:$0xff]
        %v647 = vld [vmem:[%s360 + $0x2b0] sm:$0xff]
        %v648 = vld [vmem:[%s360 + $0x2b8] sm:$0xff]
        %v649 = vld [vmem:[%s360 + $0x2c0] sm:$0xff]
        %v650 = vld [vmem:[%s360 + $0x2c8] sm:$0xff]
        %v651 = vld [vmem:[%s360 + $0x2d0] sm:$0xff]
        %v652 = vld [vmem:[%s360 + $0x2d8] sm:$0xff]
        %v653 = vld [vmem:[%s360 + $0x2e0] sm:$0xff]
        %v654 = vld [vmem:[%s360 + $0x2e8] sm:$0xff]
        %v655 = vld [vmem:[%s360 + $0x2f0] sm:$0xff]
        %v656 = vld [vmem:[%s360 + $0x2f8] sm:$0xff]
        %v657 = vld [vmem:[%s360 + $0x300] sm:$0xff]
        %v658 = vld [vmem:[%s360 + $0x308] sm:$0xff]
        %v659 = vld [vmem:[%s360 + $0x310] sm:$0xff]
        %v660 = vld [vmem:[%s360 + $0x318] sm:$0xff]
        %v661 = vld [vmem:[%s360 + $0x320] sm:$0xff]
        %v662 = vld [vmem:[%s360 + $0x328] sm:$0xff]
        %v663 = vld [vmem:[%s360 + $0x330] sm:$0xff]
        %v664 = vld [vmem:[%s360 + $0x338] sm:$0xff]
        %v665 = vld [vmem:[%s360 + $0x340] sm:$0xff]
        %v666 = vld [vmem:[%s360 + $0x348] sm:$0xff]
        %v667 = vld [vmem:[%s360 + $0x350] sm:$0xff]
        %v668 = vld [vmem:[%s360 + $0x358] sm:$0xff]
        %v669 = vld [vmem:[%s360 + $0x360] sm:$0xff]
        %v670 = vld [vmem:[%s360 + $0x368] sm:$0xff]
        %v671 = vld [vmem:[%s360 + $0x370] sm:$0xff]
        %v672 = vld [vmem:[%s360 + $0x378] sm:$0xff]
        %v673 = vld [vmem:[%s360 + $0x380] sm:$0xff]
        %v674 = vld [vmem:[%s360 + $0x388] sm:$0xff]
        %v675 = vld [vmem:[%s360 + $0x390] sm:$0xff]
        %v676 = vld [vmem:[%s360 + $0x398] sm:$0xff]
        %v677 = vld [vmem:[%s360 + $0x3a0] sm:$0xff]
        %v678 = vld [vmem:[%s360 + $0x3a8] sm:$0xff]
        %v679 = vld [vmem:[%s360 + $0x3b0] sm:$0xff]
        %v680 = vld [vmem:[%s360 + $0x3b8] sm:$0xff]
        %v681 = vld [vmem:[%s360 + $0x3c0] sm:$0xff]
        %v682 = vld [vmem:[%s360 + $0x3c8] sm:$0xff]
        %v683 = vld [vmem:[%s360 + $0x3d0] sm:$0xff]
        %v684 = vld [vmem:[%s360 + $0x3d8] sm:$0xff]
        %v685 = vld [vmem:[%s360 + $0x3e0] sm:$0xff]
        %v686 = vld [vmem:[%s360 + $0x3e8] sm:$0xff]
        %v687 = vld [vmem:[%s360 + $0x3f0] sm:$0xff]
        %v688 = vld [vmem:[%s360 + $0x3f8] sm:$0xff]
        %v689 = vld [vmem:[%s3] sm:$0x1]
        %v690 = vld [vmem:[%s3 + $0x1] sm:$0x1]
        %v691 = vld [vmem:[%s3 + $0x2] sm:$0x1]
        %v692 = vld [vmem:[%s4] sm:$0x1]
        %v693 = vld [vmem:[%s4 + $0x1] sm:$0x1]
        %v694 = vld [vmem:[%s4 + $0x2] sm:$0x1]
        %696 = vset.pattern.permute.xlu0 0
        %697 = vperm.xlu0 %696, %v369
        %v698 = vpop.permute.xlu0 %697
        %v700 = vperm.slane %v698, 0
        %702 = vset.pattern.permute.xlu0 0
        %703 = vperm.xlu0 %702, %v370
        %v704 = vpop.permute.xlu0 %703
        %v706 = vperm.slane %v704, 0
        %708 = vset.pattern.permute.xlu0 0
        %709 = vperm.xlu0 %708, %v371
        %v710 = vpop.permute.xlu0 %709
        %v712 = vperm.slane %v710, 0
        %714 = vset.pattern.permute.xlu0 0
        %715 = vperm.xlu0 %714, %v372
        %v716 = vpop.permute.xlu0 %715
        %v718 = vperm.slane %v716, 0
        %720 = vset.pattern.permute.xlu0 0
        %721 = vperm.xlu0 %720, %v373
        %v722 = vpop.permute.xlu0 %721
        %v724 = vperm.slane %v722, 0
        %726 = vset.pattern.permute.xlu0 0
        %727 = vperm.xlu0 %726, %v374
        %v728 = vpop.permute.xlu0 %727
        %v730 = vperm.slane %v728, 0
        %732 = vset.pattern.permute.xlu0 0
        %733 = vperm.xlu0 %732, %v375
        %v734 = vpop.permute.xlu0 %733
        %v736 = vperm.slane %v734, 0
        %738 = vset.pattern.permute.xlu0 0
        %739 = vperm.xlu0 %738, %v376
        %v740 = vpop.permute.xlu0 %739
        %v742 = vperm.slane %v740, 0
        %744 = vset.pattern.permute.xlu0 0
        %745 = vperm.xlu0 %744, %v377
        %v746 = vpop.permute.xlu0 %745
        %v748 = vperm.slane %v746, 0
        %750 = vset.pattern.permute.xlu0 0
        %751 = vperm.xlu0 %750, %v378
        %v752 = vpop.permute.xlu0 %751
        %v754 = vperm.slane %v752, 0
        %756 = vset.pattern.permute.xlu0 0
        %757 = vperm.xlu0 %756, %v379
        %v758 = vpop.permute.xlu0 %757
        %v760 = vperm.slane %v758, 0
        %762 = vset.pattern.permute.xlu0 0
        %763 = vperm.xlu0 %762, %v380
        %v764 = vpop.permute.xlu0 %763
        %v766 = vperm.slane %v764, 0
        %768 = vset.pattern.permute.xlu0 0
        %769 = vperm.xlu0 %768, %v381
        %v770 = vpop.permute.xlu0 %769
        %v772 = vperm.slane %v770, 0
        %774 = vset.pattern.permute.xlu0 0
        %775 = vperm.xlu0 %774, %v382
        %v776 = vpop.permute.xlu0 %775
        %v778 = vperm.slane %v776, 0
        %780 = vset.pattern.permute.xlu0 0
        %781 = vperm.xlu0 %780, %v383
        %v782 = vpop.permute.xlu0 %781
        %v784 = vperm.slane %v782, 0
        %786 = vset.pattern.permute.xlu0 0
        %787 = vperm.xlu0 %786, %v384
        %v788 = vpop.permute.xlu0 %787
        %v790 = vperm.slane %v788, 0
        %792 = vset.pattern.permute.xlu0 0
        %793 = vperm.xlu0 %792, %v385
        %v794 = vpop.permute.xlu0 %793
        %v796 = vperm.slane %v794, 0
        %798 = vset.pattern.permute.xlu0 0
        %799 = vperm.xlu0 %798, %v386
        %v800 = vpop.permute.xlu0 %799
        %v802 = vperm.slane %v800, 0
        %804 = vset.pattern.permute.xlu0 0
        %805 = vperm.xlu0 %804, %v387
        %v806 = vpop.permute.xlu0 %805
        %v808 = vperm.slane %v806, 0
        %810 = vset.pattern.permute.xlu0 0
        %811 = vperm.xlu0 %810, %v388
        %v812 = vpop.permute.xlu0 %811
        %v814 = vperm.slane %v812, 0
        %816 = vset.pattern.permute.xlu0 0
        %817 = vperm.xlu0 %816, %v389
        %v818 = vpop.permute.xlu0 %817
        %v820 = vperm.slane %v818, 0
        %822 = vset.pattern.permute.xlu0 0
        %823 = vperm.xlu0 %822, %v390
        %v824 = vpop.permute.xlu0 %823
        %v826 = vperm.slane %v824, 0
        %828 = vset.pattern.permute.xlu0 0
        %829 = vperm.xlu0 %828, %v391
        %v830 = vpop.permute.xlu0 %829
        %v832 = vperm.slane %v830, 0
        %834 = vset.pattern.permute.xlu0 0
        %835 = vperm.xlu0 %834, %v392
        %v836 = vpop.permute.xlu0 %835
        %v838 = vperm.slane %v836, 0
        %840 = vset.pattern.permute.xlu0 0
        %841 = vperm.xlu0 %840, %v393
        %v842 = vpop.permute.xlu0 %841
        %v844 = vperm.slane %v842, 0
        %846 = vset.pattern.permute.xlu0 0
        %847 = vperm.xlu0 %846, %v394
        %v848 = vpop.permute.xlu0 %847
        %v850 = vperm.slane %v848, 0
        %852 = vset.pattern.permute.xlu0 0
        %853 = vperm.xlu0 %852, %v395
        %v854 = vpop.permute.xlu0 %853
        %v856 = vperm.slane %v854, 0
        %858 = vset.pattern.permute.xlu0 0
        %859 = vperm.xlu0 %858, %v396
        %v860 = vpop.permute.xlu0 %859
        %v862 = vperm.slane %v860, 0
        %864 = vset.pattern.permute.xlu0 0
        %865 = vperm.xlu0 %864, %v397
        %v866 = vpop.permute.xlu0 %865
        %v868 = vperm.slane %v866, 0
        %870 = vset.pattern.permute.xlu0 0
        %871 = vperm.xlu0 %870, %v398
        %v872 = vpop.permute.xlu0 %871
        %v874 = vperm.slane %v872, 0
        %876 = vset.pattern.permute.xlu0 0
        %877 = vperm.xlu0 %876, %v399
        %v878 = vpop.permute.xlu0 %877
        %v880 = vperm.slane %v878, 0
        %882 = vset.pattern.permute.xlu0 0
        %883 = vperm.xlu0 %882, %v400
        %v884 = vpop.permute.xlu0 %883
        %v886 = vperm.slane %v884, 0
        %888 = vset.pattern.permute.xlu0 0
        %889 = vperm.xlu0 %888, %v401
        %v890 = vpop.permute.xlu0 %889
        %v892 = vperm.slane %v890, 0
        %894 = vset.pattern.permute.xlu0 0
        %895 = vperm.xlu0 %894, %v402
        %v896 = vpop.permute.xlu0 %895
        %v898 = vperm.slane %v896, 0
        %900 = vset.pattern.permute.xlu0 0
        %901 = vperm.xlu0 %900, %v403
        %v902 = vpop.permute.xlu0 %901
        %v904 = vperm.slane %v902, 0
        %906 = vset.pattern.permute.xlu0 0
        %907 = vperm.xlu0 %906, %v404
        %v908 = vpop.permute.xlu0 %907
        %v910 = vperm.slane %v908, 0
        %912 = vset.pattern.permute.xlu0 0
        %913 = vperm.xlu0 %912, %v405
        %v914 = vpop.permute.xlu0 %913
        %v916 = vperm.slane %v914, 0
        %918 = vset.pattern.permute.xlu0 0
        %919 = vperm.xlu0 %918, %v406
        %v920 = vpop.permute.xlu0 %919
        %v922 = vperm.slane %v920, 0
        %924 = vset.pattern.permute.xlu0 0
        %925 = vperm.xlu0 %924, %v407
        %v926 = vpop.permute.xlu0 %925
        %v928 = vperm.slane %v926, 0
        %930 = vset.pattern.permute.xlu0 0
        %931 = vperm.xlu0 %930, %v408
        %v932 = vpop.permute.xlu0 %931
        %v934 = vperm.slane %v932, 0
        %936 = vset.pattern.permute.xlu0 0
        %937 = vperm.xlu0 %936, %v409
        %v938 = vpop.permute.xlu0 %937
        %v940 = vperm.slane %v938, 0
        %942 = vset.pattern.permute.xlu0 0
        %943 = vperm.xlu0 %942, %v410
        %v944 = vpop.permute.xlu0 %943
        %v946 = vperm.slane %v944, 0
        %948 = vset.pattern.permute.xlu0 0
        %949 = vperm.xlu0 %948, %v411
        %v950 = vpop.permute.xlu0 %949
        %v952 = vperm.slane %v950, 0
        %954 = vset.pattern.permute.xlu0 0
        %955 = vperm.xlu0 %954, %v412
        %v956 = vpop.permute.xlu0 %955
        %v958 = vperm.slane %v956, 0
        %960 = vset.pattern.permute.xlu0 0
        %961 = vperm.xlu0 %960, %v413
        %v962 = vpop.permute.xlu0 %961
        %v964 = vperm.slane %v962, 0
        %966 = vset.pattern.permute.xlu0 0
        %967 = vperm.xlu0 %966, %v414
        %v968 = vpop.permute.xlu0 %967
        %v970 = vperm.slane %v968, 0
        %972 = vset.pattern.permute.xlu0 0
        %973 = vperm.xlu0 %972, %v415
        %v974 = vpop.permute.xlu0 %973
        %v976 = vperm.slane %v974, 0
        %978 = vset.pattern.permute.xlu0 0
        %979 = vperm.xlu0 %978, %v416
        %v980 = vpop.permute.xlu0 %979
        %v982 = vperm.slane %v980, 0
        %984 = vset.pattern.permute.xlu0 0
        %985 = vperm.xlu0 %984, %v417
        %v986 = vpop.permute.xlu0 %985
        %v988 = vperm.slane %v986, 0
        %990 = vset.pattern.permute.xlu0 0
        %991 = vperm.xlu0 %990, %v418
        %v992 = vpop.permute.xlu0 %991
        %v994 = vperm.slane %v992, 0
        %996 = vset.pattern.permute.xlu0 0
        %997 = vperm.xlu0 %996, %v419
        %v998 = vpop.permute.xlu0 %997
        %v1000 = vperm.slane %v998, 0
        %1002 = vset.pattern.permute.xlu0 0
        %1003 = vperm.xlu0 %1002, %v420
        %v1004 = vpop.permute.xlu0 %1003
        %v1006 = vperm.slane %v1004, 0
        %1008 = vset.pattern.permute.xlu0 0
        %1009 = vperm.xlu0 %1008, %v421
        %v1010 = vpop.permute.xlu0 %1009
        %v1012 = vperm.slane %v1010, 0
        %1014 = vset.pattern.permute.xlu0 0
        %1015 = vperm.xlu0 %1014, %v422
        %v1016 = vpop.permute.xlu0 %1015
        %v1018 = vperm.slane %v1016, 0
        %1020 = vset.pattern.permute.xlu0 0
        %1021 = vperm.xlu0 %1020, %v423
        %v1022 = vpop.permute.xlu0 %1021
        %v1024 = vperm.slane %v1022, 0
        %1026 = vset.pattern.permute.xlu0 0
        %1027 = vperm.xlu0 %1026, %v424
        %v1028 = vpop.permute.xlu0 %1027
        %v1030 = vperm.slane %v1028, 0
        %1032 = vset.pattern.permute.xlu0 0
        %1033 = vperm.xlu0 %1032, %v425
        %v1034 = vpop.permute.xlu0 %1033
        %v1036 = vperm.slane %v1034, 0
        %1038 = vset.pattern.permute.xlu0 0
        %1039 = vperm.xlu0 %1038, %v426
        %v1040 = vpop.permute.xlu0 %1039
        %v1042 = vperm.slane %v1040, 0
        %1044 = vset.pattern.permute.xlu0 0
        %1045 = vperm.xlu0 %1044, %v427
        %v1046 = vpop.permute.xlu0 %1045
        %v1048 = vperm.slane %v1046, 0
        %1050 = vset.pattern.permute.xlu0 0
        %1051 = vperm.xlu0 %1050, %v428
        %v1052 = vpop.permute.xlu0 %1051
        %v1054 = vperm.slane %v1052, 0
        %1056 = vset.pattern.permute.xlu0 0
        %1057 = vperm.xlu0 %1056, %v429
        %v1058 = vpop.permute.xlu0 %1057
        %v1060 = vperm.slane %v1058, 0
        %1062 = vset.pattern.permute.xlu0 0
        %1063 = vperm.xlu0 %1062, %v430
        %v1064 = vpop.permute.xlu0 %1063
        %v1066 = vperm.slane %v1064, 0
        %1068 = vset.pattern.permute.xlu0 0
        %1069 = vperm.xlu0 %1068, %v431
        %v1070 = vpop.permute.xlu0 %1069
        %v1072 = vperm.slane %v1070, 0
        %1074 = vset.pattern.permute.xlu0 0
        %1075 = vperm.xlu0 %1074, %v432
        %v1076 = vpop.permute.xlu0 %1075
        %v1078 = vperm.slane %v1076, 0
        %v1079 = vmul.f32 %v700, %v689
        %v1080 = vmul.f32 %v706, %v689
        %v1081 = vmul.f32 %v712, %v689
        %v1082 = vmul.f32 %v718, %v689
        %v1083 = vmul.f32 %v724, %v689
        %v1084 = vmul.f32 %v730, %v689
        %v1085 = vmul.f32 %v736, %v689
        %v1086 = vmul.f32 %v742, %v689
        %v1087 = vmul.f32 %v748, %v689
        %v1088 = vmul.f32 %v754, %v689
        %v1089 = vmul.f32 %v760, %v689
        %v1090 = vmul.f32 %v766, %v689
        %v1091 = vmul.f32 %v772, %v689
        %v1092 = vmul.f32 %v778, %v689
        %v1093 = vmul.f32 %v784, %v689
        %v1094 = vmul.f32 %v790, %v689
        %v1095 = vmul.f32 %v796, %v689
        %v1096 = vmul.f32 %v802, %v689
        %v1097 = vmul.f32 %v808, %v689
        %v1098 = vmul.f32 %v814, %v689
        %v1099 = vmul.f32 %v820, %v689
        %v1100 = vmul.f32 %v826, %v689
        %v1101 = vmul.f32 %v832, %v689
        %v1102 = vmul.f32 %v838, %v689
        %v1103 = vmul.f32 %v844, %v689
        %v1104 = vmul.f32 %v850, %v689
        %v1105 = vmul.f32 %v856, %v689
        %v1106 = vmul.f32 %v862, %v689
        %v1107 = vmul.f32 %v868, %v689
        %v1108 = vmul.f32 %v874, %v689
        %v1109 = vmul.f32 %v880, %v689
        %v1110 = vmul.f32 %v886, %v689
        %v1111 = vmul.f32 %v892, %v689
        %v1112 = vmul.f32 %v898, %v689
        %v1113 = vmul.f32 %v904, %v689
        %v1114 = vmul.f32 %v910, %v689
        %v1115 = vmul.f32 %v916, %v689
        %v1116 = vmul.f32 %v922, %v689
        %v1117 = vmul.f32 %v928, %v689
        %v1118 = vmul.f32 %v934, %v689
        %v1119 = vmul.f32 %v940, %v689
        %v1120 = vmul.f32 %v946, %v689
        %v1121 = vmul.f32 %v952, %v689
        %v1122 = vmul.f32 %v958, %v689
        %v1123 = vmul.f32 %v964, %v689
        %v1124 = vmul.f32 %v970, %v689
        %v1125 = vmul.f32 %v976, %v689
        %v1126 = vmul.f32 %v982, %v689
        %v1127 = vmul.f32 %v988, %v689
        %v1128 = vmul.f32 %v994, %v689
        %v1129 = vmul.f32 %v1000, %v689
        %v1130 = vmul.f32 %v1006, %v689
        %v1131 = vmul.f32 %v1012, %v689
        %v1132 = vmul.f32 %v1018, %v689
        %v1133 = vmul.f32 %v1024, %v689
        %v1134 = vmul.f32 %v1030, %v689
        %v1135 = vmul.f32 %v1036, %v689
        %v1136 = vmul.f32 %v1042, %v689
        %v1137 = vmul.f32 %v1048, %v689
        %v1138 = vmul.f32 %v1054, %v689
        %v1139 = vmul.f32 %v1060, %v689
        %v1140 = vmul.f32 %v1066, %v689
        %v1141 = vmul.f32 %v1072, %v689
        %v1142 = vmul.f32 %v1078, %v689
        %1143 = vset.pattern.permute.xlu0 1
        %1144 = vperm.xlu0 %1143, %v369
        %v1145 = vpop.permute.xlu0 %1144
        %v1147 = vperm.slane %v1145, 0
        %1148 = vset.pattern.permute.xlu0 1
        %1149 = vperm.xlu0 %1148, %v370
        %v1150 = vpop.permute.xlu0 %1149
        %v1152 = vperm.slane %v1150, 0
        %1153 = vset.pattern.permute.xlu0 1
        %1154 = vperm.xlu0 %1153, %v371
        %v1155 = vpop.permute.xlu0 %1154
        %v1157 = vperm.slane %v1155, 0
        %1158 = vset.pattern.permute.xlu0 1
        %1159 = vperm.xlu0 %1158, %v372
        %v1160 = vpop.permute.xlu0 %1159
        %v1162 = vperm.slane %v1160, 0
        %1163 = vset.pattern.permute.xlu0 1
        %1164 = vperm.xlu0 %1163, %v373
        %v1165 = vpop.permute.xlu0 %1164
        %v1167 = vperm.slane %v1165, 0
        %1168 = vset.pattern.permute.xlu0 1
        %1169 = vperm.xlu0 %1168, %v374
        %v1170 = vpop.permute.xlu0 %1169
        %v1172 = vperm.slane %v1170, 0
        %1173 = vset.pattern.permute.xlu0 1
        %1174 = vperm.xlu0 %1173, %v375
        %v1175 = vpop.permute.xlu0 %1174
        %v1177 = vperm.slane %v1175, 0
        %1178 = vset.pattern.permute.xlu0 1
        %1179 = vperm.xlu0 %1178, %v376
        %v1180 = vpop.permute.xlu0 %1179
        %v1182 = vperm.slane %v1180, 0
        %1183 = vset.pattern.permute.xlu0 1
        %1184 = vperm.xlu0 %1183, %v377
        %v1185 = vpop.permute.xlu0 %1184
        %v1187 = vperm.slane %v1185, 0
        %1188 = vset.pattern.permute.xlu0 1
        %1189 = vperm.xlu0 %1188, %v378
        %v1190 = vpop.permute.xlu0 %1189
        %v1192 = vperm.slane %v1190, 0
        %1193 = vset.pattern.permute.xlu0 1
        %1194 = vperm.xlu0 %1193, %v379
        %v1195 = vpop.permute.xlu0 %1194
        %v1197 = vperm.slane %v1195, 0
        %1198 = vset.pattern.permute.xlu0 1
        %1199 = vperm.xlu0 %1198, %v380
        %v1200 = vpop.permute.xlu0 %1199
        %v1202 = vperm.slane %v1200, 0
        %1203 = vset.pattern.permute.xlu0 1
        %1204 = vperm.xlu0 %1203, %v381
        %v1205 = vpop.permute.xlu0 %1204
        %v1207 = vperm.slane %v1205, 0
        %1208 = vset.pattern.permute.xlu0 1
        %1209 = vperm.xlu0 %1208, %v382
        %v1210 = vpop.permute.xlu0 %1209
        %v1212 = vperm.slane %v1210, 0
        %1213 = vset.pattern.permute.xlu0 1
        %1214 = vperm.xlu0 %1213, %v383
        %v1215 = vpop.permute.xlu0 %1214
        %v1217 = vperm.slane %v1215, 0
        %1218 = vset.pattern.permute.xlu0 1
        %1219 = vperm.xlu0 %1218, %v384
        %v1220 = vpop.permute.xlu0 %1219
        %v1222 = vperm.slane %v1220, 0
        %1223 = vset.pattern.permute.xlu0 1
        %1224 = vperm.xlu0 %1223, %v385
        %v1225 = vpop.permute.xlu0 %1224
        %v1227 = vperm.slane %v1225, 0
        %1228 = vset.pattern.permute.xlu0 1
        %1229 = vperm.xlu0 %1228, %v386
        %v1230 = vpop.permute.xlu0 %1229
        %v1232 = vperm.slane %v1230, 0
        %1233 = vset.pattern.permute.xlu0 1
        %1234 = vperm.xlu0 %1233, %v387
        %v1235 = vpop.permute.xlu0 %1234
        %v1237 = vperm.slane %v1235, 0
        %1238 = vset.pattern.permute.xlu0 1
        %1239 = vperm.xlu0 %1238, %v388
        %v1240 = vpop.permute.xlu0 %1239
        %v1242 = vperm.slane %v1240, 0
        %1243 = vset.pattern.permute.xlu0 1
        %1244 = vperm.xlu0 %1243, %v389
        %v1245 = vpop.permute.xlu0 %1244
        %v1247 = vperm.slane %v1245, 0
        %1248 = vset.pattern.permute.xlu0 1
        %1249 = vperm.xlu0 %1248, %v390
        %v1250 = vpop.permute.xlu0 %1249
        %v1252 = vperm.slane %v1250, 0
        %1253 = vset.pattern.permute.xlu0 1
        %1254 = vperm.xlu0 %1253, %v391
        %v1255 = vpop.permute.xlu0 %1254
        %v1257 = vperm.slane %v1255, 0
        %1258 = vset.pattern.permute.xlu0 1
        %1259 = vperm.xlu0 %1258, %v392
        %v1260 = vpop.permute.xlu0 %1259
        %v1262 = vperm.slane %v1260, 0
        %1263 = vset.pattern.permute.xlu0 1
        %1264 = vperm.xlu0 %1263, %v393
        %v1265 = vpop.permute.xlu0 %1264
        %v1267 = vperm.slane %v1265, 0
        %1268 = vset.pattern.permute.xlu0 1
        %1269 = vperm.xlu0 %1268, %v394
        %v1270 = vpop.permute.xlu0 %1269
        %v1272 = vperm.slane %v1270, 0
        %1273 = vset.pattern.permute.xlu0 1
        %1274 = vperm.xlu0 %1273, %v395
        %v1275 = vpop.permute.xlu0 %1274
        %v1277 = vperm.slane %v1275, 0
        %1278 = vset.pattern.permute.xlu0 1
        %1279 = vperm.xlu0 %1278, %v396
        %v1280 = vpop.permute.xlu0 %1279
        %v1282 = vperm.slane %v1280, 0
        %1283 = vset.pattern.permute.xlu0 1
        %1284 = vperm.xlu0 %1283, %v397
        %v1285 = vpop.permute.xlu0 %1284
        %v1287 = vperm.slane %v1285, 0
        %1288 = vset.pattern.permute.xlu0 1
        %1289 = vperm.xlu0 %1288, %v398
        %v1290 = vpop.permute.xlu0 %1289
        %v1292 = vperm.slane %v1290, 0
        %1293 = vset.pattern.permute.xlu0 1
        %1294 = vperm.xlu0 %1293, %v399
        %v1295 = vpop.permute.xlu0 %1294
        %v1297 = vperm.slane %v1295, 0
        %1298 = vset.pattern.permute.xlu0 1
        %1299 = vperm.xlu0 %1298, %v400
        %v1300 = vpop.permute.xlu0 %1299
        %v1302 = vperm.slane %v1300, 0
        %1303 = vset.pattern.permute.xlu0 1
        %1304 = vperm.xlu0 %1303, %v401
        %v1305 = vpop.permute.xlu0 %1304
        %v1307 = vperm.slane %v1305, 0
        %1308 = vset.pattern.permute.xlu0 1
        %1309 = vperm.xlu0 %1308, %v402
        %v1310 = vpop.permute.xlu0 %1309
        %v1312 = vperm.slane %v1310, 0
        %1313 = vset.pattern.permute.xlu0 1
        %1314 = vperm.xlu0 %1313, %v403
        %v1315 = vpop.permute.xlu0 %1314
        %v1317 = vperm.slane %v1315, 0
        %1318 = vset.pattern.permute.xlu0 1
        %1319 = vperm.xlu0 %1318, %v404
        %v1320 = vpop.permute.xlu0 %1319
        %v1322 = vperm.slane %v1320, 0
        %1323 = vset.pattern.permute.xlu0 1
        %1324 = vperm.xlu0 %1323, %v405
        %v1325 = vpop.permute.xlu0 %1324
        %v1327 = vperm.slane %v1325, 0
        %1328 = vset.pattern.permute.xlu0 1
        %1329 = vperm.xlu0 %1328, %v406
        %v1330 = vpop.permute.xlu0 %1329
        %v1332 = vperm.slane %v1330, 0
        %1333 = vset.pattern.permute.xlu0 1
        %1334 = vperm.xlu0 %1333, %v407
        %v1335 = vpop.permute.xlu0 %1334
        %v1337 = vperm.slane %v1335, 0
        %1338 = vset.pattern.permute.xlu0 1
        %1339 = vperm.xlu0 %1338, %v408
        %v1340 = vpop.permute.xlu0 %1339
        %v1342 = vperm.slane %v1340, 0
        %1343 = vset.pattern.permute.xlu0 1
        %1344 = vperm.xlu0 %1343, %v409
        %v1345 = vpop.permute.xlu0 %1344
        %v1347 = vperm.slane %v1345, 0
        %1348 = vset.pattern.permute.xlu0 1
        %1349 = vperm.xlu0 %1348, %v410
        %v1350 = vpop.permute.xlu0 %1349
        %v1352 = vperm.slane %v1350, 0
        %1353 = vset.pattern.permute.xlu0 1
        %1354 = vperm.xlu0 %1353, %v411
        %v1355 = vpop.permute.xlu0 %1354
        %v1357 = vperm.slane %v1355, 0
        %1358 = vset.pattern.permute.xlu0 1
        %1359 = vperm.xlu0 %1358, %v412
        %v1360 = vpop.permute.xlu0 %1359
        %v1362 = vperm.slane %v1360, 0
        %1363 = vset.pattern.permute.xlu0 1
        %1364 = vperm.xlu0 %1363, %v413
        %v1365 = vpop.permute.xlu0 %1364
        %v1367 = vperm.slane %v1365, 0
        %1368 = vset.pattern.permute.xlu0 1
        %1369 = vperm.xlu0 %1368, %v414
        %v1370 = vpop.permute.xlu0 %1369
        %v1372 = vperm.slane %v1370, 0
        %1373 = vset.pattern.permute.xlu0 1
        %1374 = vperm.xlu0 %1373, %v415
        %v1375 = vpop.permute.xlu0 %1374
        %v1377 = vperm.slane %v1375, 0
        %1378 = vset.pattern.permute.xlu0 1
        %1379 = vperm.xlu0 %1378, %v416
        %v1380 = vpop.permute.xlu0 %1379
        %v1382 = vperm.slane %v1380, 0
        %1383 = vset.pattern.permute.xlu0 1
        %1384 = vperm.xlu0 %1383, %v417
        %v1385 = vpop.permute.xlu0 %1384
        %v1387 = vperm.slane %v1385, 0
        %1388 = vset.pattern.permute.xlu0 1
        %1389 = vperm.xlu0 %1388, %v418
        %v1390 = vpop.permute.xlu0 %1389
        %v1392 = vperm.slane %v1390, 0
        %1393 = vset.pattern.permute.xlu0 1
        %1394 = vperm.xlu0 %1393, %v419
        %v1395 = vpop.permute.xlu0 %1394
        %v1397 = vperm.slane %v1395, 0
        %1398 = vset.pattern.permute.xlu0 1
        %1399 = vperm.xlu0 %1398, %v420
        %v1400 = vpop.permute.xlu0 %1399
        %v1402 = vperm.slane %v1400, 0
        %1403 = vset.pattern.permute.xlu0 1
        %1404 = vperm.xlu0 %1403, %v421
        %v1405 = vpop.permute.xlu0 %1404
        %v1407 = vperm.slane %v1405, 0
        %1408 = vset.pattern.permute.xlu0 1
        %1409 = vperm.xlu0 %1408, %v422
        %v1410 = vpop.permute.xlu0 %1409
        %v1412 = vperm.slane %v1410, 0
        %1413 = vset.pattern.permute.xlu0 1
        %1414 = vperm.xlu0 %1413, %v423
        %v1415 = vpop.permute.xlu0 %1414
        %v1417 = vperm.slane %v1415, 0
        %1418 = vset.pattern.permute.xlu0 1
        %1419 = vperm.xlu0 %1418, %v424
        %v1420 = vpop.permute.xlu0 %1419
        %v1422 = vperm.slane %v1420, 0
        %1423 = vset.pattern.permute.xlu0 1
        %1424 = vperm.xlu0 %1423, %v425
        %v1425 = vpop.permute.xlu0 %1424
        %v1427 = vperm.slane %v1425, 0
        %1428 = vset.pattern.permute.xlu0 1
        %1429 = vperm.xlu0 %1428, %v426
        %v1430 = vpop.permute.xlu0 %1429
        %v1432 = vperm.slane %v1430, 0
        %1433 = vset.pattern.permute.xlu0 1
        %1434 = vperm.xlu0 %1433, %v427
        %v1435 = vpop.permute.xlu0 %1434
        %v1437 = vperm.slane %v1435, 0
        %1438 = vset.pattern.permute.xlu0 1
        %1439 = vperm.xlu0 %1438, %v428
        %v1440 = vpop.permute.xlu0 %1439
        %v1442 = vperm.slane %v1440, 0
        %1443 = vset.pattern.permute.xlu0 1
        %1444 = vperm.xlu0 %1443, %v429
        %v1445 = vpop.permute.xlu0 %1444
        %v1447 = vperm.slane %v1445, 0
        %1448 = vset.pattern.permute.xlu0 1
        %1449 = vperm.xlu0 %1448, %v430
        %v1450 = vpop.permute.xlu0 %1449
        %v1452 = vperm.slane %v1450, 0
        %1453 = vset.pattern.permute.xlu0 1
        %1454 = vperm.xlu0 %1453, %v431
        %v1455 = vpop.permute.xlu0 %1454
        %v1457 = vperm.slane %v1455, 0
        %1458 = vset.pattern.permute.xlu0 1
        %1459 = vperm.xlu0 %1458, %v432
        %v1460 = vpop.permute.xlu0 %1459
        %v1462 = vperm.slane %v1460, 0
        %v1463 = vmul.f32 %v1147, %v690
        %v1464 = vmul.f32 %v1152, %v690
        %v1465 = vmul.f32 %v1157, %v690
        %v1466 = vmul.f32 %v1162, %v690
        %v1467 = vmul.f32 %v1167, %v690
        %v1468 = vmul.f32 %v1172, %v690
        %v1469 = vmul.f32 %v1177, %v690
        %v1470 = vmul.f32 %v1182, %v690
        %v1471 = vmul.f32 %v1187, %v690
        %v1472 = vmul.f32 %v1192, %v690
        %v1473 = vmul.f32 %v1197, %v690
        %v1474 = vmul.f32 %v1202, %v690
        %v1475 = vmul.f32 %v1207, %v690
        %v1476 = vmul.f32 %v1212, %v690
        %v1477 = vmul.f32 %v1217, %v690
        %v1478 = vmul.f32 %v1222, %v690
        %v1479 = vmul.f32 %v1227, %v690
        %v1480 = vmul.f32 %v1232, %v690
        %v1481 = vmul.f32 %v1237, %v690
        %v1482 = vmul.f32 %v1242, %v690
        %v1483 = vmul.f32 %v1247, %v690
        %v1484 = vmul.f32 %v1252, %v690
        %v1485 = vmul.f32 %v1257, %v690
        %v1486 = vmul.f32 %v1262, %v690
        %v1487 = vmul.f32 %v1267, %v690
        %v1488 = vmul.f32 %v1272, %v690
        %v1489 = vmul.f32 %v1277, %v690
        %v1490 = vmul.f32 %v1282, %v690
        %v1491 = vmul.f32 %v1287, %v690
        %v1492 = vmul.f32 %v1292, %v690
        %v1493 = vmul.f32 %v1297, %v690
        %v1494 = vmul.f32 %v1302, %v690
        %v1495 = vmul.f32 %v1307, %v690
        %v1496 = vmul.f32 %v1312, %v690
        %v1497 = vmul.f32 %v1317, %v690
        %v1498 = vmul.f32 %v1322, %v690
        %v1499 = vmul.f32 %v1327, %v690
        %v1500 = vmul.f32 %v1332, %v690
        %v1501 = vmul.f32 %v1337, %v690
        %v1502 = vmul.f32 %v1342, %v690
        %v1503 = vmul.f32 %v1347, %v690
        %v1504 = vmul.f32 %v1352, %v690
        %v1505 = vmul.f32 %v1357, %v690
        %v1506 = vmul.f32 %v1362, %v690
        %v1507 = vmul.f32 %v1367, %v690
        %v1508 = vmul.f32 %v1372, %v690
        %v1509 = vmul.f32 %v1377, %v690
        %v1510 = vmul.f32 %v1382, %v690
        %v1511 = vmul.f32 %v1387, %v690
        %v1512 = vmul.f32 %v1392, %v690
        %v1513 = vmul.f32 %v1397, %v690
        %v1514 = vmul.f32 %v1402, %v690
        %v1515 = vmul.f32 %v1407, %v690
        %v1516 = vmul.f32 %v1412, %v690
        %v1517 = vmul.f32 %v1417, %v690
        %v1518 = vmul.f32 %v1422, %v690
        %v1519 = vmul.f32 %v1427, %v690
        %v1520 = vmul.f32 %v1432, %v690
        %v1521 = vmul.f32 %v1437, %v690
        %v1522 = vmul.f32 %v1442, %v690
        %v1523 = vmul.f32 %v1447, %v690
        %v1524 = vmul.f32 %v1452, %v690
        %v1525 = vmul.f32 %v1457, %v690
        %v1526 = vmul.f32 %v1462, %v690
        %v1527 = vadd.f32 %v1079, %v1463
        %v1528 = vadd.f32 %v1080, %v1464
        %v1529 = vadd.f32 %v1081, %v1465
        %v1530 = vadd.f32 %v1082, %v1466
        %v1531 = vadd.f32 %v1083, %v1467
        %v1532 = vadd.f32 %v1084, %v1468
        %v1533 = vadd.f32 %v1085, %v1469
        %v1534 = vadd.f32 %v1086, %v1470
        %v1535 = vadd.f32 %v1087, %v1471
        %v1536 = vadd.f32 %v1088, %v1472
        %v1537 = vadd.f32 %v1089, %v1473
        %v1538 = vadd.f32 %v1090, %v1474
        %v1539 = vadd.f32 %v1091, %v1475
        %v1540 = vadd.f32 %v1092, %v1476
        %v1541 = vadd.f32 %v1093, %v1477
        %v1542 = vadd.f32 %v1094, %v1478
        %v1543 = vadd.f32 %v1095, %v1479
        %v1544 = vadd.f32 %v1096, %v1480
        %v1545 = vadd.f32 %v1097, %v1481
        %v1546 = vadd.f32 %v1098, %v1482
        %v1547 = vadd.f32 %v1099, %v1483
        %v1548 = vadd.f32 %v1100, %v1484
        %v1549 = vadd.f32 %v1101, %v1485
        %v1550 = vadd.f32 %v1102, %v1486
        %v1551 = vadd.f32 %v1103, %v1487
        %v1552 = vadd.f32 %v1104, %v1488
        %v1553 = vadd.f32 %v1105, %v1489
        %v1554 = vadd.f32 %v1106, %v1490
        %v1555 = vadd.f32 %v1107, %v1491
        %v1556 = vadd.f32 %v1108, %v1492
        %v1557 = vadd.f32 %v1109, %v1493
        %v1558 = vadd.f32 %v1110, %v1494
        %v1559 = vadd.f32 %v1111, %v1495
        %v1560 = vadd.f32 %v1112, %v1496
        %v1561 = vadd.f32 %v1113, %v1497
        %v1562 = vadd.f32 %v1114, %v1498
        %v1563 = vadd.f32 %v1115, %v1499
        %v1564 = vadd.f32 %v1116, %v1500
        %v1565 = vadd.f32 %v1117, %v1501
        %v1566 = vadd.f32 %v1118, %v1502
        %v1567 = vadd.f32 %v1119, %v1503
        %v1568 = vadd.f32 %v1120, %v1504
        %v1569 = vadd.f32 %v1121, %v1505
        %v1570 = vadd.f32 %v1122, %v1506
        %v1571 = vadd.f32 %v1123, %v1507
        %v1572 = vadd.f32 %v1124, %v1508
        %v1573 = vadd.f32 %v1125, %v1509
        %v1574 = vadd.f32 %v1126, %v1510
        %v1575 = vadd.f32 %v1127, %v1511
        %v1576 = vadd.f32 %v1128, %v1512
        %v1577 = vadd.f32 %v1129, %v1513
        %v1578 = vadd.f32 %v1130, %v1514
        %v1579 = vadd.f32 %v1131, %v1515
        %v1580 = vadd.f32 %v1132, %v1516
        %v1581 = vadd.f32 %v1133, %v1517
        %v1582 = vadd.f32 %v1134, %v1518
        %v1583 = vadd.f32 %v1135, %v1519
        %v1584 = vadd.f32 %v1136, %v1520
        %v1585 = vadd.f32 %v1137, %v1521
        %v1586 = vadd.f32 %v1138, %v1522
        %v1587 = vadd.f32 %v1139, %v1523
        %v1588 = vadd.f32 %v1140, %v1524
        %v1589 = vadd.f32 %v1141, %v1525
        %v1590 = vadd.f32 %v1142, %v1526
        %1591 = vset.pattern.permute.xlu0 2
        %1592 = vperm.xlu0 %1591, %v369
        %v1593 = vpop.permute.xlu0 %1592
        %v1595 = vperm.slane %v1593, 0
        %1596 = vset.pattern.permute.xlu0 2
        %1597 = vperm.xlu0 %1596, %v370
        %v1598 = vpop.permute.xlu0 %1597
        %v1600 = vperm.slane %v1598, 0
        %1601 = vset.pattern.permute.xlu0 2
        %1602 = vperm.xlu0 %1601, %v371
        %v1603 = vpop.permute.xlu0 %1602
        %v1605 = vperm.slane %v1603, 0
        %1606 = vset.pattern.permute.xlu0 2
        %1607 = vperm.xlu0 %1606, %v372
        %v1608 = vpop.permute.xlu0 %1607
        %v1610 = vperm.slane %v1608, 0
        %1611 = vset.pattern.permute.xlu0 2
        %1612 = vperm.xlu0 %1611, %v373
        %v1613 = vpop.permute.xlu0 %1612
        %v1615 = vperm.slane %v1613, 0
        %1616 = vset.pattern.permute.xlu0 2
        %1617 = vperm.xlu0 %1616, %v374
        %v1618 = vpop.permute.xlu0 %1617
        %v1620 = vperm.slane %v1618, 0
        %1621 = vset.pattern.permute.xlu0 2
        %1622 = vperm.xlu0 %1621, %v375
        %v1623 = vpop.permute.xlu0 %1622
        %v1625 = vperm.slane %v1623, 0
        %1626 = vset.pattern.permute.xlu0 2
        %1627 = vperm.xlu0 %1626, %v376
        %v1628 = vpop.permute.xlu0 %1627
        %v1630 = vperm.slane %v1628, 0
        %1631 = vset.pattern.permute.xlu0 2
        %1632 = vperm.xlu0 %1631, %v377
        %v1633 = vpop.permute.xlu0 %1632
        %v1635 = vperm.slane %v1633, 0
        %1636 = vset.pattern.permute.xlu0 2
        %1637 = vperm.xlu0 %1636, %v378
        %v1638 = vpop.permute.xlu0 %1637
        %v1640 = vperm.slane %v1638, 0
        %1641 = vset.pattern.permute.xlu0 2
        %1642 = vperm.xlu0 %1641, %v379
        %v1643 = vpop.permute.xlu0 %1642
        %v1645 = vperm.slane %v1643, 0
        %1646 = vset.pattern.permute.xlu0 2
        %1647 = vperm.xlu0 %1646, %v380
        %v1648 = vpop.permute.xlu0 %1647
        %v1650 = vperm.slane %v1648, 0
        %1651 = vset.pattern.permute.xlu0 2
        %1652 = vperm.xlu0 %1651, %v381
        %v1653 = vpop.permute.xlu0 %1652
        %v1655 = vperm.slane %v1653, 0
        %1656 = vset.pattern.permute.xlu0 2
        %1657 = vperm.xlu0 %1656, %v382
        %v1658 = vpop.permute.xlu0 %1657
        %v1660 = vperm.slane %v1658, 0
        %1661 = vset.pattern.permute.xlu0 2
        %1662 = vperm.xlu0 %1661, %v383
        %v1663 = vpop.permute.xlu0 %1662
        %v1665 = vperm.slane %v1663, 0
        %1666 = vset.pattern.permute.xlu0 2
        %1667 = vperm.xlu0 %1666, %v384
        %v1668 = vpop.permute.xlu0 %1667
        %v1670 = vperm.slane %v1668, 0
        %1671 = vset.pattern.permute.xlu0 2
        %1672 = vperm.xlu0 %1671, %v385
        %v1673 = vpop.permute.xlu0 %1672
        %v1675 = vperm.slane %v1673, 0
        %1676 = vset.pattern.permute.xlu0 2
        %1677 = vperm.xlu0 %1676, %v386
        %v1678 = vpop.permute.xlu0 %1677
        %v1680 = vperm.slane %v1678, 0
        %1681 = vset.pattern.permute.xlu0 2
        %1682 = vperm.xlu0 %1681, %v387
        %v1683 = vpop.permute.xlu0 %1682
        %v1685 = vperm.slane %v1683, 0
        %1686 = vset.pattern.permute.xlu0 2
        %1687 = vperm.xlu0 %1686, %v388
        %v1688 = vpop.permute.xlu0 %1687
        %v1690 = vperm.slane %v1688, 0
        %1691 = vset.pattern.permute.xlu0 2
        %1692 = vperm.xlu0 %1691, %v389
        %v1693 = vpop.permute.xlu0 %1692
        %v1695 = vperm.slane %v1693, 0
        %1696 = vset.pattern.permute.xlu0 2
        %1697 = vperm.xlu0 %1696, %v390
        %v1698 = vpop.permute.xlu0 %1697
        %v1700 = vperm.slane %v1698, 0
        %1701 = vset.pattern.permute.xlu0 2
        %1702 = vperm.xlu0 %1701, %v391
        %v1703 = vpop.permute.xlu0 %1702
        %v1705 = vperm.slane %v1703, 0
        %1706 = vset.pattern.permute.xlu0 2
        %1707 = vperm.xlu0 %1706, %v392
        %v1708 = vpop.permute.xlu0 %1707
        %v1710 = vperm.slane %v1708, 0
        %1711 = vset.pattern.permute.xlu0 2
        %1712 = vperm.xlu0 %1711, %v393
        %v1713 = vpop.permute.xlu0 %1712
        %v1715 = vperm.slane %v1713, 0
        %1716 = vset.pattern.permute.xlu0 2
        %1717 = vperm.xlu0 %1716, %v394
        %v1718 = vpop.permute.xlu0 %1717
        %v1720 = vperm.slane %v1718, 0
        %1721 = vset.pattern.permute.xlu0 2
        %1722 = vperm.xlu0 %1721, %v395
        %v1723 = vpop.permute.xlu0 %1722
        %v1725 = vperm.slane %v1723, 0
        %1726 = vset.pattern.permute.xlu0 2
        %1727 = vperm.xlu0 %1726, %v396
        %v1728 = vpop.permute.xlu0 %1727
        %v1730 = vperm.slane %v1728, 0
        %1731 = vset.pattern.permute.xlu0 2
        %1732 = vperm.xlu0 %1731, %v397
        %v1733 = vpop.permute.xlu0 %1732
        %v1735 = vperm.slane %v1733, 0
        %1736 = vset.pattern.permute.xlu0 2
        %1737 = vperm.xlu0 %1736, %v398
        %v1738 = vpop.permute.xlu0 %1737
        %v1740 = vperm.slane %v1738, 0
        %1741 = vset.pattern.permute.xlu0 2
        %1742 = vperm.xlu0 %1741, %v399
        %v1743 = vpop.permute.xlu0 %1742
        %v1745 = vperm.slane %v1743, 0
        %1746 = vset.pattern.permute.xlu0 2
        %1747 = vperm.xlu0 %1746, %v400
        %v1748 = vpop.permute.xlu0 %1747
        %v1750 = vperm.slane %v1748, 0
        %1751 = vset.pattern.permute.xlu0 2
        %1752 = vperm.xlu0 %1751, %v401
        %v1753 = vpop.permute.xlu0 %1752
        %v1755 = vperm.slane %v1753, 0
        %1756 = vset.pattern.permute.xlu0 2
        %1757 = vperm.xlu0 %1756, %v402
        %v1758 = vpop.permute.xlu0 %1757
        %v1760 = vperm.slane %v1758, 0
        %1761 = vset.pattern.permute.xlu0 2
        %1762 = vperm.xlu0 %1761, %v403
        %v1763 = vpop.permute.xlu0 %1762
        %v1765 = vperm.slane %v1763, 0
        %1766 = vset.pattern.permute.xlu0 2
        %1767 = vperm.xlu0 %1766, %v404
        %v1768 = vpop.permute.xlu0 %1767
        %v1770 = vperm.slane %v1768, 0
        %1771 = vset.pattern.permute.xlu0 2
        %1772 = vperm.xlu0 %1771, %v405
        %v1773 = vpop.permute.xlu0 %1772
        %v1775 = vperm.slane %v1773, 0
        %1776 = vset.pattern.permute.xlu0 2
        %1777 = vperm.xlu0 %1776, %v406
        %v1778 = vpop.permute.xlu0 %1777
        %v1780 = vperm.slane %v1778, 0
        %1781 = vset.pattern.permute.xlu0 2
        %1782 = vperm.xlu0 %1781, %v407
        %v1783 = vpop.permute.xlu0 %1782
        %v1785 = vperm.slane %v1783, 0
        %1786 = vset.pattern.permute.xlu0 2
        %1787 = vperm.xlu0 %1786, %v408
        %v1788 = vpop.permute.xlu0 %1787
        %v1790 = vperm.slane %v1788, 0
        %1791 = vset.pattern.permute.xlu0 2
        %1792 = vperm.xlu0 %1791, %v409
        %v1793 = vpop.permute.xlu0 %1792
        %v1795 = vperm.slane %v1793, 0
        %1796 = vset.pattern.permute.xlu0 2
        %1797 = vperm.xlu0 %1796, %v410
        %v1798 = vpop.permute.xlu0 %1797
        %v1800 = vperm.slane %v1798, 0
        %1801 = vset.pattern.permute.xlu0 2
        %1802 = vperm.xlu0 %1801, %v411
        %v1803 = vpop.permute.xlu0 %1802
        %v1805 = vperm.slane %v1803, 0
        %1806 = vset.pattern.permute.xlu0 2
        %1807 = vperm.xlu0 %1806, %v412
        %v1808 = vpop.permute.xlu0 %1807
        %v1810 = vperm.slane %v1808, 0
        %1811 = vset.pattern.permute.xlu0 2
        %1812 = vperm.xlu0 %1811, %v413
        %v1813 = vpop.permute.xlu0 %1812
        %v1815 = vperm.slane %v1813, 0
        %1816 = vset.pattern.permute.xlu0 2
        %1817 = vperm.xlu0 %1816, %v414
        %v1818 = vpop.permute.xlu0 %1817
        %v1820 = vperm.slane %v1818, 0
        %1821 = vset.pattern.permute.xlu0 2
        %1822 = vperm.xlu0 %1821, %v415
        %v1823 = vpop.permute.xlu0 %1822
        %v1825 = vperm.slane %v1823, 0
        %1826 = vset.pattern.permute.xlu0 2
        %1827 = vperm.xlu0 %1826, %v416
        %v1828 = vpop.permute.xlu0 %1827
        %v1830 = vperm.slane %v1828, 0
        %1831 = vset.pattern.permute.xlu0 2
        %1832 = vperm.xlu0 %1831, %v417
        %v1833 = vpop.permute.xlu0 %1832
        %v1835 = vperm.slane %v1833, 0
        %1836 = vset.pattern.permute.xlu0 2
        %1837 = vperm.xlu0 %1836, %v418
        %v1838 = vpop.permute.xlu0 %1837
        %v1840 = vperm.slane %v1838, 0
        %1841 = vset.pattern.permute.xlu0 2
        %1842 = vperm.xlu0 %1841, %v419
        %v1843 = vpop.permute.xlu0 %1842
        %v1845 = vperm.slane %v1843, 0
        %1846 = vset.pattern.permute.xlu0 2
        %1847 = vperm.xlu0 %1846, %v420
        %v1848 = vpop.permute.xlu0 %1847
        %v1850 = vperm.slane %v1848, 0
        %1851 = vset.pattern.permute.xlu0 2
        %1852 = vperm.xlu0 %1851, %v421
        %v1853 = vpop.permute.xlu0 %1852
        %v1855 = vperm.slane %v1853, 0
        %1856 = vset.pattern.permute.xlu0 2
        %1857 = vperm.xlu0 %1856, %v422
        %v1858 = vpop.permute.xlu0 %1857
        %v1860 = vperm.slane %v1858, 0
        %1861 = vset.pattern.permute.xlu0 2
        %1862 = vperm.xlu0 %1861, %v423
        %v1863 = vpop.permute.xlu0 %1862
        %v1865 = vperm.slane %v1863, 0
        %1866 = vset.pattern.permute.xlu0 2
        %1867 = vperm.xlu0 %1866, %v424
        %v1868 = vpop.permute.xlu0 %1867
        %v1870 = vperm.slane %v1868, 0
        %1871 = vset.pattern.permute.xlu0 2
        %1872 = vperm.xlu0 %1871, %v425
        %v1873 = vpop.permute.xlu0 %1872
        %v1875 = vperm.slane %v1873, 0
        %1876 = vset.pattern.permute.xlu0 2
        %1877 = vperm.xlu0 %1876, %v426
        %v1878 = vpop.permute.xlu0 %1877
        %v1880 = vperm.slane %v1878, 0
        %1881 = vset.pattern.permute.xlu0 2
        %1882 = vperm.xlu0 %1881, %v427
        %v1883 = vpop.permute.xlu0 %1882
        %v1885 = vperm.slane %v1883, 0
        %1886 = vset.pattern.permute.xlu0 2
        %1887 = vperm.xlu0 %1886, %v428
        %v1888 = vpop.permute.xlu0 %1887
        %v1890 = vperm.slane %v1888, 0
        %1891 = vset.pattern.permute.xlu0 2
        %1892 = vperm.xlu0 %1891, %v429
        %v1893 = vpop.permute.xlu0 %1892
        %v1895 = vperm.slane %v1893, 0
        %1896 = vset.pattern.permute.xlu0 2
        %1897 = vperm.xlu0 %1896, %v430
        %v1898 = vpop.permute.xlu0 %1897
        %v1900 = vperm.slane %v1898, 0
        %1901 = vset.pattern.permute.xlu0 2
        %1902 = vperm.xlu0 %1901, %v431
        %v1903 = vpop.permute.xlu0 %1902
        %v1905 = vperm.slane %v1903, 0
        %1906 = vset.pattern.permute.xlu0 2
        %1907 = vperm.xlu0 %1906, %v432
        %v1908 = vpop.permute.xlu0 %1907
        %v1910 = vperm.slane %v1908, 0
        %v1911 = vmul.f32 %v1595, %v691
        %v1912 = vmul.f32 %v1600, %v691
        %v1913 = vmul.f32 %v1605, %v691
        %v1914 = vmul.f32 %v1610, %v691
        %v1915 = vmul.f32 %v1615, %v691
        %v1916 = vmul.f32 %v1620, %v691
        %v1917 = vmul.f32 %v1625, %v691
        %v1918 = vmul.f32 %v1630, %v691
        %v1919 = vmul.f32 %v1635, %v691
        %v1920 = vmul.f32 %v1640, %v691
        %v1921 = vmul.f32 %v1645, %v691
        %v1922 = vmul.f32 %v1650, %v691
        %v1923 = vmul.f32 %v1655, %v691
        %v1924 = vmul.f32 %v1660, %v691
        %v1925 = vmul.f32 %v1665, %v691
        %v1926 = vmul.f32 %v1670, %v691
        %v1927 = vmul.f32 %v1675, %v691
        %v1928 = vmul.f32 %v1680, %v691
        %v1929 = vmul.f32 %v1685, %v691
        %v1930 = vmul.f32 %v1690, %v691
        %v1931 = vmul.f32 %v1695, %v691
        %v1932 = vmul.f32 %v1700, %v691
        %v1933 = vmul.f32 %v1705, %v691
        %v1934 = vmul.f32 %v1710, %v691
        %v1935 = vmul.f32 %v1715, %v691
        %v1936 = vmul.f32 %v1720, %v691
        %v1937 = vmul.f32 %v1725, %v691
        %v1938 = vmul.f32 %v1730, %v691
        %v1939 = vmul.f32 %v1735, %v691
        %v1940 = vmul.f32 %v1740, %v691
        %v1941 = vmul.f32 %v1745, %v691
        %v1942 = vmul.f32 %v1750, %v691
        %v1943 = vmul.f32 %v1755, %v691
        %v1944 = vmul.f32 %v1760, %v691
        %v1945 = vmul.f32 %v1765, %v691
        %v1946 = vmul.f32 %v1770, %v691
        %v1947 = vmul.f32 %v1775, %v691
        %v1948 = vmul.f32 %v1780, %v691
        %v1949 = vmul.f32 %v1785, %v691
        %v1950 = vmul.f32 %v1790, %v691
        %v1951 = vmul.f32 %v1795, %v691
        %v1952 = vmul.f32 %v1800, %v691
        %v1953 = vmul.f32 %v1805, %v691
        %v1954 = vmul.f32 %v1810, %v691
        %v1955 = vmul.f32 %v1815, %v691
        %v1956 = vmul.f32 %v1820, %v691
        %v1957 = vmul.f32 %v1825, %v691
        %v1958 = vmul.f32 %v1830, %v691
        %v1959 = vmul.f32 %v1835, %v691
        %v1960 = vmul.f32 %v1840, %v691
        %v1961 = vmul.f32 %v1845, %v691
        %v1962 = vmul.f32 %v1850, %v691
        %v1963 = vmul.f32 %v1855, %v691
        %v1964 = vmul.f32 %v1860, %v691
        %v1965 = vmul.f32 %v1865, %v691
        %v1966 = vmul.f32 %v1870, %v691
        %v1967 = vmul.f32 %v1875, %v691
        %v1968 = vmul.f32 %v1880, %v691
        %v1969 = vmul.f32 %v1885, %v691
        %v1970 = vmul.f32 %v1890, %v691
        %v1971 = vmul.f32 %v1895, %v691
        %v1972 = vmul.f32 %v1900, %v691
        %v1973 = vmul.f32 %v1905, %v691
        %v1974 = vmul.f32 %v1910, %v691
        %v1975 = vadd.f32 %v1527, %v1911
        %v1976 = vadd.f32 %v1528, %v1912
        %v1977 = vadd.f32 %v1529, %v1913
        %v1978 = vadd.f32 %v1530, %v1914
        %v1979 = vadd.f32 %v1531, %v1915
        %v1980 = vadd.f32 %v1532, %v1916
        %v1981 = vadd.f32 %v1533, %v1917
        %v1982 = vadd.f32 %v1534, %v1918
        %v1983 = vadd.f32 %v1535, %v1919
        %v1984 = vadd.f32 %v1536, %v1920
        %v1985 = vadd.f32 %v1537, %v1921
        %v1986 = vadd.f32 %v1538, %v1922
        %v1987 = vadd.f32 %v1539, %v1923
        %v1988 = vadd.f32 %v1540, %v1924
        %v1989 = vadd.f32 %v1541, %v1925
        %v1990 = vadd.f32 %v1542, %v1926
        %v1991 = vadd.f32 %v1543, %v1927
        %v1992 = vadd.f32 %v1544, %v1928
        %v1993 = vadd.f32 %v1545, %v1929
        %v1994 = vadd.f32 %v1546, %v1930
        %v1995 = vadd.f32 %v1547, %v1931
        %v1996 = vadd.f32 %v1548, %v1932
        %v1997 = vadd.f32 %v1549, %v1933
        %v1998 = vadd.f32 %v1550, %v1934
        %v1999 = vadd.f32 %v1551, %v1935
        %v2000 = vadd.f32 %v1552, %v1936
        %v2001 = vadd.f32 %v1553, %v1937
        %v2002 = vadd.f32 %v1554, %v1938
        %v2003 = vadd.f32 %v1555, %v1939
        %v2004 = vadd.f32 %v1556, %v1940
        %v2005 = vadd.f32 %v1557, %v1941
        %v2006 = vadd.f32 %v1558, %v1942
        %v2007 = vadd.f32 %v1559, %v1943
        %v2008 = vadd.f32 %v1560, %v1944
        %v2009 = vadd.f32 %v1561, %v1945
        %v2010 = vadd.f32 %v1562, %v1946
        %v2011 = vadd.f32 %v1563, %v1947
        %v2012 = vadd.f32 %v1564, %v1948
        %v2013 = vadd.f32 %v1565, %v1949
        %v2014 = vadd.f32 %v1566, %v1950
        %v2015 = vadd.f32 %v1567, %v1951
        %v2016 = vadd.f32 %v1568, %v1952
        %v2017 = vadd.f32 %v1569, %v1953
        %v2018 = vadd.f32 %v1570, %v1954
        %v2019 = vadd.f32 %v1571, %v1955
        %v2020 = vadd.f32 %v1572, %v1956
        %v2021 = vadd.f32 %v1573, %v1957
        %v2022 = vadd.f32 %v1574, %v1958
        %v2023 = vadd.f32 %v1575, %v1959
        %v2024 = vadd.f32 %v1576, %v1960
        %v2025 = vadd.f32 %v1577, %v1961
        %v2026 = vadd.f32 %v1578, %v1962
        %v2027 = vadd.f32 %v1579, %v1963
        %v2028 = vadd.f32 %v1580, %v1964
        %v2029 = vadd.f32 %v1581, %v1965
        %v2030 = vadd.f32 %v1582, %v1966
        %v2031 = vadd.f32 %v1583, %v1967
        %v2032 = vadd.f32 %v1584, %v1968
        %v2033 = vadd.f32 %v1585, %v1969
        %v2034 = vadd.f32 %v1586, %v1970
        %v2035 = vadd.f32 %v1587, %v1971
        %v2036 = vadd.f32 %v1588, %v1972
        %v2037 = vadd.f32 %v1589, %v1973
        %v2038 = vadd.f32 %v1590, %v1974
        %2040 = vset.pattern.permute.xlu0 0
        %2041 = vperm.xlu0 %2040, %v433
        %v2042 = vpop.permute.xlu0 %2041
        %2045 = vset.pattern.permute.xlu0 0
        %2046 = vperm.xlu0 %2045, %v434
        %v2047 = vpop.permute.xlu0 %2046
        %2050 = vset.pattern.permute.xlu0 0
        %2051 = vperm.xlu0 %2050, %v435
        %v2052 = vpop.permute.xlu0 %2051
        %2055 = vset.pattern.permute.xlu0 0
        %2056 = vperm.xlu0 %2055, %v436
        %v2057 = vpop.permute.xlu0 %2056
        %2060 = vset.pattern.permute.xlu0 0
        %2061 = vperm.xlu0 %2060, %v437
        %v2062 = vpop.permute.xlu0 %2061
        %2065 = vset.pattern.permute.xlu0 0
        %2066 = vperm.xlu0 %2065, %v438
        %v2067 = vpop.permute.xlu0 %2066
        %2070 = vset.pattern.permute.xlu0 0
        %2071 = vperm.xlu0 %2070, %v439
        %v2072 = vpop.permute.xlu0 %2071
        %2075 = vset.pattern.permute.xlu0 0
        %2076 = vperm.xlu0 %2075, %v440
        %v2077 = vpop.permute.xlu0 %2076
        %2080 = vset.pattern.permute.xlu0 0
        %2081 = vperm.xlu0 %2080, %v441
        %v2082 = vpop.permute.xlu0 %2081
        %2085 = vset.pattern.permute.xlu0 0
        %2086 = vperm.xlu0 %2085, %v442
        %v2087 = vpop.permute.xlu0 %2086
        %2090 = vset.pattern.permute.xlu0 0
        %2091 = vperm.xlu0 %2090, %v443
        %v2092 = vpop.permute.xlu0 %2091
        %2095 = vset.pattern.permute.xlu0 0
        %2096 = vperm.xlu0 %2095, %v444
        %v2097 = vpop.permute.xlu0 %2096
        %2100 = vset.pattern.permute.xlu0 0
        %2101 = vperm.xlu0 %2100, %v445
        %v2102 = vpop.permute.xlu0 %2101
        %2105 = vset.pattern.permute.xlu0 0
        %2106 = vperm.xlu0 %2105, %v446
        %v2107 = vpop.permute.xlu0 %2106
        %2110 = vset.pattern.permute.xlu0 0
        %2111 = vperm.xlu0 %2110, %v447
        %v2112 = vpop.permute.xlu0 %2111
        %2115 = vset.pattern.permute.xlu0 0
        %2116 = vperm.xlu0 %2115, %v448
        %v2117 = vpop.permute.xlu0 %2116
        %2120 = vset.pattern.permute.xlu0 0
        %2121 = vperm.xlu0 %2120, %v449
        %v2122 = vpop.permute.xlu0 %2121
        %2125 = vset.pattern.permute.xlu0 0
        %2126 = vperm.xlu0 %2125, %v450
        %v2127 = vpop.permute.xlu0 %2126
        %2130 = vset.pattern.permute.xlu0 0
        %2131 = vperm.xlu0 %2130, %v451
        %v2132 = vpop.permute.xlu0 %2131
        %2135 = vset.pattern.permute.xlu0 0
        %2136 = vperm.xlu0 %2135, %v452
        %v2137 = vpop.permute.xlu0 %2136
        %2140 = vset.pattern.permute.xlu0 0
        %2141 = vperm.xlu0 %2140, %v453
        %v2142 = vpop.permute.xlu0 %2141
        %2145 = vset.pattern.permute.xlu0 0
        %2146 = vperm.xlu0 %2145, %v454
        %v2147 = vpop.permute.xlu0 %2146
        %2150 = vset.pattern.permute.xlu0 0
        %2151 = vperm.xlu0 %2150, %v455
        %v2152 = vpop.permute.xlu0 %2151
        %2155 = vset.pattern.permute.xlu0 0
        %2156 = vperm.xlu0 %2155, %v456
        %v2157 = vpop.permute.xlu0 %2156
        %2160 = vset.pattern.permute.xlu0 0
        %2161 = vperm.xlu0 %2160, %v457
        %v2162 = vpop.permute.xlu0 %2161
        %2165 = vset.pattern.permute.xlu0 0
        %2166 = vperm.xlu0 %2165, %v458
        %v2167 = vpop.permute.xlu0 %2166
        %2170 = vset.pattern.permute.xlu0 0
        %2171 = vperm.xlu0 %2170, %v459
        %v2172 = vpop.permute.xlu0 %2171
        %2175 = vset.pattern.permute.xlu0 0
        %2176 = vperm.xlu0 %2175, %v460
        %v2177 = vpop.permute.xlu0 %2176
        %2180 = vset.pattern.permute.xlu0 0
        %2181 = vperm.xlu0 %2180, %v461
        %v2182 = vpop.permute.xlu0 %2181
        %2185 = vset.pattern.permute.xlu0 0
        %2186 = vperm.xlu0 %2185, %v462
        %v2187 = vpop.permute.xlu0 %2186
        %2190 = vset.pattern.permute.xlu0 0
        %2191 = vperm.xlu0 %2190, %v463
        %v2192 = vpop.permute.xlu0 %2191
        %2195 = vset.pattern.permute.xlu0 0
        %2196 = vperm.xlu0 %2195, %v464
        %v2197 = vpop.permute.xlu0 %2196
        %2200 = vset.pattern.permute.xlu0 0
        %2201 = vperm.xlu0 %2200, %v465
        %v2202 = vpop.permute.xlu0 %2201
        %2205 = vset.pattern.permute.xlu0 0
        %2206 = vperm.xlu0 %2205, %v466
        %v2207 = vpop.permute.xlu0 %2206
        %2210 = vset.pattern.permute.xlu0 0
        %2211 = vperm.xlu0 %2210, %v467
        %v2212 = vpop.permute.xlu0 %2211
        %2215 = vset.pattern.permute.xlu0 0
        %2216 = vperm.xlu0 %2215, %v468
        %v2217 = vpop.permute.xlu0 %2216
        %2220 = vset.pattern.permute.xlu0 0
        %2221 = vperm.xlu0 %2220, %v469
        %v2222 = vpop.permute.xlu0 %2221
        %2225 = vset.pattern.permute.xlu0 0
        %2226 = vperm.xlu0 %2225, %v470
        %v2227 = vpop.permute.xlu0 %2226
        %2230 = vset.pattern.permute.xlu0 0
        %2231 = vperm.xlu0 %2230, %v471
        %v2232 = vpop.permute.xlu0 %2231
        %2235 = vset.pattern.permute.xlu0 0
        %2236 = vperm.xlu0 %2235, %v472
        %v2237 = vpop.permute.xlu0 %2236
        %2240 = vset.pattern.permute.xlu0 0
        %2241 = vperm.xlu0 %2240, %v473
        %v2242 = vpop.permute.xlu0 %2241
        %2245 = vset.pattern.permute.xlu0 0
        %2246 = vperm.xlu0 %2245, %v474
        %v2247 = vpop.permute.xlu0 %2246
        %2250 = vset.pattern.permute.xlu0 0
        %2251 = vperm.xlu0 %2250, %v475
        %v2252 = vpop.permute.xlu0 %2251
        %2255 = vset.pattern.permute.xlu0 0
        %2256 = vperm.xlu0 %2255, %v476
        %v2257 = vpop.permute.xlu0 %2256
        %2260 = vset.pattern.permute.xlu0 0
        %2261 = vperm.xlu0 %2260, %v477
        %v2262 = vpop.permute.xlu0 %2261
        %2265 = vset.pattern.permute.xlu0 0
        %2266 = vperm.xlu0 %2265, %v478
        %v2267 = vpop.permute.xlu0 %2266
        %2270 = vset.pattern.permute.xlu0 0
        %2271 = vperm.xlu0 %2270, %v479
        %v2272 = vpop.permute.xlu0 %2271
        %2275 = vset.pattern.permute.xlu0 0
        %2276 = vperm.xlu0 %2275, %v480
        %v2277 = vpop.permute.xlu0 %2276
        %2280 = vset.pattern.permute.xlu0 0
        %2281 = vperm.xlu0 %2280, %v481
        %v2282 = vpop.permute.xlu0 %2281
        %2285 = vset.pattern.permute.xlu0 0
        %2286 = vperm.xlu0 %2285, %v482
        %v2287 = vpop.permute.xlu0 %2286
        %2290 = vset.pattern.permute.xlu0 0
        %2291 = vperm.xlu0 %2290, %v483
        %v2292 = vpop.permute.xlu0 %2291
        %2295 = vset.pattern.permute.xlu0 0
        %2296 = vperm.xlu0 %2295, %v484
        %v2297 = vpop.permute.xlu0 %2296
        %2300 = vset.pattern.permute.xlu0 0
        %2301 = vperm.xlu0 %2300, %v485
        %v2302 = vpop.permute.xlu0 %2301
        %2305 = vset.pattern.permute.xlu0 0
        %2306 = vperm.xlu0 %2305, %v486
        %v2307 = vpop.permute.xlu0 %2306
        %2310 = vset.pattern.permute.xlu0 0
        %2311 = vperm.xlu0 %2310, %v487
        %v2312 = vpop.permute.xlu0 %2311
        %2315 = vset.pattern.permute.xlu0 0
        %2316 = vperm.xlu0 %2315, %v488
        %v2317 = vpop.permute.xlu0 %2316
        %2320 = vset.pattern.permute.xlu0 0
        %2321 = vperm.xlu0 %2320, %v489
        %v2322 = vpop.permute.xlu0 %2321
        %2325 = vset.pattern.permute.xlu0 0
        %2326 = vperm.xlu0 %2325, %v490
        %v2327 = vpop.permute.xlu0 %2326
        %2330 = vset.pattern.permute.xlu0 0
        %2331 = vperm.xlu0 %2330, %v491
        %v2332 = vpop.permute.xlu0 %2331
        %2335 = vset.pattern.permute.xlu0 0
        %2336 = vperm.xlu0 %2335, %v492
        %v2337 = vpop.permute.xlu0 %2336
        %2340 = vset.pattern.permute.xlu0 0
        %2341 = vperm.xlu0 %2340, %v493
        %v2342 = vpop.permute.xlu0 %2341
        %2345 = vset.pattern.permute.xlu0 0
        %2346 = vperm.xlu0 %2345, %v494
        %v2347 = vpop.permute.xlu0 %2346
        %2350 = vset.pattern.permute.xlu0 0
        %2351 = vperm.xlu0 %2350, %v495
        %v2352 = vpop.permute.xlu0 %2351
        %2355 = vset.pattern.permute.xlu0 0
        %2356 = vperm.xlu0 %2355, %v496
        %v2357 = vpop.permute.xlu0 %2356
        %2360 = vset.pattern.permute.xlu0 0
        %2361 = vperm.xlu0 %2360, %v497
        %v2362 = vpop.permute.xlu0 %2361
        %2365 = vset.pattern.permute.xlu0 0
        %2366 = vperm.xlu0 %2365, %v498
        %v2367 = vpop.permute.xlu0 %2366
        %2370 = vset.pattern.permute.xlu0 0
        %2371 = vperm.xlu0 %2370, %v499
        %v2372 = vpop.permute.xlu0 %2371
        %2375 = vset.pattern.permute.xlu0 0
        %2376 = vperm.xlu0 %2375, %v500
        %v2377 = vpop.permute.xlu0 %2376
        %2380 = vset.pattern.permute.xlu0 0
        %2381 = vperm.xlu0 %2380, %v501
        %v2382 = vpop.permute.xlu0 %2381
        %2385 = vset.pattern.permute.xlu0 0
        %2386 = vperm.xlu0 %2385, %v502
        %v2387 = vpop.permute.xlu0 %2386
        %2390 = vset.pattern.permute.xlu0 0
        %2391 = vperm.xlu0 %2390, %v503
        %v2392 = vpop.permute.xlu0 %2391
        %2395 = vset.pattern.permute.xlu0 0
        %2396 = vperm.xlu0 %2395, %v504
        %v2397 = vpop.permute.xlu0 %2396
        %2400 = vset.pattern.permute.xlu0 0
        %2401 = vperm.xlu0 %2400, %v505
        %v2402 = vpop.permute.xlu0 %2401
        %2405 = vset.pattern.permute.xlu0 0
        %2406 = vperm.xlu0 %2405, %v506
        %v2407 = vpop.permute.xlu0 %2406
        %2410 = vset.pattern.permute.xlu0 0
        %2411 = vperm.xlu0 %2410, %v507
        %v2412 = vpop.permute.xlu0 %2411
        %2415 = vset.pattern.permute.xlu0 0
        %2416 = vperm.xlu0 %2415, %v508
        %v2417 = vpop.permute.xlu0 %2416
        %2420 = vset.pattern.permute.xlu0 0
        %2421 = vperm.xlu0 %2420, %v509
        %v2422 = vpop.permute.xlu0 %2421
        %2425 = vset.pattern.permute.xlu0 0
        %2426 = vperm.xlu0 %2425, %v510
        %v2427 = vpop.permute.xlu0 %2426
        %2430 = vset.pattern.permute.xlu0 0
        %2431 = vperm.xlu0 %2430, %v511
        %v2432 = vpop.permute.xlu0 %2431
        %2435 = vset.pattern.permute.xlu0 0
        %2436 = vperm.xlu0 %2435, %v512
        %v2437 = vpop.permute.xlu0 %2436
        %2440 = vset.pattern.permute.xlu0 0
        %2441 = vperm.xlu0 %2440, %v513
        %v2442 = vpop.permute.xlu0 %2441
        %2445 = vset.pattern.permute.xlu0 0
        %2446 = vperm.xlu0 %2445, %v514
        %v2447 = vpop.permute.xlu0 %2446
        %2450 = vset.pattern.permute.xlu0 0
        %2451 = vperm.xlu0 %2450, %v515
        %v2452 = vpop.permute.xlu0 %2451
        %2455 = vset.pattern.permute.xlu0 0
        %2456 = vperm.xlu0 %2455, %v516
        %v2457 = vpop.permute.xlu0 %2456
        %2460 = vset.pattern.permute.xlu0 0
        %2461 = vperm.xlu0 %2460, %v517
        %v2462 = vpop.permute.xlu0 %2461
        %2465 = vset.pattern.permute.xlu0 0
        %2466 = vperm.xlu0 %2465, %v518
        %v2467 = vpop.permute.xlu0 %2466
        %2470 = vset.pattern.permute.xlu0 0
        %2471 = vperm.xlu0 %2470, %v519
        %v2472 = vpop.permute.xlu0 %2471
        %2475 = vset.pattern.permute.xlu0 0
        %2476 = vperm.xlu0 %2475, %v520
        %v2477 = vpop.permute.xlu0 %2476
        %2480 = vset.pattern.permute.xlu0 0
        %2481 = vperm.xlu0 %2480, %v521
        %v2482 = vpop.permute.xlu0 %2481
        %2485 = vset.pattern.permute.xlu0 0
        %2486 = vperm.xlu0 %2485, %v522
        %v2487 = vpop.permute.xlu0 %2486
        %2490 = vset.pattern.permute.xlu0 0
        %2491 = vperm.xlu0 %2490, %v523
        %v2492 = vpop.permute.xlu0 %2491
        %2495 = vset.pattern.permute.xlu0 0
        %2496 = vperm.xlu0 %2495, %v524
        %v2497 = vpop.permute.xlu0 %2496
        %2500 = vset.pattern.permute.xlu0 0
        %2501 = vperm.xlu0 %2500, %v525
        %v2502 = vpop.permute.xlu0 %2501
        %2505 = vset.pattern.permute.xlu0 0
        %2506 = vperm.xlu0 %2505, %v526
        %v2507 = vpop.permute.xlu0 %2506
        %2510 = vset.pattern.permute.xlu0 0
        %2511 = vperm.xlu0 %2510, %v527
        %v2512 = vpop.permute.xlu0 %2511
        %2515 = vset.pattern.permute.xlu0 0
        %2516 = vperm.xlu0 %2515, %v528
        %v2517 = vpop.permute.xlu0 %2516
        %2520 = vset.pattern.permute.xlu0 0
        %2521 = vperm.xlu0 %2520, %v529
        %v2522 = vpop.permute.xlu0 %2521
        %2525 = vset.pattern.permute.xlu0 0
        %2526 = vperm.xlu0 %2525, %v530
        %v2527 = vpop.permute.xlu0 %2526
        %2530 = vset.pattern.permute.xlu0 0
        %2531 = vperm.xlu0 %2530, %v531
        %v2532 = vpop.permute.xlu0 %2531
        %2535 = vset.pattern.permute.xlu0 0
        %2536 = vperm.xlu0 %2535, %v532
        %v2537 = vpop.permute.xlu0 %2536
        %2540 = vset.pattern.permute.xlu0 0
        %2541 = vperm.xlu0 %2540, %v533
        %v2542 = vpop.permute.xlu0 %2541
        %2545 = vset.pattern.permute.xlu0 0
        %2546 = vperm.xlu0 %2545, %v534
        %v2547 = vpop.permute.xlu0 %2546
        %2550 = vset.pattern.permute.xlu0 0
        %2551 = vperm.xlu0 %2550, %v535
        %v2552 = vpop.permute.xlu0 %2551
        %2555 = vset.pattern.permute.xlu0 0
        %2556 = vperm.xlu0 %2555, %v536
        %v2557 = vpop.permute.xlu0 %2556
        %2560 = vset.pattern.permute.xlu0 0
        %2561 = vperm.xlu0 %2560, %v537
        %v2562 = vpop.permute.xlu0 %2561
        %2565 = vset.pattern.permute.xlu0 0
        %2566 = vperm.xlu0 %2565, %v538
        %v2567 = vpop.permute.xlu0 %2566
        %2570 = vset.pattern.permute.xlu0 0
        %2571 = vperm.xlu0 %2570, %v539
        %v2572 = vpop.permute.xlu0 %2571
        %2575 = vset.pattern.permute.xlu0 0
        %2576 = vperm.xlu0 %2575, %v540
        %v2577 = vpop.permute.xlu0 %2576
        %2580 = vset.pattern.permute.xlu0 0
        %2581 = vperm.xlu0 %2580, %v541
        %v2582 = vpop.permute.xlu0 %2581
        %2585 = vset.pattern.permute.xlu0 0
        %2586 = vperm.xlu0 %2585, %v542
        %v2587 = vpop.permute.xlu0 %2586
        %2590 = vset.pattern.permute.xlu0 0
        %2591 = vperm.xlu0 %2590, %v543
        %v2592 = vpop.permute.xlu0 %2591
        %2595 = vset.pattern.permute.xlu0 0
        %2596 = vperm.xlu0 %2595, %v544
        %v2597 = vpop.permute.xlu0 %2596
        %2600 = vset.pattern.permute.xlu0 0
        %2601 = vperm.xlu0 %2600, %v545
        %v2602 = vpop.permute.xlu0 %2601
        %2605 = vset.pattern.permute.xlu0 0
        %2606 = vperm.xlu0 %2605, %v546
        %v2607 = vpop.permute.xlu0 %2606
        %2610 = vset.pattern.permute.xlu0 0
        %2611 = vperm.xlu0 %2610, %v547
        %v2612 = vpop.permute.xlu0 %2611
        %2615 = vset.pattern.permute.xlu0 0
        %2616 = vperm.xlu0 %2615, %v548
        %v2617 = vpop.permute.xlu0 %2616
        %2620 = vset.pattern.permute.xlu0 0
        %2621 = vperm.xlu0 %2620, %v549
        %v2622 = vpop.permute.xlu0 %2621
        %2625 = vset.pattern.permute.xlu0 0
        %2626 = vperm.xlu0 %2625, %v550
        %v2627 = vpop.permute.xlu0 %2626
        %2630 = vset.pattern.permute.xlu0 0
        %2631 = vperm.xlu0 %2630, %v551
        %v2632 = vpop.permute.xlu0 %2631
        %2635 = vset.pattern.permute.xlu0 0
        %2636 = vperm.xlu0 %2635, %v552
        %v2637 = vpop.permute.xlu0 %2636
        %2640 = vset.pattern.permute.xlu0 0
        %2641 = vperm.xlu0 %2640, %v553
        %v2642 = vpop.permute.xlu0 %2641
        %2645 = vset.pattern.permute.xlu0 0
        %2646 = vperm.xlu0 %2645, %v554
        %v2647 = vpop.permute.xlu0 %2646
        %2650 = vset.pattern.permute.xlu0 0
        %2651 = vperm.xlu0 %2650, %v555
        %v2652 = vpop.permute.xlu0 %2651
        %2655 = vset.pattern.permute.xlu0 0
        %2656 = vperm.xlu0 %2655, %v556
        %v2657 = vpop.permute.xlu0 %2656
        %2660 = vset.pattern.permute.xlu0 0
        %2661 = vperm.xlu0 %2660, %v557
        %v2662 = vpop.permute.xlu0 %2661
        %2665 = vset.pattern.permute.xlu0 0
        %2666 = vperm.xlu0 %2665, %v558
        %v2667 = vpop.permute.xlu0 %2666
        %2670 = vset.pattern.permute.xlu0 0
        %2671 = vperm.xlu0 %2670, %v559
        %v2672 = vpop.permute.xlu0 %2671
        %2675 = vset.pattern.permute.xlu0 0
        %2676 = vperm.xlu0 %2675, %v560
        %v2677 = vpop.permute.xlu0 %2676
        %v2680 = vperm.slane %v692, 0
        %v2682 = vmul.f32 %v2042, %v2680
        %v2683 = vmul.f32 %v2047, %v2680
        %v2684 = vmul.f32 %v2052, %v2680
        %v2685 = vmul.f32 %v2057, %v2680
        %v2686 = vmul.f32 %v2062, %v2680
        %v2687 = vmul.f32 %v2067, %v2680
        %v2688 = vmul.f32 %v2072, %v2680
        %v2689 = vmul.f32 %v2077, %v2680
        %v2690 = vmul.f32 %v2082, %v2680
        %v2691 = vmul.f32 %v2087, %v2680
        %v2692 = vmul.f32 %v2092, %v2680
        %v2693 = vmul.f32 %v2097, %v2680
        %v2694 = vmul.f32 %v2102, %v2680
        %v2695 = vmul.f32 %v2107, %v2680
        %v2696 = vmul.f32 %v2112, %v2680
        %v2697 = vmul.f32 %v2117, %v2680
        %v2698 = vmul.f32 %v2122, %v2680
        %v2699 = vmul.f32 %v2127, %v2680
        %v2700 = vmul.f32 %v2132, %v2680
        %v2701 = vmul.f32 %v2137, %v2680
        %v2702 = vmul.f32 %v2142, %v2680
        %v2703 = vmul.f32 %v2147, %v2680
        %v2704 = vmul.f32 %v2152, %v2680
        %v2705 = vmul.f32 %v2157, %v2680
        %v2706 = vmul.f32 %v2162, %v2680
        %v2707 = vmul.f32 %v2167, %v2680
        %v2708 = vmul.f32 %v2172, %v2680
        %v2709 = vmul.f32 %v2177, %v2680
        %v2710 = vmul.f32 %v2182, %v2680
        %v2711 = vmul.f32 %v2187, %v2680
        %v2712 = vmul.f32 %v2192, %v2680
        %v2713 = vmul.f32 %v2197, %v2680
        %v2714 = vmul.f32 %v2202, %v2680
        %v2715 = vmul.f32 %v2207, %v2680
        %v2716 = vmul.f32 %v2212, %v2680
        %v2717 = vmul.f32 %v2217, %v2680
        %v2718 = vmul.f32 %v2222, %v2680
        %v2719 = vmul.f32 %v2227, %v2680
        %v2720 = vmul.f32 %v2232, %v2680
        %v2721 = vmul.f32 %v2237, %v2680
        %v2722 = vmul.f32 %v2242, %v2680
        %v2723 = vmul.f32 %v2247, %v2680
        %v2724 = vmul.f32 %v2252, %v2680
        %v2725 = vmul.f32 %v2257, %v2680
        %v2726 = vmul.f32 %v2262, %v2680
        %v2727 = vmul.f32 %v2267, %v2680
        %v2728 = vmul.f32 %v2272, %v2680
        %v2729 = vmul.f32 %v2277, %v2680
        %v2730 = vmul.f32 %v2282, %v2680
        %v2731 = vmul.f32 %v2287, %v2680
        %v2732 = vmul.f32 %v2292, %v2680
        %v2733 = vmul.f32 %v2297, %v2680
        %v2734 = vmul.f32 %v2302, %v2680
        %v2735 = vmul.f32 %v2307, %v2680
        %v2736 = vmul.f32 %v2312, %v2680
        %v2737 = vmul.f32 %v2317, %v2680
        %v2738 = vmul.f32 %v2322, %v2680
        %v2739 = vmul.f32 %v2327, %v2680
        %v2740 = vmul.f32 %v2332, %v2680
        %v2741 = vmul.f32 %v2337, %v2680
        %v2742 = vmul.f32 %v2342, %v2680
        %v2743 = vmul.f32 %v2347, %v2680
        %v2744 = vmul.f32 %v2352, %v2680
        %v2745 = vmul.f32 %v2357, %v2680
        %v2746 = vmul.f32 %v2362, %v2680
        %v2747 = vmul.f32 %v2367, %v2680
        %v2748 = vmul.f32 %v2372, %v2680
        %v2749 = vmul.f32 %v2377, %v2680
        %v2750 = vmul.f32 %v2382, %v2680
        %v2751 = vmul.f32 %v2387, %v2680
        %v2752 = vmul.f32 %v2392, %v2680
        %v2753 = vmul.f32 %v2397, %v2680
        %v2754 = vmul.f32 %v2402, %v2680
        %v2755 = vmul.f32 %v2407, %v2680
        %v2756 = vmul.f32 %v2412, %v2680
        %v2757 = vmul.f32 %v2417, %v2680
        %v2758 = vmul.f32 %v2422, %v2680
        %v2759 = vmul.f32 %v2427, %v2680
        %v2760 = vmul.f32 %v2432, %v2680
        %v2761 = vmul.f32 %v2437, %v2680
        %v2762 = vmul.f32 %v2442, %v2680
        %v2763 = vmul.f32 %v2447, %v2680
        %v2764 = vmul.f32 %v2452, %v2680
        %v2765 = vmul.f32 %v2457, %v2680
        %v2766 = vmul.f32 %v2462, %v2680
        %v2767 = vmul.f32 %v2467, %v2680
        %v2768 = vmul.f32 %v2472, %v2680
        %v2769 = vmul.f32 %v2477, %v2680
        %v2770 = vmul.f32 %v2482, %v2680
        %v2771 = vmul.f32 %v2487, %v2680
        %v2772 = vmul.f32 %v2492, %v2680
        %v2773 = vmul.f32 %v2497, %v2680
        %v2774 = vmul.f32 %v2502, %v2680
        %v2775 = vmul.f32 %v2507, %v2680
        %v2776 = vmul.f32 %v2512, %v2680
        %v2777 = vmul.f32 %v2517, %v2680
        %v2778 = vmul.f32 %v2522, %v2680
        %v2779 = vmul.f32 %v2527, %v2680
        %v2780 = vmul.f32 %v2532, %v2680
        %v2781 = vmul.f32 %v2537, %v2680
        %v2782 = vmul.f32 %v2542, %v2680
        %v2783 = vmul.f32 %v2547, %v2680
        %v2784 = vmul.f32 %v2552, %v2680
        %v2785 = vmul.f32 %v2557, %v2680
        %v2786 = vmul.f32 %v2562, %v2680
        %v2787 = vmul.f32 %v2567, %v2680
        %v2788 = vmul.f32 %v2572, %v2680
        %v2789 = vmul.f32 %v2577, %v2680
        %v2790 = vmul.f32 %v2582, %v2680
        %v2791 = vmul.f32 %v2587, %v2680
        %v2792 = vmul.f32 %v2592, %v2680
        %v2793 = vmul.f32 %v2597, %v2680
        %v2794 = vmul.f32 %v2602, %v2680
        %v2795 = vmul.f32 %v2607, %v2680
        %v2796 = vmul.f32 %v2612, %v2680
        %v2797 = vmul.f32 %v2617, %v2680
        %v2798 = vmul.f32 %v2622, %v2680
        %v2799 = vmul.f32 %v2627, %v2680
        %v2800 = vmul.f32 %v2632, %v2680
        %v2801 = vmul.f32 %v2637, %v2680
        %v2802 = vmul.f32 %v2642, %v2680
        %v2803 = vmul.f32 %v2647, %v2680
        %v2804 = vmul.f32 %v2652, %v2680
        %v2805 = vmul.f32 %v2657, %v2680
        %v2806 = vmul.f32 %v2662, %v2680
        %v2807 = vmul.f32 %v2667, %v2680
        %v2808 = vmul.f32 %v2672, %v2680
        %v2809 = vmul.f32 %v2677, %v2680
        %2810 = vset.pattern.permute.xlu0 1
        %2811 = vperm.xlu0 %2810, %v433
        %v2812 = vpop.permute.xlu0 %2811
        %2814 = vset.pattern.permute.xlu0 1
        %2815 = vperm.xlu0 %2814, %v434
        %v2816 = vpop.permute.xlu0 %2815
        %2818 = vset.pattern.permute.xlu0 1
        %2819 = vperm.xlu0 %2818, %v435
        %v2820 = vpop.permute.xlu0 %2819
        %2822 = vset.pattern.permute.xlu0 1
        %2823 = vperm.xlu0 %2822, %v436
        %v2824 = vpop.permute.xlu0 %2823
        %2826 = vset.pattern.permute.xlu0 1
        %2827 = vperm.xlu0 %2826, %v437
        %v2828 = vpop.permute.xlu0 %2827
        %2830 = vset.pattern.permute.xlu0 1
        %2831 = vperm.xlu0 %2830, %v438
        %v2832 = vpop.permute.xlu0 %2831
        %2834 = vset.pattern.permute.xlu0 1
        %2835 = vperm.xlu0 %2834, %v439
        %v2836 = vpop.permute.xlu0 %2835
        %2838 = vset.pattern.permute.xlu0 1
        %2839 = vperm.xlu0 %2838, %v440
        %v2840 = vpop.permute.xlu0 %2839
        %2842 = vset.pattern.permute.xlu0 1
        %2843 = vperm.xlu0 %2842, %v441
        %v2844 = vpop.permute.xlu0 %2843
        %2846 = vset.pattern.permute.xlu0 1
        %2847 = vperm.xlu0 %2846, %v442
        %v2848 = vpop.permute.xlu0 %2847
        %2850 = vset.pattern.permute.xlu0 1
        %2851 = vperm.xlu0 %2850, %v443
        %v2852 = vpop.permute.xlu0 %2851
        %2854 = vset.pattern.permute.xlu0 1
        %2855 = vperm.xlu0 %2854, %v444
        %v2856 = vpop.permute.xlu0 %2855
        %2858 = vset.pattern.permute.xlu0 1
        %2859 = vperm.xlu0 %2858, %v445
        %v2860 = vpop.permute.xlu0 %2859
        %2862 = vset.pattern.permute.xlu0 1
        %2863 = vperm.xlu0 %2862, %v446
        %v2864 = vpop.permute.xlu0 %2863
        %2866 = vset.pattern.permute.xlu0 1
        %2867 = vperm.xlu0 %2866, %v447
        %v2868 = vpop.permute.xlu0 %2867
        %2870 = vset.pattern.permute.xlu0 1
        %2871 = vperm.xlu0 %2870, %v448
        %v2872 = vpop.permute.xlu0 %2871
        %2874 = vset.pattern.permute.xlu0 1
        %2875 = vperm.xlu0 %2874, %v449
        %v2876 = vpop.permute.xlu0 %2875
        %2878 = vset.pattern.permute.xlu0 1
        %2879 = vperm.xlu0 %2878, %v450
        %v2880 = vpop.permute.xlu0 %2879
        %2882 = vset.pattern.permute.xlu0 1
        %2883 = vperm.xlu0 %2882, %v451
        %v2884 = vpop.permute.xlu0 %2883
        %2886 = vset.pattern.permute.xlu0 1
        %2887 = vperm.xlu0 %2886, %v452
        %v2888 = vpop.permute.xlu0 %2887
        %2890 = vset.pattern.permute.xlu0 1
        %2891 = vperm.xlu0 %2890, %v453
        %v2892 = vpop.permute.xlu0 %2891
        %2894 = vset.pattern.permute.xlu0 1
        %2895 = vperm.xlu0 %2894, %v454
        %v2896 = vpop.permute.xlu0 %2895
        %2898 = vset.pattern.permute.xlu0 1
        %2899 = vperm.xlu0 %2898, %v455
        %v2900 = vpop.permute.xlu0 %2899
        %2902 = vset.pattern.permute.xlu0 1
        %2903 = vperm.xlu0 %2902, %v456
        %v2904 = vpop.permute.xlu0 %2903
        %2906 = vset.pattern.permute.xlu0 1
        %2907 = vperm.xlu0 %2906, %v457
        %v2908 = vpop.permute.xlu0 %2907
        %2910 = vset.pattern.permute.xlu0 1
        %2911 = vperm.xlu0 %2910, %v458
        %v2912 = vpop.permute.xlu0 %2911
        %2914 = vset.pattern.permute.xlu0 1
        %2915 = vperm.xlu0 %2914, %v459
        %v2916 = vpop.permute.xlu0 %2915
        %2918 = vset.pattern.permute.xlu0 1
        %2919 = vperm.xlu0 %2918, %v460
        %v2920 = vpop.permute.xlu0 %2919
        %2922 = vset.pattern.permute.xlu0 1
        %2923 = vperm.xlu0 %2922, %v461
        %v2924 = vpop.permute.xlu0 %2923
        %2926 = vset.pattern.permute.xlu0 1
        %2927 = vperm.xlu0 %2926, %v462
        %v2928 = vpop.permute.xlu0 %2927
        %2930 = vset.pattern.permute.xlu0 1
        %2931 = vperm.xlu0 %2930, %v463
        %v2932 = vpop.permute.xlu0 %2931
        %2934 = vset.pattern.permute.xlu0 1
        %2935 = vperm.xlu0 %2934, %v464
        %v2936 = vpop.permute.xlu0 %2935
        %2938 = vset.pattern.permute.xlu0 1
        %2939 = vperm.xlu0 %2938, %v465
        %v2940 = vpop.permute.xlu0 %2939
        %2942 = vset.pattern.permute.xlu0 1
        %2943 = vperm.xlu0 %2942, %v466
        %v2944 = vpop.permute.xlu0 %2943
        %2946 = vset.pattern.permute.xlu0 1
        %2947 = vperm.xlu0 %2946, %v467
        %v2948 = vpop.permute.xlu0 %2947
        %2950 = vset.pattern.permute.xlu0 1
        %2951 = vperm.xlu0 %2950, %v468
        %v2952 = vpop.permute.xlu0 %2951
        %2954 = vset.pattern.permute.xlu0 1
        %2955 = vperm.xlu0 %2954, %v469
        %v2956 = vpop.permute.xlu0 %2955
        %2958 = vset.pattern.permute.xlu0 1
        %2959 = vperm.xlu0 %2958, %v470
        %v2960 = vpop.permute.xlu0 %2959
        %2962 = vset.pattern.permute.xlu0 1
        %2963 = vperm.xlu0 %2962, %v471
        %v2964 = vpop.permute.xlu0 %2963
        %2966 = vset.pattern.permute.xlu0 1
        %2967 = vperm.xlu0 %2966, %v472
        %v2968 = vpop.permute.xlu0 %2967
        %2970 = vset.pattern.permute.xlu0 1
        %2971 = vperm.xlu0 %2970, %v473
        %v2972 = vpop.permute.xlu0 %2971
        %2974 = vset.pattern.permute.xlu0 1
        %2975 = vperm.xlu0 %2974, %v474
        %v2976 = vpop.permute.xlu0 %2975
        %2978 = vset.pattern.permute.xlu0 1
        %2979 = vperm.xlu0 %2978, %v475
        %v2980 = vpop.permute.xlu0 %2979
        %2982 = vset.pattern.permute.xlu0 1
        %2983 = vperm.xlu0 %2982, %v476
        %v2984 = vpop.permute.xlu0 %2983
        %2986 = vset.pattern.permute.xlu0 1
        %2987 = vperm.xlu0 %2986, %v477
        %v2988 = vpop.permute.xlu0 %2987
        %2990 = vset.pattern.permute.xlu0 1
        %2991 = vperm.xlu0 %2990, %v478
        %v2992 = vpop.permute.xlu0 %2991
        %2994 = vset.pattern.permute.xlu0 1
        %2995 = vperm.xlu0 %2994, %v479
        %v2996 = vpop.permute.xlu0 %2995
        %2998 = vset.pattern.permute.xlu0 1
        %2999 = vperm.xlu0 %2998, %v480
        %v3000 = vpop.permute.xlu0 %2999
        %3002 = vset.pattern.permute.xlu0 1
        %3003 = vperm.xlu0 %3002, %v481
        %v3004 = vpop.permute.xlu0 %3003
        %3006 = vset.pattern.permute.xlu0 1
        %3007 = vperm.xlu0 %3006, %v482
        %v3008 = vpop.permute.xlu0 %3007
        %3010 = vset.pattern.permute.xlu0 1
        %3011 = vperm.xlu0 %3010, %v483
        %v3012 = vpop.permute.xlu0 %3011
        %3014 = vset.pattern.permute.xlu0 1
        %3015 = vperm.xlu0 %3014, %v484
        %v3016 = vpop.permute.xlu0 %3015
        %3018 = vset.pattern.permute.xlu0 1
        %3019 = vperm.xlu0 %3018, %v485
        %v3020 = vpop.permute.xlu0 %3019
        %3022 = vset.pattern.permute.xlu0 1
        %3023 = vperm.xlu0 %3022, %v486
        %v3024 = vpop.permute.xlu0 %3023
        %3026 = vset.pattern.permute.xlu0 1
        %3027 = vperm.xlu0 %3026, %v487
        %v3028 = vpop.permute.xlu0 %3027
        %3030 = vset.pattern.permute.xlu0 1
        %3031 = vperm.xlu0 %3030, %v488
        %v3032 = vpop.permute.xlu0 %3031
        %3034 = vset.pattern.permute.xlu0 1
        %3035 = vperm.xlu0 %3034, %v489
        %v3036 = vpop.permute.xlu0 %3035
        %3038 = vset.pattern.permute.xlu0 1
        %3039 = vperm.xlu0 %3038, %v490
        %v3040 = vpop.permute.xlu0 %3039
        %3042 = vset.pattern.permute.xlu0 1
        %3043 = vperm.xlu0 %3042, %v491
        %v3044 = vpop.permute.xlu0 %3043
        %3046 = vset.pattern.permute.xlu0 1
        %3047 = vperm.xlu0 %3046, %v492
        %v3048 = vpop.permute.xlu0 %3047
        %3050 = vset.pattern.permute.xlu0 1
        %3051 = vperm.xlu0 %3050, %v493
        %v3052 = vpop.permute.xlu0 %3051
        %3054 = vset.pattern.permute.xlu0 1
        %3055 = vperm.xlu0 %3054, %v494
        %v3056 = vpop.permute.xlu0 %3055
        %3058 = vset.pattern.permute.xlu0 1
        %3059 = vperm.xlu0 %3058, %v495
        %v3060 = vpop.permute.xlu0 %3059
        %3062 = vset.pattern.permute.xlu0 1
        %3063 = vperm.xlu0 %3062, %v496
        %v3064 = vpop.permute.xlu0 %3063
        %3066 = vset.pattern.permute.xlu0 1
        %3067 = vperm.xlu0 %3066, %v497
        %v3068 = vpop.permute.xlu0 %3067
        %3070 = vset.pattern.permute.xlu0 1
        %3071 = vperm.xlu0 %3070, %v498
        %v3072 = vpop.permute.xlu0 %3071
        %3074 = vset.pattern.permute.xlu0 1
        %3075 = vperm.xlu0 %3074, %v499
        %v3076 = vpop.permute.xlu0 %3075
        %3078 = vset.pattern.permute.xlu0 1
        %3079 = vperm.xlu0 %3078, %v500
        %v3080 = vpop.permute.xlu0 %3079
        %3082 = vset.pattern.permute.xlu0 1
        %3083 = vperm.xlu0 %3082, %v501
        %v3084 = vpop.permute.xlu0 %3083
        %3086 = vset.pattern.permute.xlu0 1
        %3087 = vperm.xlu0 %3086, %v502
        %v3088 = vpop.permute.xlu0 %3087
        %3090 = vset.pattern.permute.xlu0 1
        %3091 = vperm.xlu0 %3090, %v503
        %v3092 = vpop.permute.xlu0 %3091
        %3094 = vset.pattern.permute.xlu0 1
        %3095 = vperm.xlu0 %3094, %v504
        %v3096 = vpop.permute.xlu0 %3095
        %3098 = vset.pattern.permute.xlu0 1
        %3099 = vperm.xlu0 %3098, %v505
        %v3100 = vpop.permute.xlu0 %3099
        %3102 = vset.pattern.permute.xlu0 1
        %3103 = vperm.xlu0 %3102, %v506
        %v3104 = vpop.permute.xlu0 %3103
        %3106 = vset.pattern.permute.xlu0 1
        %3107 = vperm.xlu0 %3106, %v507
        %v3108 = vpop.permute.xlu0 %3107
        %3110 = vset.pattern.permute.xlu0 1
        %3111 = vperm.xlu0 %3110, %v508
        %v3112 = vpop.permute.xlu0 %3111
        %3114 = vset.pattern.permute.xlu0 1
        %3115 = vperm.xlu0 %3114, %v509
        %v3116 = vpop.permute.xlu0 %3115
        %3118 = vset.pattern.permute.xlu0 1
        %3119 = vperm.xlu0 %3118, %v510
        %v3120 = vpop.permute.xlu0 %3119
        %3122 = vset.pattern.permute.xlu0 1
        %3123 = vperm.xlu0 %3122, %v511
        %v3124 = vpop.permute.xlu0 %3123
        %3126 = vset.pattern.permute.xlu0 1
        %3127 = vperm.xlu0 %3126, %v512
        %v3128 = vpop.permute.xlu0 %3127
        %3130 = vset.pattern.permute.xlu0 1
        %3131 = vperm.xlu0 %3130, %v513
        %v3132 = vpop.permute.xlu0 %3131
        %3134 = vset.pattern.permute.xlu0 1
        %3135 = vperm.xlu0 %3134, %v514
        %v3136 = vpop.permute.xlu0 %3135
        %3138 = vset.pattern.permute.xlu0 1
        %3139 = vperm.xlu0 %3138, %v515
        %v3140 = vpop.permute.xlu0 %3139
        %3142 = vset.pattern.permute.xlu0 1
        %3143 = vperm.xlu0 %3142, %v516
        %v3144 = vpop.permute.xlu0 %3143
        %3146 = vset.pattern.permute.xlu0 1
        %3147 = vperm.xlu0 %3146, %v517
        %v3148 = vpop.permute.xlu0 %3147
        %3150 = vset.pattern.permute.xlu0 1
        %3151 = vperm.xlu0 %3150, %v518
        %v3152 = vpop.permute.xlu0 %3151
        %3154 = vset.pattern.permute.xlu0 1
        %3155 = vperm.xlu0 %3154, %v519
        %v3156 = vpop.permute.xlu0 %3155
        %3158 = vset.pattern.permute.xlu0 1
        %3159 = vperm.xlu0 %3158, %v520
        %v3160 = vpop.permute.xlu0 %3159
        %3162 = vset.pattern.permute.xlu0 1
        %3163 = vperm.xlu0 %3162, %v521
        %v3164 = vpop.permute.xlu0 %3163
        %3166 = vset.pattern.permute.xlu0 1
        %3167 = vperm.xlu0 %3166, %v522
        %v3168 = vpop.permute.xlu0 %3167
        %3170 = vset.pattern.permute.xlu0 1
        %3171 = vperm.xlu0 %3170, %v523
        %v3172 = vpop.permute.xlu0 %3171
        %3174 = vset.pattern.permute.xlu0 1
        %3175 = vperm.xlu0 %3174, %v524
        %v3176 = vpop.permute.xlu0 %3175
        %3178 = vset.pattern.permute.xlu0 1
        %3179 = vperm.xlu0 %3178, %v525
        %v3180 = vpop.permute.xlu0 %3179
        %3182 = vset.pattern.permute.xlu0 1
        %3183 = vperm.xlu0 %3182, %v526
        %v3184 = vpop.permute.xlu0 %3183
        %3186 = vset.pattern.permute.xlu0 1
        %3187 = vperm.xlu0 %3186, %v527
        %v3188 = vpop.permute.xlu0 %3187
        %3190 = vset.pattern.permute.xlu0 1
        %3191 = vperm.xlu0 %3190, %v528
        %v3192 = vpop.permute.xlu0 %3191
        %3194 = vset.pattern.permute.xlu0 1
        %3195 = vperm.xlu0 %3194, %v529
        %v3196 = vpop.permute.xlu0 %3195
        %3198 = vset.pattern.permute.xlu0 1
        %3199 = vperm.xlu0 %3198, %v530
        %v3200 = vpop.permute.xlu0 %3199
        %3202 = vset.pattern.permute.xlu0 1
        %3203 = vperm.xlu0 %3202, %v531
        %v3204 = vpop.permute.xlu0 %3203
        %3206 = vset.pattern.permute.xlu0 1
        %3207 = vperm.xlu0 %3206, %v532
        %v3208 = vpop.permute.xlu0 %3207
        %3210 = vset.pattern.permute.xlu0 1
        %3211 = vperm.xlu0 %3210, %v533
        %v3212 = vpop.permute.xlu0 %3211
        %3214 = vset.pattern.permute.xlu0 1
        %3215 = vperm.xlu0 %3214, %v534
        %v3216 = vpop.permute.xlu0 %3215
        %3218 = vset.pattern.permute.xlu0 1
        %3219 = vperm.xlu0 %3218, %v535
        %v3220 = vpop.permute.xlu0 %3219
        %3222 = vset.pattern.permute.xlu0 1
        %3223 = vperm.xlu0 %3222, %v536
        %v3224 = vpop.permute.xlu0 %3223
        %3226 = vset.pattern.permute.xlu0 1
        %3227 = vperm.xlu0 %3226, %v537
        %v3228 = vpop.permute.xlu0 %3227
        %3230 = vset.pattern.permute.xlu0 1
        %3231 = vperm.xlu0 %3230, %v538
        %v3232 = vpop.permute.xlu0 %3231
        %3234 = vset.pattern.permute.xlu0 1
        %3235 = vperm.xlu0 %3234, %v539
        %v3236 = vpop.permute.xlu0 %3235
        %3238 = vset.pattern.permute.xlu0 1
        %3239 = vperm.xlu0 %3238, %v540
        %v3240 = vpop.permute.xlu0 %3239
        %3242 = vset.pattern.permute.xlu0 1
        %3243 = vperm.xlu0 %3242, %v541
        %v3244 = vpop.permute.xlu0 %3243
        %3246 = vset.pattern.permute.xlu0 1
        %3247 = vperm.xlu0 %3246, %v542
        %v3248 = vpop.permute.xlu0 %3247
        %3250 = vset.pattern.permute.xlu0 1
        %3251 = vperm.xlu0 %3250, %v543
        %v3252 = vpop.permute.xlu0 %3251
        %3254 = vset.pattern.permute.xlu0 1
        %3255 = vperm.xlu0 %3254, %v544
        %v3256 = vpop.permute.xlu0 %3255
        %3258 = vset.pattern.permute.xlu0 1
        %3259 = vperm.xlu0 %3258, %v545
        %v3260 = vpop.permute.xlu0 %3259
        %3262 = vset.pattern.permute.xlu0 1
        %3263 = vperm.xlu0 %3262, %v546
        %v3264 = vpop.permute.xlu0 %3263
        %3266 = vset.pattern.permute.xlu0 1
        %3267 = vperm.xlu0 %3266, %v547
        %v3268 = vpop.permute.xlu0 %3267
        %3270 = vset.pattern.permute.xlu0 1
        %3271 = vperm.xlu0 %3270, %v548
        %v3272 = vpop.permute.xlu0 %3271
        %3274 = vset.pattern.permute.xlu0 1
        %3275 = vperm.xlu0 %3274, %v549
        %v3276 = vpop.permute.xlu0 %3275
        %3278 = vset.pattern.permute.xlu0 1
        %3279 = vperm.xlu0 %3278, %v550
        %v3280 = vpop.permute.xlu0 %3279
        %3282 = vset.pattern.permute.xlu0 1
        %3283 = vperm.xlu0 %3282, %v551
        %v3284 = vpop.permute.xlu0 %3283
        %3286 = vset.pattern.permute.xlu0 1
        %3287 = vperm.xlu0 %3286, %v552
        %v3288 = vpop.permute.xlu0 %3287
        %3290 = vset.pattern.permute.xlu0 1
        %3291 = vperm.xlu0 %3290, %v553
        %v3292 = vpop.permute.xlu0 %3291
        %3294 = vset.pattern.permute.xlu0 1
        %3295 = vperm.xlu0 %3294, %v554
        %v3296 = vpop.permute.xlu0 %3295
        %3298 = vset.pattern.permute.xlu0 1
        %3299 = vperm.xlu0 %3298, %v555
        %v3300 = vpop.permute.xlu0 %3299
        %3302 = vset.pattern.permute.xlu0 1
        %3303 = vperm.xlu0 %3302, %v556
        %v3304 = vpop.permute.xlu0 %3303
        %3306 = vset.pattern.permute.xlu0 1
        %3307 = vperm.xlu0 %3306, %v557
        %v3308 = vpop.permute.xlu0 %3307
        %3310 = vset.pattern.permute.xlu0 1
        %3311 = vperm.xlu0 %3310, %v558
        %v3312 = vpop.permute.xlu0 %3311
        %3314 = vset.pattern.permute.xlu0 1
        %3315 = vperm.xlu0 %3314, %v559
        %v3316 = vpop.permute.xlu0 %3315
        %3318 = vset.pattern.permute.xlu0 1
        %3319 = vperm.xlu0 %3318, %v560
        %v3320 = vpop.permute.xlu0 %3319
        %v3323 = vperm.slane %v693, 0
        %v3325 = vmul.f32 %v2812, %v3323
        %v3326 = vmul.f32 %v2816, %v3323
        %v3327 = vmul.f32 %v2820, %v3323
        %v3328 = vmul.f32 %v2824, %v3323
        %v3329 = vmul.f32 %v2828, %v3323
        %v3330 = vmul.f32 %v2832, %v3323
        %v3331 = vmul.f32 %v2836, %v3323
        %v3332 = vmul.f32 %v2840, %v3323
        %v3333 = vmul.f32 %v2844, %v3323
        %v3334 = vmul.f32 %v2848, %v3323
        %v3335 = vmul.f32 %v2852, %v3323
        %v3336 = vmul.f32 %v2856, %v3323
        %v3337 = vmul.f32 %v2860, %v3323
        %v3338 = vmul.f32 %v2864, %v3323
        %v3339 = vmul.f32 %v2868, %v3323
        %v3340 = vmul.f32 %v2872, %v3323
        %v3341 = vmul.f32 %v2876, %v3323
        %v3342 = vmul.f32 %v2880, %v3323
        %v3343 = vmul.f32 %v2884, %v3323
        %v3344 = vmul.f32 %v2888, %v3323
        %v3345 = vmul.f32 %v2892, %v3323
        %v3346 = vmul.f32 %v2896, %v3323
        %v3347 = vmul.f32 %v2900, %v3323
        %v3348 = vmul.f32 %v2904, %v3323
        %v3349 = vmul.f32 %v2908, %v3323
        %v3350 = vmul.f32 %v2912, %v3323
        %v3351 = vmul.f32 %v2916, %v3323
        %v3352 = vmul.f32 %v2920, %v3323
        %v3353 = vmul.f32 %v2924, %v3323
        %v3354 = vmul.f32 %v2928, %v3323
        %v3355 = vmul.f32 %v2932, %v3323
        %v3356 = vmul.f32 %v2936, %v3323
        %v3357 = vmul.f32 %v2940, %v3323
        %v3358 = vmul.f32 %v2944, %v3323
        %v3359 = vmul.f32 %v2948, %v3323
        %v3360 = vmul.f32 %v2952, %v3323
        %v3361 = vmul.f32 %v2956, %v3323
        %v3362 = vmul.f32 %v2960, %v3323
        %v3363 = vmul.f32 %v2964, %v3323
        %v3364 = vmul.f32 %v2968, %v3323
        %v3365 = vmul.f32 %v2972, %v3323
        %v3366 = vmul.f32 %v2976, %v3323
        %v3367 = vmul.f32 %v2980, %v3323
        %v3368 = vmul.f32 %v2984, %v3323
        %v3369 = vmul.f32 %v2988, %v3323
        %v3370 = vmul.f32 %v2992, %v3323
        %v3371 = vmul.f32 %v2996, %v3323
        %v3372 = vmul.f32 %v3000, %v3323
        %v3373 = vmul.f32 %v3004, %v3323
        %v3374 = vmul.f32 %v3008, %v3323
        %v3375 = vmul.f32 %v3012, %v3323
        %v3376 = vmul.f32 %v3016, %v3323
        %v3377 = vmul.f32 %v3020, %v3323
        %v3378 = vmul.f32 %v3024, %v3323
        %v3379 = vmul.f32 %v3028, %v3323
        %v3380 = vmul.f32 %v3032, %v3323
        %v3381 = vmul.f32 %v3036, %v3323
        %v3382 = vmul.f32 %v3040, %v3323
        %v3383 = vmul.f32 %v3044, %v3323
        %v3384 = vmul.f32 %v3048, %v3323
        %v3385 = vmul.f32 %v3052, %v3323
        %v3386 = vmul.f32 %v3056, %v3323
        %v3387 = vmul.f32 %v3060, %v3323
        %v3388 = vmul.f32 %v3064, %v3323
        %v3389 = vmul.f32 %v3068, %v3323
        %v3390 = vmul.f32 %v3072, %v3323
        %v3391 = vmul.f32 %v3076, %v3323
        %v3392 = vmul.f32 %v3080, %v3323
        %v3393 = vmul.f32 %v3084, %v3323
        %v3394 = vmul.f32 %v3088, %v3323
        %v3395 = vmul.f32 %v3092, %v3323
        %v3396 = vmul.f32 %v3096, %v3323
        %v3397 = vmul.f32 %v3100, %v3323
        %v3398 = vmul.f32 %v3104, %v3323
        %v3399 = vmul.f32 %v3108, %v3323
        %v3400 = vmul.f32 %v3112, %v3323
        %v3401 = vmul.f32 %v3116, %v3323
        %v3402 = vmul.f32 %v3120, %v3323
        %v3403 = vmul.f32 %v3124, %v3323
        %v3404 = vmul.f32 %v3128, %v3323
        %v3405 = vmul.f32 %v3132, %v3323
        %v3406 = vmul.f32 %v3136, %v3323
        %v3407 = vmul.f32 %v3140, %v3323
        %v3408 = vmul.f32 %v3144, %v3323
        %v3409 = vmul.f32 %v3148, %v3323
        %v3410 = vmul.f32 %v3152, %v3323
        %v3411 = vmul.f32 %v3156, %v3323
        %v3412 = vmul.f32 %v3160, %v3323
        %v3413 = vmul.f32 %v3164, %v3323
        %v3414 = vmul.f32 %v3168, %v3323
        %v3415 = vmul.f32 %v3172, %v3323
        %v3416 = vmul.f32 %v3176, %v3323
        %v3417 = vmul.f32 %v3180, %v3323
        %v3418 = vmul.f32 %v3184, %v3323
        %v3419 = vmul.f32 %v3188, %v3323
        %v3420 = vmul.f32 %v3192, %v3323
        %v3421 = vmul.f32 %v3196, %v3323
        %v3422 = vmul.f32 %v3200, %v3323
        %v3423 = vmul.f32 %v3204, %v3323
        %v3424 = vmul.f32 %v3208, %v3323
        %v3425 = vmul.f32 %v3212, %v3323
        %v3426 = vmul.f32 %v3216, %v3323
        %v3427 = vmul.f32 %v3220, %v3323
        %v3428 = vmul.f32 %v3224, %v3323
        %v3429 = vmul.f32 %v3228, %v3323
        %v3430 = vmul.f32 %v3232, %v3323
        %v3431 = vmul.f32 %v3236, %v3323
        %v3432 = vmul.f32 %v3240, %v3323
        %v3433 = vmul.f32 %v3244, %v3323
        %v3434 = vmul.f32 %v3248, %v3323
        %v3435 = vmul.f32 %v3252, %v3323
        %v3436 = vmul.f32 %v3256, %v3323
        %v3437 = vmul.f32 %v3260, %v3323
        %v3438 = vmul.f32 %v3264, %v3323
        %v3439 = vmul.f32 %v3268, %v3323
        %v3440 = vmul.f32 %v3272, %v3323
        %v3441 = vmul.f32 %v3276, %v3323
        %v3442 = vmul.f32 %v3280, %v3323
        %v3443 = vmul.f32 %v3284, %v3323
        %v3444 = vmul.f32 %v3288, %v3323
        %v3445 = vmul.f32 %v3292, %v3323
        %v3446 = vmul.f32 %v3296, %v3323
        %v3447 = vmul.f32 %v3300, %v3323
        %v3448 = vmul.f32 %v3304, %v3323
        %v3449 = vmul.f32 %v3308, %v3323
        %v3450 = vmul.f32 %v3312, %v3323
        %v3451 = vmul.f32 %v3316, %v3323
        %v3452 = vmul.f32 %v3320, %v3323
        %v3453 = vadd.f32 %v2682, %v3325
        %v3454 = vadd.f32 %v2683, %v3326
        %v3455 = vadd.f32 %v2684, %v3327
        %v3456 = vadd.f32 %v2685, %v3328
        %v3457 = vadd.f32 %v2686, %v3329
        %v3458 = vadd.f32 %v2687, %v3330
        %v3459 = vadd.f32 %v2688, %v3331
        %v3460 = vadd.f32 %v2689, %v3332
        %v3461 = vadd.f32 %v2690, %v3333
        %v3462 = vadd.f32 %v2691, %v3334
        %v3463 = vadd.f32 %v2692, %v3335
        %v3464 = vadd.f32 %v2693, %v3336
        %v3465 = vadd.f32 %v2694, %v3337
        %v3466 = vadd.f32 %v2695, %v3338
        %v3467 = vadd.f32 %v2696, %v3339
        %v3468 = vadd.f32 %v2697, %v3340
        %v3469 = vadd.f32 %v2698, %v3341
        %v3470 = vadd.f32 %v2699, %v3342
        %v3471 = vadd.f32 %v2700, %v3343
        %v3472 = vadd.f32 %v2701, %v3344
        %v3473 = vadd.f32 %v2702, %v3345
        %v3474 = vadd.f32 %v2703, %v3346
        %v3475 = vadd.f32 %v2704, %v3347
        %v3476 = vadd.f32 %v2705, %v3348
        %v3477 = vadd.f32 %v2706, %v3349
        %v3478 = vadd.f32 %v2707, %v3350
        %v3479 = vadd.f32 %v2708, %v3351
        %v3480 = vadd.f32 %v2709, %v3352
        %v3481 = vadd.f32 %v2710, %v3353
        %v3482 = vadd.f32 %v2711, %v3354
        %v3483 = vadd.f32 %v2712, %v3355
        %v3484 = vadd.f32 %v2713, %v3356
        %v3485 = vadd.f32 %v2714, %v3357
        %v3486 = vadd.f32 %v2715, %v3358
        %v3487 = vadd.f32 %v2716, %v3359
        %v3488 = vadd.f32 %v2717, %v3360
        %v3489 = vadd.f32 %v2718, %v3361
        %v3490 = vadd.f32 %v2719, %v3362
        %v3491 = vadd.f32 %v2720, %v3363
        %v3492 = vadd.f32 %v2721, %v3364
        %v3493 = vadd.f32 %v2722, %v3365
        %v3494 = vadd.f32 %v2723, %v3366
        %v3495 = vadd.f32 %v2724, %v3367
        %v3496 = vadd.f32 %v2725, %v3368
        %v3497 = vadd.f32 %v2726, %v3369
        %v3498 = vadd.f32 %v2727, %v3370
        %v3499 = vadd.f32 %v2728, %v3371
        %v3500 = vadd.f32 %v2729, %v3372
        %v3501 = vadd.f32 %v2730, %v3373
        %v3502 = vadd.f32 %v2731, %v3374
        %v3503 = vadd.f32 %v2732, %v3375
        %v3504 = vadd.f32 %v2733, %v3376
        %v3505 = vadd.f32 %v2734, %v3377
        %v3506 = vadd.f32 %v2735, %v3378
        %v3507 = vadd.f32 %v2736, %v3379
        %v3508 = vadd.f32 %v2737, %v3380
        %v3509 = vadd.f32 %v2738, %v3381
        %v3510 = vadd.f32 %v2739, %v3382
        %v3511 = vadd.f32 %v2740, %v3383
        %v3512 = vadd.f32 %v2741, %v3384
        %v3513 = vadd.f32 %v2742, %v3385
        %v3514 = vadd.f32 %v2743, %v3386
        %v3515 = vadd.f32 %v2744, %v3387
        %v3516 = vadd.f32 %v2745, %v3388
        %v3517 = vadd.f32 %v2746, %v3389
        %v3518 = vadd.f32 %v2747, %v3390
        %v3519 = vadd.f32 %v2748, %v3391
        %v3520 = vadd.f32 %v2749, %v3392
        %v3521 = vadd.f32 %v2750, %v3393
        %v3522 = vadd.f32 %v2751, %v3394
        %v3523 = vadd.f32 %v2752, %v3395
        %v3524 = vadd.f32 %v2753, %v3396
        %v3525 = vadd.f32 %v2754, %v3397
        %v3526 = vadd.f32 %v2755, %v3398
        %v3527 = vadd.f32 %v2756, %v3399
        %v3528 = vadd.f32 %v2757, %v3400
        %v3529 = vadd.f32 %v2758, %v3401
        %v3530 = vadd.f32 %v2759, %v3402
        %v3531 = vadd.f32 %v2760, %v3403
        %v3532 = vadd.f32 %v2761, %v3404
        %v3533 = vadd.f32 %v2762, %v3405
        %v3534 = vadd.f32 %v2763, %v3406
        %v3535 = vadd.f32 %v2764, %v3407
        %v3536 = vadd.f32 %v2765, %v3408
        %v3537 = vadd.f32 %v2766, %v3409
        %v3538 = vadd.f32 %v2767, %v3410
        %v3539 = vadd.f32 %v2768, %v3411
        %v3540 = vadd.f32 %v2769, %v3412
        %v3541 = vadd.f32 %v2770, %v3413
        %v3542 = vadd.f32 %v2771, %v3414
        %v3543 = vadd.f32 %v2772, %v3415
        %v3544 = vadd.f32 %v2773, %v3416
        %v3545 = vadd.f32 %v2774, %v3417
        %v3546 = vadd.f32 %v2775, %v3418
        %v3547 = vadd.f32 %v2776, %v3419
        %v3548 = vadd.f32 %v2777, %v3420
        %v3549 = vadd.f32 %v2778, %v3421
        %v3550 = vadd.f32 %v2779, %v3422
        %v3551 = vadd.f32 %v2780, %v3423
        %v3552 = vadd.f32 %v2781, %v3424
        %v3553 = vadd.f32 %v2782, %v3425
        %v3554 = vadd.f32 %v2783, %v3426
        %v3555 = vadd.f32 %v2784, %v3427
        %v3556 = vadd.f32 %v2785, %v3428
        %v3557 = vadd.f32 %v2786, %v3429
        %v3558 = vadd.f32 %v2787, %v3430
        %v3559 = vadd.f32 %v2788, %v3431
        %v3560 = vadd.f32 %v2789, %v3432
        %v3561 = vadd.f32 %v2790, %v3433
        %v3562 = vadd.f32 %v2791, %v3434
        %v3563 = vadd.f32 %v2792, %v3435
        %v3564 = vadd.f32 %v2793, %v3436
        %v3565 = vadd.f32 %v2794, %v3437
        %v3566 = vadd.f32 %v2795, %v3438
        %v3567 = vadd.f32 %v2796, %v3439
        %v3568 = vadd.f32 %v2797, %v3440
        %v3569 = vadd.f32 %v2798, %v3441
        %v3570 = vadd.f32 %v2799, %v3442
        %v3571 = vadd.f32 %v2800, %v3443
        %v3572 = vadd.f32 %v2801, %v3444
        %v3573 = vadd.f32 %v2802, %v3445
        %v3574 = vadd.f32 %v2803, %v3446
        %v3575 = vadd.f32 %v2804, %v3447
        %v3576 = vadd.f32 %v2805, %v3448
        %v3577 = vadd.f32 %v2806, %v3449
        %v3578 = vadd.f32 %v2807, %v3450
        %v3579 = vadd.f32 %v2808, %v3451
        %v3580 = vadd.f32 %v2809, %v3452
        %3581 = vset.pattern.permute.xlu0 2
        %3582 = vperm.xlu0 %3581, %v433
        %v3583 = vpop.permute.xlu0 %3582
        %3585 = vset.pattern.permute.xlu0 2
        %3586 = vperm.xlu0 %3585, %v434
        %v3587 = vpop.permute.xlu0 %3586
        %3589 = vset.pattern.permute.xlu0 2
        %3590 = vperm.xlu0 %3589, %v435
        %v3591 = vpop.permute.xlu0 %3590
        %3593 = vset.pattern.permute.xlu0 2
        %3594 = vperm.xlu0 %3593, %v436
        %v3595 = vpop.permute.xlu0 %3594
        %3597 = vset.pattern.permute.xlu0 2
        %3598 = vperm.xlu0 %3597, %v437
        %v3599 = vpop.permute.xlu0 %3598
        %3601 = vset.pattern.permute.xlu0 2
        %3602 = vperm.xlu0 %3601, %v438
        %v3603 = vpop.permute.xlu0 %3602
        %3605 = vset.pattern.permute.xlu0 2
        %3606 = vperm.xlu0 %3605, %v439
        %v3607 = vpop.permute.xlu0 %3606
        %3609 = vset.pattern.permute.xlu0 2
        %3610 = vperm.xlu0 %3609, %v440
        %v3611 = vpop.permute.xlu0 %3610
        %3613 = vset.pattern.permute.xlu0 2
        %3614 = vperm.xlu0 %3613, %v441
        %v3615 = vpop.permute.xlu0 %3614
        %3617 = vset.pattern.permute.xlu0 2
        %3618 = vperm.xlu0 %3617, %v442
        %v3619 = vpop.permute.xlu0 %3618
        %3621 = vset.pattern.permute.xlu0 2
        %3622 = vperm.xlu0 %3621, %v443
        %v3623 = vpop.permute.xlu0 %3622
        %3625 = vset.pattern.permute.xlu0 2
        %3626 = vperm.xlu0 %3625, %v444
        %v3627 = vpop.permute.xlu0 %3626
        %3629 = vset.pattern.permute.xlu0 2
        %3630 = vperm.xlu0 %3629, %v445
        %v3631 = vpop.permute.xlu0 %3630
        %3633 = vset.pattern.permute.xlu0 2
        %3634 = vperm.xlu0 %3633, %v446
        %v3635 = vpop.permute.xlu0 %3634
        %3637 = vset.pattern.permute.xlu0 2
        %3638 = vperm.xlu0 %3637, %v447
        %v3639 = vpop.permute.xlu0 %3638
        %3641 = vset.pattern.permute.xlu0 2
        %3642 = vperm.xlu0 %3641, %v448
        %v3643 = vpop.permute.xlu0 %3642
        %3645 = vset.pattern.permute.xlu0 2
        %3646 = vperm.xlu0 %3645, %v449
        %v3647 = vpop.permute.xlu0 %3646
        %3649 = vset.pattern.permute.xlu0 2
        %3650 = vperm.xlu0 %3649, %v450
        %v3651 = vpop.permute.xlu0 %3650
        %3653 = vset.pattern.permute.xlu0 2
        %3654 = vperm.xlu0 %3653, %v451
        %v3655 = vpop.permute.xlu0 %3654
        %3657 = vset.pattern.permute.xlu0 2
        %3658 = vperm.xlu0 %3657, %v452
        %v3659 = vpop.permute.xlu0 %3658
        %3661 = vset.pattern.permute.xlu0 2
        %3662 = vperm.xlu0 %3661, %v453
        %v3663 = vpop.permute.xlu0 %3662
        %3665 = vset.pattern.permute.xlu0 2
        %3666 = vperm.xlu0 %3665, %v454
        %v3667 = vpop.permute.xlu0 %3666
        %3669 = vset.pattern.permute.xlu0 2
        %3670 = vperm.xlu0 %3669, %v455
        %v3671 = vpop.permute.xlu0 %3670
        %3673 = vset.pattern.permute.xlu0 2
        %3674 = vperm.xlu0 %3673, %v456
        %v3675 = vpop.permute.xlu0 %3674
        %3677 = vset.pattern.permute.xlu0 2
        %3678 = vperm.xlu0 %3677, %v457
        %v3679 = vpop.permute.xlu0 %3678
        %3681 = vset.pattern.permute.xlu0 2
        %3682 = vperm.xlu0 %3681, %v458
        %v3683 = vpop.permute.xlu0 %3682
        %3685 = vset.pattern.permute.xlu0 2
        %3686 = vperm.xlu0 %3685, %v459
        %v3687 = vpop.permute.xlu0 %3686
        %3689 = vset.pattern.permute.xlu0 2
        %3690 = vperm.xlu0 %3689, %v460
        %v3691 = vpop.permute.xlu0 %3690
        %3693 = vset.pattern.permute.xlu0 2
        %3694 = vperm.xlu0 %3693, %v461
        %v3695 = vpop.permute.xlu0 %3694
        %3697 = vset.pattern.permute.xlu0 2
        %3698 = vperm.xlu0 %3697, %v462
        %v3699 = vpop.permute.xlu0 %3698
        %3701 = vset.pattern.permute.xlu0 2
        %3702 = vperm.xlu0 %3701, %v463
        %v3703 = vpop.permute.xlu0 %3702
        %3705 = vset.pattern.permute.xlu0 2
        %3706 = vperm.xlu0 %3705, %v464
        %v3707 = vpop.permute.xlu0 %3706
        %3709 = vset.pattern.permute.xlu0 2
        %3710 = vperm.xlu0 %3709, %v465
        %v3711 = vpop.permute.xlu0 %3710
        %3713 = vset.pattern.permute.xlu0 2
        %3714 = vperm.xlu0 %3713, %v466
        %v3715 = vpop.permute.xlu0 %3714
        %3717 = vset.pattern.permute.xlu0 2
        %3718 = vperm.xlu0 %3717, %v467
        %v3719 = vpop.permute.xlu0 %3718
        %3721 = vset.pattern.permute.xlu0 2
        %3722 = vperm.xlu0 %3721, %v468
        %v3723 = vpop.permute.xlu0 %3722
        %3725 = vset.pattern.permute.xlu0 2
        %3726 = vperm.xlu0 %3725, %v469
        %v3727 = vpop.permute.xlu0 %3726
        %3729 = vset.pattern.permute.xlu0 2
        %3730 = vperm.xlu0 %3729, %v470
        %v3731 = vpop.permute.xlu0 %3730
        %3733 = vset.pattern.permute.xlu0 2
        %3734 = vperm.xlu0 %3733, %v471
        %v3735 = vpop.permute.xlu0 %3734
        %3737 = vset.pattern.permute.xlu0 2
        %3738 = vperm.xlu0 %3737, %v472
        %v3739 = vpop.permute.xlu0 %3738
        %3741 = vset.pattern.permute.xlu0 2
        %3742 = vperm.xlu0 %3741, %v473
        %v3743 = vpop.permute.xlu0 %3742
        %3745 = vset.pattern.permute.xlu0 2
        %3746 = vperm.xlu0 %3745, %v474
        %v3747 = vpop.permute.xlu0 %3746
        %3749 = vset.pattern.permute.xlu0 2
        %3750 = vperm.xlu0 %3749, %v475
        %v3751 = vpop.permute.xlu0 %3750
        %3753 = vset.pattern.permute.xlu0 2
        %3754 = vperm.xlu0 %3753, %v476
        %v3755 = vpop.permute.xlu0 %3754
        %3757 = vset.pattern.permute.xlu0 2
        %3758 = vperm.xlu0 %3757, %v477
        %v3759 = vpop.permute.xlu0 %3758
        %3761 = vset.pattern.permute.xlu0 2
        %3762 = vperm.xlu0 %3761, %v478
        %v3763 = vpop.permute.xlu0 %3762
        %3765 = vset.pattern.permute.xlu0 2
        %3766 = vperm.xlu0 %3765, %v479
        %v3767 = vpop.permute.xlu0 %3766
        %3769 = vset.pattern.permute.xlu0 2
        %3770 = vperm.xlu0 %3769, %v480
        %v3771 = vpop.permute.xlu0 %3770
        %3773 = vset.pattern.permute.xlu0 2
        %3774 = vperm.xlu0 %3773, %v481
        %v3775 = vpop.permute.xlu0 %3774
        %3777 = vset.pattern.permute.xlu0 2
        %3778 = vperm.xlu0 %3777, %v482
        %v3779 = vpop.permute.xlu0 %3778
        %3781 = vset.pattern.permute.xlu0 2
        %3782 = vperm.xlu0 %3781, %v483
        %v3783 = vpop.permute.xlu0 %3782
        %3785 = vset.pattern.permute.xlu0 2
        %3786 = vperm.xlu0 %3785, %v484
        %v3787 = vpop.permute.xlu0 %3786
        %3789 = vset.pattern.permute.xlu0 2
        %3790 = vperm.xlu0 %3789, %v485
        %v3791 = vpop.permute.xlu0 %3790
        %3793 = vset.pattern.permute.xlu0 2
        %3794 = vperm.xlu0 %3793, %v486
        %v3795 = vpop.permute.xlu0 %3794
        %3797 = vset.pattern.permute.xlu0 2
        %3798 = vperm.xlu0 %3797, %v487
        %v3799 = vpop.permute.xlu0 %3798
        %3801 = vset.pattern.permute.xlu0 2
        %3802 = vperm.xlu0 %3801, %v488
        %v3803 = vpop.permute.xlu0 %3802
        %3805 = vset.pattern.permute.xlu0 2
        %3806 = vperm.xlu0 %3805, %v489
        %v3807 = vpop.permute.xlu0 %3806
        %3809 = vset.pattern.permute.xlu0 2
        %3810 = vperm.xlu0 %3809, %v490
        %v3811 = vpop.permute.xlu0 %3810
        %3813 = vset.pattern.permute.xlu0 2
        %3814 = vperm.xlu0 %3813, %v491
        %v3815 = vpop.permute.xlu0 %3814
        %3817 = vset.pattern.permute.xlu0 2
        %3818 = vperm.xlu0 %3817, %v492
        %v3819 = vpop.permute.xlu0 %3818
        %3821 = vset.pattern.permute.xlu0 2
        %3822 = vperm.xlu0 %3821, %v493
        %v3823 = vpop.permute.xlu0 %3822
        %3825 = vset.pattern.permute.xlu0 2
        %3826 = vperm.xlu0 %3825, %v494
        %v3827 = vpop.permute.xlu0 %3826
        %3829 = vset.pattern.permute.xlu0 2
        %3830 = vperm.xlu0 %3829, %v495
        %v3831 = vpop.permute.xlu0 %3830
        %3833 = vset.pattern.permute.xlu0 2
        %3834 = vperm.xlu0 %3833, %v496
        %v3835 = vpop.permute.xlu0 %3834
        %3837 = vset.pattern.permute.xlu0 2
        %3838 = vperm.xlu0 %3837, %v497
        %v3839 = vpop.permute.xlu0 %3838
        %3841 = vset.pattern.permute.xlu0 2
        %3842 = vperm.xlu0 %3841, %v498
        %v3843 = vpop.permute.xlu0 %3842
        %3845 = vset.pattern.permute.xlu0 2
        %3846 = vperm.xlu0 %3845, %v499
        %v3847 = vpop.permute.xlu0 %3846
        %3849 = vset.pattern.permute.xlu0 2
        %3850 = vperm.xlu0 %3849, %v500
        %v3851 = vpop.permute.xlu0 %3850
        %3853 = vset.pattern.permute.xlu0 2
        %3854 = vperm.xlu0 %3853, %v501
        %v3855 = vpop.permute.xlu0 %3854
        %3857 = vset.pattern.permute.xlu0 2
        %3858 = vperm.xlu0 %3857, %v502
        %v3859 = vpop.permute.xlu0 %3858
        %3861 = vset.pattern.permute.xlu0 2
        %3862 = vperm.xlu0 %3861, %v503
        %v3863 = vpop.permute.xlu0 %3862
        %3865 = vset.pattern.permute.xlu0 2
        %3866 = vperm.xlu0 %3865, %v504
        %v3867 = vpop.permute.xlu0 %3866
        %3869 = vset.pattern.permute.xlu0 2
        %3870 = vperm.xlu0 %3869, %v505
        %v3871 = vpop.permute.xlu0 %3870
        %3873 = vset.pattern.permute.xlu0 2
        %3874 = vperm.xlu0 %3873, %v506
        %v3875 = vpop.permute.xlu0 %3874
        %3877 = vset.pattern.permute.xlu0 2
        %3878 = vperm.xlu0 %3877, %v507
        %v3879 = vpop.permute.xlu0 %3878
        %3881 = vset.pattern.permute.xlu0 2
        %3882 = vperm.xlu0 %3881, %v508
        %v3883 = vpop.permute.xlu0 %3882
        %3885 = vset.pattern.permute.xlu0 2
        %3886 = vperm.xlu0 %3885, %v509
        %v3887 = vpop.permute.xlu0 %3886
        %3889 = vset.pattern.permute.xlu0 2
        %3890 = vperm.xlu0 %3889, %v510
        %v3891 = vpop.permute.xlu0 %3890
        %3893 = vset.pattern.permute.xlu0 2
        %3894 = vperm.xlu0 %3893, %v511
        %v3895 = vpop.permute.xlu0 %3894
        %3897 = vset.pattern.permute.xlu0 2
        %3898 = vperm.xlu0 %3897, %v512
        %v3899 = vpop.permute.xlu0 %3898
        %3901 = vset.pattern.permute.xlu0 2
        %3902 = vperm.xlu0 %3901, %v513
        %v3903 = vpop.permute.xlu0 %3902
        %3905 = vset.pattern.permute.xlu0 2
        %3906 = vperm.xlu0 %3905, %v514
        %v3907 = vpop.permute.xlu0 %3906
        %3909 = vset.pattern.permute.xlu0 2
        %3910 = vperm.xlu0 %3909, %v515
        %v3911 = vpop.permute.xlu0 %3910
        %3913 = vset.pattern.permute.xlu0 2
        %3914 = vperm.xlu0 %3913, %v516
        %v3915 = vpop.permute.xlu0 %3914
        %3917 = vset.pattern.permute.xlu0 2
        %3918 = vperm.xlu0 %3917, %v517
        %v3919 = vpop.permute.xlu0 %3918
        %3921 = vset.pattern.permute.xlu0 2
        %3922 = vperm.xlu0 %3921, %v518
        %v3923 = vpop.permute.xlu0 %3922
        %3925 = vset.pattern.permute.xlu0 2
        %3926 = vperm.xlu0 %3925, %v519
        %v3927 = vpop.permute.xlu0 %3926
        %3929 = vset.pattern.permute.xlu0 2
        %3930 = vperm.xlu0 %3929, %v520
        %v3931 = vpop.permute.xlu0 %3930
        %3933 = vset.pattern.permute.xlu0 2
        %3934 = vperm.xlu0 %3933, %v521
        %v3935 = vpop.permute.xlu0 %3934
        %3937 = vset.pattern.permute.xlu0 2
        %3938 = vperm.xlu0 %3937, %v522
        %v3939 = vpop.permute.xlu0 %3938
        %3941 = vset.pattern.permute.xlu0 2
        %3942 = vperm.xlu0 %3941, %v523
        %v3943 = vpop.permute.xlu0 %3942
        %3945 = vset.pattern.permute.xlu0 2
        %3946 = vperm.xlu0 %3945, %v524
        %v3947 = vpop.permute.xlu0 %3946
        %3949 = vset.pattern.permute.xlu0 2
        %3950 = vperm.xlu0 %3949, %v525
        %v3951 = vpop.permute.xlu0 %3950
        %3953 = vset.pattern.permute.xlu0 2
        %3954 = vperm.xlu0 %3953, %v526
        %v3955 = vpop.permute.xlu0 %3954
        %3957 = vset.pattern.permute.xlu0 2
        %3958 = vperm.xlu0 %3957, %v527
        %v3959 = vpop.permute.xlu0 %3958
        %3961 = vset.pattern.permute.xlu0 2
        %3962 = vperm.xlu0 %3961, %v528
        %v3963 = vpop.permute.xlu0 %3962
        %3965 = vset.pattern.permute.xlu0 2
        %3966 = vperm.xlu0 %3965, %v529
        %v3967 = vpop.permute.xlu0 %3966
        %3969 = vset.pattern.permute.xlu0 2
        %3970 = vperm.xlu0 %3969, %v530
        %v3971 = vpop.permute.xlu0 %3970
        %3973 = vset.pattern.permute.xlu0 2
        %3974 = vperm.xlu0 %3973, %v531
        %v3975 = vpop.permute.xlu0 %3974
        %3977 = vset.pattern.permute.xlu0 2
        %3978 = vperm.xlu0 %3977, %v532
        %v3979 = vpop.permute.xlu0 %3978
        %3981 = vset.pattern.permute.xlu0 2
        %3982 = vperm.xlu0 %3981, %v533
        %v3983 = vpop.permute.xlu0 %3982
        %3985 = vset.pattern.permute.xlu0 2
        %3986 = vperm.xlu0 %3985, %v534
        %v3987 = vpop.permute.xlu0 %3986
        %3989 = vset.pattern.permute.xlu0 2
        %3990 = vperm.xlu0 %3989, %v535
        %v3991 = vpop.permute.xlu0 %3990
        %3993 = vset.pattern.permute.xlu0 2
        %3994 = vperm.xlu0 %3993, %v536
        %v3995 = vpop.permute.xlu0 %3994
        %3997 = vset.pattern.permute.xlu0 2
        %3998 = vperm.xlu0 %3997, %v537
        %v3999 = vpop.permute.xlu0 %3998
        %4001 = vset.pattern.permute.xlu0 2
        %4002 = vperm.xlu0 %4001, %v538
        %v4003 = vpop.permute.xlu0 %4002
        %4005 = vset.pattern.permute.xlu0 2
        %4006 = vperm.xlu0 %4005, %v539
        %v4007 = vpop.permute.xlu0 %4006
        %4009 = vset.pattern.permute.xlu0 2
        %4010 = vperm.xlu0 %4009, %v540
        %v4011 = vpop.permute.xlu0 %4010
        %4013 = vset.pattern.permute.xlu0 2
        %4014 = vperm.xlu0 %4013, %v541
        %v4015 = vpop.permute.xlu0 %4014
        %4017 = vset.pattern.permute.xlu0 2
        %4018 = vperm.xlu0 %4017, %v542
        %v4019 = vpop.permute.xlu0 %4018
        %4021 = vset.pattern.permute.xlu0 2
        %4022 = vperm.xlu0 %4021, %v543
        %v4023 = vpop.permute.xlu0 %4022
        %4025 = vset.pattern.permute.xlu0 2
        %4026 = vperm.xlu0 %4025, %v544
        %v4027 = vpop.permute.xlu0 %4026
        %4029 = vset.pattern.permute.xlu0 2
        %4030 = vperm.xlu0 %4029, %v545
        %v4031 = vpop.permute.xlu0 %4030
        %4033 = vset.pattern.permute.xlu0 2
        %4034 = vperm.xlu0 %4033, %v546
        %v4035 = vpop.permute.xlu0 %4034
        %4037 = vset.pattern.permute.xlu0 2
        %4038 = vperm.xlu0 %4037, %v547
        %v4039 = vpop.permute.xlu0 %4038
        %4041 = vset.pattern.permute.xlu0 2
        %4042 = vperm.xlu0 %4041, %v548
        %v4043 = vpop.permute.xlu0 %4042
        %4045 = vset.pattern.permute.xlu0 2
        %4046 = vperm.xlu0 %4045, %v549
        %v4047 = vpop.permute.xlu0 %4046
        %4049 = vset.pattern.permute.xlu0 2
        %4050 = vperm.xlu0 %4049, %v550
        %v4051 = vpop.permute.xlu0 %4050
        %4053 = vset.pattern.permute.xlu0 2
        %4054 = vperm.xlu0 %4053, %v551
        %v4055 = vpop.permute.xlu0 %4054
        %4057 = vset.pattern.permute.xlu0 2
        %4058 = vperm.xlu0 %4057, %v552
        %v4059 = vpop.permute.xlu0 %4058
        %4061 = vset.pattern.permute.xlu0 2
        %4062 = vperm.xlu0 %4061, %v553
        %v4063 = vpop.permute.xlu0 %4062
        %4065 = vset.pattern.permute.xlu0 2
        %4066 = vperm.xlu0 %4065, %v554
        %v4067 = vpop.permute.xlu0 %4066
        %4069 = vset.pattern.permute.xlu0 2
        %4070 = vperm.xlu0 %4069, %v555
        %v4071 = vpop.permute.xlu0 %4070
        %4073 = vset.pattern.permute.xlu0 2
        %4074 = vperm.xlu0 %4073, %v556
        %v4075 = vpop.permute.xlu0 %4074
        %4077 = vset.pattern.permute.xlu0 2
        %4078 = vperm.xlu0 %4077, %v557
        %v4079 = vpop.permute.xlu0 %4078
        %4081 = vset.pattern.permute.xlu0 2
        %4082 = vperm.xlu0 %4081, %v558
        %v4083 = vpop.permute.xlu0 %4082
        %4085 = vset.pattern.permute.xlu0 2
        %4086 = vperm.xlu0 %4085, %v559
        %v4087 = vpop.permute.xlu0 %4086
        %4089 = vset.pattern.permute.xlu0 2
        %4090 = vperm.xlu0 %4089, %v560
        %v4091 = vpop.permute.xlu0 %4090
        %v4094 = vperm.slane %v694, 0
        %v4096 = vmul.f32 %v3583, %v4094
        %v4097 = vmul.f32 %v3587, %v4094
        %v4098 = vmul.f32 %v3591, %v4094
        %v4099 = vmul.f32 %v3595, %v4094
        %v4100 = vmul.f32 %v3599, %v4094
        %v4101 = vmul.f32 %v3603, %v4094
        %v4102 = vmul.f32 %v3607, %v4094
        %v4103 = vmul.f32 %v3611, %v4094
        %v4104 = vmul.f32 %v3615, %v4094
        %v4105 = vmul.f32 %v3619, %v4094
        %v4106 = vmul.f32 %v3623, %v4094
        %v4107 = vmul.f32 %v3627, %v4094
        %v4108 = vmul.f32 %v3631, %v4094
        %v4109 = vmul.f32 %v3635, %v4094
        %v4110 = vmul.f32 %v3639, %v4094
        %v4111 = vmul.f32 %v3643, %v4094
        %v4112 = vmul.f32 %v3647, %v4094
        %v4113 = vmul.f32 %v3651, %v4094
        %v4114 = vmul.f32 %v3655, %v4094
        %v4115 = vmul.f32 %v3659, %v4094
        %v4116 = vmul.f32 %v3663, %v4094
        %v4117 = vmul.f32 %v3667, %v4094
        %v4118 = vmul.f32 %v3671, %v4094
        %v4119 = vmul.f32 %v3675, %v4094
        %v4120 = vmul.f32 %v3679, %v4094
        %v4121 = vmul.f32 %v3683, %v4094
        %v4122 = vmul.f32 %v3687, %v4094
        %v4123 = vmul.f32 %v3691, %v4094
        %v4124 = vmul.f32 %v3695, %v4094
        %v4125 = vmul.f32 %v3699, %v4094
        %v4126 = vmul.f32 %v3703, %v4094
        %v4127 = vmul.f32 %v3707, %v4094
        %v4128 = vmul.f32 %v3711, %v4094
        %v4129 = vmul.f32 %v3715, %v4094
        %v4130 = vmul.f32 %v3719, %v4094
        %v4131 = vmul.f32 %v3723, %v4094
        %v4132 = vmul.f32 %v3727, %v4094
        %v4133 = vmul.f32 %v3731, %v4094
        %v4134 = vmul.f32 %v3735, %v4094
        %v4135 = vmul.f32 %v3739, %v4094
        %v4136 = vmul.f32 %v3743, %v4094
        %v4137 = vmul.f32 %v3747, %v4094
        %v4138 = vmul.f32 %v3751, %v4094
        %v4139 = vmul.f32 %v3755, %v4094
        %v4140 = vmul.f32 %v3759, %v4094
        %v4141 = vmul.f32 %v3763, %v4094
        %v4142 = vmul.f32 %v3767, %v4094
        %v4143 = vmul.f32 %v3771, %v4094
        %v4144 = vmul.f32 %v3775, %v4094
        %v4145 = vmul.f32 %v3779, %v4094
        %v4146 = vmul.f32 %v3783, %v4094
        %v4147 = vmul.f32 %v3787, %v4094
        %v4148 = vmul.f32 %v3791, %v4094
        %v4149 = vmul.f32 %v3795, %v4094
        %v4150 = vmul.f32 %v3799, %v4094
        %v4151 = vmul.f32 %v3803, %v4094
        %v4152 = vmul.f32 %v3807, %v4094
        %v4153 = vmul.f32 %v3811, %v4094
        %v4154 = vmul.f32 %v3815, %v4094
        %v4155 = vmul.f32 %v3819, %v4094
        %v4156 = vmul.f32 %v3823, %v4094
        %v4157 = vmul.f32 %v3827, %v4094
        %v4158 = vmul.f32 %v3831, %v4094
        %v4159 = vmul.f32 %v3835, %v4094
        %v4160 = vmul.f32 %v3839, %v4094
        %v4161 = vmul.f32 %v3843, %v4094
        %v4162 = vmul.f32 %v3847, %v4094
        %v4163 = vmul.f32 %v3851, %v4094
        %v4164 = vmul.f32 %v3855, %v4094
        %v4165 = vmul.f32 %v3859, %v4094
        %v4166 = vmul.f32 %v3863, %v4094
        %v4167 = vmul.f32 %v3867, %v4094
        %v4168 = vmul.f32 %v3871, %v4094
        %v4169 = vmul.f32 %v3875, %v4094
        %v4170 = vmul.f32 %v3879, %v4094
        %v4171 = vmul.f32 %v3883, %v4094
        %v4172 = vmul.f32 %v3887, %v4094
        %v4173 = vmul.f32 %v3891, %v4094
        %v4174 = vmul.f32 %v3895, %v4094
        %v4175 = vmul.f32 %v3899, %v4094
        %v4176 = vmul.f32 %v3903, %v4094
        %v4177 = vmul.f32 %v3907, %v4094
        %v4178 = vmul.f32 %v3911, %v4094
        %v4179 = vmul.f32 %v3915, %v4094
        %v4180 = vmul.f32 %v3919, %v4094
        %v4181 = vmul.f32 %v3923, %v4094
        %v4182 = vmul.f32 %v3927, %v4094
        %v4183 = vmul.f32 %v3931, %v4094
        %v4184 = vmul.f32 %v3935, %v4094
        %v4185 = vmul.f32 %v3939, %v4094
        %v4186 = vmul.f32 %v3943, %v4094
        %v4187 = vmul.f32 %v3947, %v4094
        %v4188 = vmul.f32 %v3951, %v4094
        %v4189 = vmul.f32 %v3955, %v4094
        %v4190 = vmul.f32 %v3959, %v4094
        %v4191 = vmul.f32 %v3963, %v4094
        %v4192 = vmul.f32 %v3967, %v4094
        %v4193 = vmul.f32 %v3971, %v4094
        %v4194 = vmul.f32 %v3975, %v4094
        %v4195 = vmul.f32 %v3979, %v4094
        %v4196 = vmul.f32 %v3983, %v4094
        %v4197 = vmul.f32 %v3987, %v4094
        %v4198 = vmul.f32 %v3991, %v4094
        %v4199 = vmul.f32 %v3995, %v4094
        %v4200 = vmul.f32 %v3999, %v4094
        %v4201 = vmul.f32 %v4003, %v4094
        %v4202 = vmul.f32 %v4007, %v4094
        %v4203 = vmul.f32 %v4011, %v4094
        %v4204 = vmul.f32 %v4015, %v4094
        %v4205 = vmul.f32 %v4019, %v4094
        %v4206 = vmul.f32 %v4023, %v4094
        %v4207 = vmul.f32 %v4027, %v4094
        %v4208 = vmul.f32 %v4031, %v4094
        %v4209 = vmul.f32 %v4035, %v4094
        %v4210 = vmul.f32 %v4039, %v4094
        %v4211 = vmul.f32 %v4043, %v4094
        %v4212 = vmul.f32 %v4047, %v4094
        %v4213 = vmul.f32 %v4051, %v4094
        %v4214 = vmul.f32 %v4055, %v4094
        %v4215 = vmul.f32 %v4059, %v4094
        %v4216 = vmul.f32 %v4063, %v4094
        %v4217 = vmul.f32 %v4067, %v4094
        %v4218 = vmul.f32 %v4071, %v4094
        %v4219 = vmul.f32 %v4075, %v4094
        %v4220 = vmul.f32 %v4079, %v4094
        %v4221 = vmul.f32 %v4083, %v4094
        %v4222 = vmul.f32 %v4087, %v4094
        %v4223 = vmul.f32 %v4091, %v4094
        %v4224 = vadd.f32 %v3453, %v4096
        %v4225 = vadd.f32 %v3454, %v4097
        %v4226 = vadd.f32 %v3455, %v4098
        %v4227 = vadd.f32 %v3456, %v4099
        %v4228 = vadd.f32 %v3457, %v4100
        %v4229 = vadd.f32 %v3458, %v4101
        %v4230 = vadd.f32 %v3459, %v4102
        %v4231 = vadd.f32 %v3460, %v4103
        %v4232 = vadd.f32 %v3461, %v4104
        %v4233 = vadd.f32 %v3462, %v4105
        %v4234 = vadd.f32 %v3463, %v4106
        %v4235 = vadd.f32 %v3464, %v4107
        %v4236 = vadd.f32 %v3465, %v4108
        %v4237 = vadd.f32 %v3466, %v4109
        %v4238 = vadd.f32 %v3467, %v4110
        %v4239 = vadd.f32 %v3468, %v4111
        %v4240 = vadd.f32 %v3469, %v4112
        %v4241 = vadd.f32 %v3470, %v4113
        %v4242 = vadd.f32 %v3471, %v4114
        %v4243 = vadd.f32 %v3472, %v4115
        %v4244 = vadd.f32 %v3473, %v4116
        %v4245 = vadd.f32 %v3474, %v4117
        %v4246 = vadd.f32 %v3475, %v4118
        %v4247 = vadd.f32 %v3476, %v4119
        %v4248 = vadd.f32 %v3477, %v4120
        %v4249 = vadd.f32 %v3478, %v4121
        %v4250 = vadd.f32 %v3479, %v4122
        %v4251 = vadd.f32 %v3480, %v4123
        %v4252 = vadd.f32 %v3481, %v4124
        %v4253 = vadd.f32 %v3482, %v4125
        %v4254 = vadd.f32 %v3483, %v4126
        %v4255 = vadd.f32 %v3484, %v4127
        %v4256 = vadd.f32 %v3485, %v4128
        %v4257 = vadd.f32 %v3486, %v4129
        %v4258 = vadd.f32 %v3487, %v4130
        %v4259 = vadd.f32 %v3488, %v4131
        %v4260 = vadd.f32 %v3489, %v4132
        %v4261 = vadd.f32 %v3490, %v4133
        %v4262 = vadd.f32 %v3491, %v4134
        %v4263 = vadd.f32 %v3492, %v4135
        %v4264 = vadd.f32 %v3493, %v4136
        %v4265 = vadd.f32 %v3494, %v4137
        %v4266 = vadd.f32 %v3495, %v4138
        %v4267 = vadd.f32 %v3496, %v4139
        %v4268 = vadd.f32 %v3497, %v4140
        %v4269 = vadd.f32 %v3498, %v4141
        %v4270 = vadd.f32 %v3499, %v4142
        %v4271 = vadd.f32 %v3500, %v4143
        %v4272 = vadd.f32 %v3501, %v4144
        %v4273 = vadd.f32 %v3502, %v4145
        %v4274 = vadd.f32 %v3503, %v4146
        %v4275 = vadd.f32 %v3504, %v4147
        %v4276 = vadd.f32 %v3505, %v4148
        %v4277 = vadd.f32 %v3506, %v4149
        %v4278 = vadd.f32 %v3507, %v4150
        %v4279 = vadd.f32 %v3508, %v4151
        %v4280 = vadd.f32 %v3509, %v4152
        %v4281 = vadd.f32 %v3510, %v4153
        %v4282 = vadd.f32 %v3511, %v4154
        %v4283 = vadd.f32 %v3512, %v4155
        %v4284 = vadd.f32 %v3513, %v4156
        %v4285 = vadd.f32 %v3514, %v4157
        %v4286 = vadd.f32 %v3515, %v4158
        %v4287 = vadd.f32 %v3516, %v4159
        %v4288 = vadd.f32 %v3517, %v4160
        %v4289 = vadd.f32 %v3518, %v4161
        %v4290 = vadd.f32 %v3519, %v4162
        %v4291 = vadd.f32 %v3520, %v4163
        %v4292 = vadd.f32 %v3521, %v4164
        %v4293 = vadd.f32 %v3522, %v4165
        %v4294 = vadd.f32 %v3523, %v4166
        %v4295 = vadd.f32 %v3524, %v4167
        %v4296 = vadd.f32 %v3525, %v4168
        %v4297 = vadd.f32 %v3526, %v4169
        %v4298 = vadd.f32 %v3527, %v4170
        %v4299 = vadd.f32 %v3528, %v4171
        %v4300 = vadd.f32 %v3529, %v4172
        %v4301 = vadd.f32 %v3530, %v4173
        %v4302 = vadd.f32 %v3531, %v4174
        %v4303 = vadd.f32 %v3532, %v4175
        %v4304 = vadd.f32 %v3533, %v4176
        %v4305 = vadd.f32 %v3534, %v4177
        %v4306 = vadd.f32 %v3535, %v4178
        %v4307 = vadd.f32 %v3536, %v4179
        %v4308 = vadd.f32 %v3537, %v4180
        %v4309 = vadd.f32 %v3538, %v4181
        %v4310 = vadd.f32 %v3539, %v4182
        %v4311 = vadd.f32 %v3540, %v4183
        %v4312 = vadd.f32 %v3541, %v4184
        %v4313 = vadd.f32 %v3542, %v4185
        %v4314 = vadd.f32 %v3543, %v4186
        %v4315 = vadd.f32 %v3544, %v4187
        %v4316 = vadd.f32 %v3545, %v4188
        %v4317 = vadd.f32 %v3546, %v4189
        %v4318 = vadd.f32 %v3547, %v4190
        %v4319 = vadd.f32 %v3548, %v4191
        %v4320 = vadd.f32 %v3549, %v4192
        %v4321 = vadd.f32 %v3550, %v4193
        %v4322 = vadd.f32 %v3551, %v4194
        %v4323 = vadd.f32 %v3552, %v4195
        %v4324 = vadd.f32 %v3553, %v4196
        %v4325 = vadd.f32 %v3554, %v4197
        %v4326 = vadd.f32 %v3555, %v4198
        %v4327 = vadd.f32 %v3556, %v4199
        %v4328 = vadd.f32 %v3557, %v4200
        %v4329 = vadd.f32 %v3558, %v4201
        %v4330 = vadd.f32 %v3559, %v4202
        %v4331 = vadd.f32 %v3560, %v4203
        %v4332 = vadd.f32 %v3561, %v4204
        %v4333 = vadd.f32 %v3562, %v4205
        %v4334 = vadd.f32 %v3563, %v4206
        %v4335 = vadd.f32 %v3564, %v4207
        %v4336 = vadd.f32 %v3565, %v4208
        %v4337 = vadd.f32 %v3566, %v4209
        %v4338 = vadd.f32 %v3567, %v4210
        %v4339 = vadd.f32 %v3568, %v4211
        %v4340 = vadd.f32 %v3569, %v4212
        %v4341 = vadd.f32 %v3570, %v4213
        %v4342 = vadd.f32 %v3571, %v4214
        %v4343 = vadd.f32 %v3572, %v4215
        %v4344 = vadd.f32 %v3573, %v4216
        %v4345 = vadd.f32 %v3574, %v4217
        %v4346 = vadd.f32 %v3575, %v4218
        %v4347 = vadd.f32 %v3576, %v4219
        %v4348 = vadd.f32 %v3577, %v4220
        %v4349 = vadd.f32 %v3578, %v4221
        %v4350 = vadd.f32 %v3579, %v4222
        %v4351 = vadd.f32 %v3580, %v4223
        %v4416 = vperm.slane %v1975, 0
        %v4417 = vperm.slane %v1976, 0
        %v4418 = vperm.slane %v1977, 0
        %v4419 = vperm.slane %v1978, 0
        %v4420 = vperm.slane %v1979, 0
        %v4421 = vperm.slane %v1980, 0
        %v4422 = vperm.slane %v1981, 0
        %v4423 = vperm.slane %v1982, 0
        %v4424 = vperm.slane %v1983, 0
        %v4425 = vperm.slane %v1984, 0
        %v4426 = vperm.slane %v1985, 0
        %v4427 = vperm.slane %v1986, 0
        %v4428 = vperm.slane %v1987, 0
        %v4429 = vperm.slane %v1988, 0
        %v4430 = vperm.slane %v1989, 0
        %v4431 = vperm.slane %v1990, 0
        %v4432 = vperm.slane %v1991, 0
        %v4433 = vperm.slane %v1992, 0
        %v4434 = vperm.slane %v1993, 0
        %v4435 = vperm.slane %v1994, 0
        %v4436 = vperm.slane %v1995, 0
        %v4437 = vperm.slane %v1996, 0
        %v4438 = vperm.slane %v1997, 0
        %v4439 = vperm.slane %v1998, 0
        %v4440 = vperm.slane %v1999, 0
        %v4441 = vperm.slane %v2000, 0
        %v4442 = vperm.slane %v2001, 0
        %v4443 = vperm.slane %v2002, 0
        %v4444 = vperm.slane %v2003, 0
        %v4445 = vperm.slane %v2004, 0
        %v4446 = vperm.slane %v2005, 0
        %v4447 = vperm.slane %v2006, 0
        %v4448 = vperm.slane %v2007, 0
        %v4449 = vperm.slane %v2008, 0
        %v4450 = vperm.slane %v2009, 0
        %v4451 = vperm.slane %v2010, 0
        %v4452 = vperm.slane %v2011, 0
        %v4453 = vperm.slane %v2012, 0
        %v4454 = vperm.slane %v2013, 0
        %v4455 = vperm.slane %v2014, 0
        %v4456 = vperm.slane %v2015, 0
        %v4457 = vperm.slane %v2016, 0
        %v4458 = vperm.slane %v2017, 0
        %v4459 = vperm.slane %v2018, 0
        %v4460 = vperm.slane %v2019, 0
        %v4461 = vperm.slane %v2020, 0
        %v4462 = vperm.slane %v2021, 0
        %v4463 = vperm.slane %v2022, 0
        %v4464 = vperm.slane %v2023, 0
        %v4465 = vperm.slane %v2024, 0
        %v4466 = vperm.slane %v2025, 0
        %v4467 = vperm.slane %v2026, 0
        %v4468 = vperm.slane %v2027, 0
        %v4469 = vperm.slane %v2028, 0
        %v4470 = vperm.slane %v2029, 0
        %v4471 = vperm.slane %v2030, 0
        %v4472 = vperm.slane %v2031, 0
        %v4473 = vperm.slane %v2032, 0
        %v4474 = vperm.slane %v2033, 0
        %v4475 = vperm.slane %v2034, 0
        %v4476 = vperm.slane %v2035, 0
        %v4477 = vperm.slane %v2036, 0
        %v4478 = vperm.slane %v2037, 0
        %v4479 = vperm.slane %v2038, 0
        %v4544 = vadd.f32 %v4224, %v4416
        %v4545 = vadd.f32 %v4225, %v4416
        %v4546 = vadd.f32 %v4226, %v4417
        %v4547 = vadd.f32 %v4227, %v4417
        %v4548 = vadd.f32 %v4228, %v4418
        %v4549 = vadd.f32 %v4229, %v4418
        %v4550 = vadd.f32 %v4230, %v4419
        %v4551 = vadd.f32 %v4231, %v4419
        %v4552 = vadd.f32 %v4232, %v4420
        %v4553 = vadd.f32 %v4233, %v4420
        %v4554 = vadd.f32 %v4234, %v4421
        %v4555 = vadd.f32 %v4235, %v4421
        %v4556 = vadd.f32 %v4236, %v4422
        %v4557 = vadd.f32 %v4237, %v4422
        %v4558 = vadd.f32 %v4238, %v4423
        %v4559 = vadd.f32 %v4239, %v4423
        %v4560 = vadd.f32 %v4240, %v4424
        %v4561 = vadd.f32 %v4241, %v4424
        %v4562 = vadd.f32 %v4242, %v4425
        %v4563 = vadd.f32 %v4243, %v4425
        %v4564 = vadd.f32 %v4244, %v4426
        %v4565 = vadd.f32 %v4245, %v4426
        %v4566 = vadd.f32 %v4246, %v4427
        %v4567 = vadd.f32 %v4247, %v4427
        %v4568 = vadd.f32 %v4248, %v4428
        %v4569 = vadd.f32 %v4249, %v4428
        %v4570 = vadd.f32 %v4250, %v4429
        %v4571 = vadd.f32 %v4251, %v4429
        %v4572 = vadd.f32 %v4252, %v4430
        %v4573 = vadd.f32 %v4253, %v4430
        %v4574 = vadd.f32 %v4254, %v4431
        %v4575 = vadd.f32 %v4255, %v4431
        %v4576 = vadd.f32 %v4256, %v4432
        %v4577 = vadd.f32 %v4257, %v4432
        %v4578 = vadd.f32 %v4258, %v4433
        %v4579 = vadd.f32 %v4259, %v4433
        %v4580 = vadd.f32 %v4260, %v4434
        %v4581 = vadd.f32 %v4261, %v4434
        %v4582 = vadd.f32 %v4262, %v4435
        %v4583 = vadd.f32 %v4263, %v4435
        %v4584 = vadd.f32 %v4264, %v4436
        %v4585 = vadd.f32 %v4265, %v4436
        %v4586 = vadd.f32 %v4266, %v4437
        %v4587 = vadd.f32 %v4267, %v4437
        %v4588 = vadd.f32 %v4268, %v4438
        %v4589 = vadd.f32 %v4269, %v4438
        %v4590 = vadd.f32 %v4270, %v4439
        %v4591 = vadd.f32 %v4271, %v4439
        %v4592 = vadd.f32 %v4272, %v4440
        %v4593 = vadd.f32 %v4273, %v4440
        %v4594 = vadd.f32 %v4274, %v4441
        %v4595 = vadd.f32 %v4275, %v4441
        %v4596 = vadd.f32 %v4276, %v4442
        %v4597 = vadd.f32 %v4277, %v4442
        %v4598 = vadd.f32 %v4278, %v4443
        %v4599 = vadd.f32 %v4279, %v4443
        %v4600 = vadd.f32 %v4280, %v4444
        %v4601 = vadd.f32 %v4281, %v4444
        %v4602 = vadd.f32 %v4282, %v4445
        %v4603 = vadd.f32 %v4283, %v4445
        %v4604 = vadd.f32 %v4284, %v4446
        %v4605 = vadd.f32 %v4285, %v4446
        %v4606 = vadd.f32 %v4286, %v4447
        %v4607 = vadd.f32 %v4287, %v4447
        %v4608 = vadd.f32 %v4288, %v4448
        %v4609 = vadd.f32 %v4289, %v4448
        %v4610 = vadd.f32 %v4290, %v4449
        %v4611 = vadd.f32 %v4291, %v4449
        %v4612 = vadd.f32 %v4292, %v4450
        %v4613 = vadd.f32 %v4293, %v4450
        %v4614 = vadd.f32 %v4294, %v4451
        %v4615 = vadd.f32 %v4295, %v4451
        %v4616 = vadd.f32 %v4296, %v4452
        %v4617 = vadd.f32 %v4297, %v4452
        %v4618 = vadd.f32 %v4298, %v4453
        %v4619 = vadd.f32 %v4299, %v4453
        %v4620 = vadd.f32 %v4300, %v4454
        %v4621 = vadd.f32 %v4301, %v4454
        %v4622 = vadd.f32 %v4302, %v4455
        %v4623 = vadd.f32 %v4303, %v4455
        %v4624 = vadd.f32 %v4304, %v4456
        %v4625 = vadd.f32 %v4305, %v4456
        %v4626 = vadd.f32 %v4306, %v4457
        %v4627 = vadd.f32 %v4307, %v4457
        %v4628 = vadd.f32 %v4308, %v4458
        %v4629 = vadd.f32 %v4309, %v4458
        %v4630 = vadd.f32 %v4310, %v4459
        %v4631 = vadd.f32 %v4311, %v4459
        %v4632 = vadd.f32 %v4312, %v4460
        %v4633 = vadd.f32 %v4313, %v4460
        %v4634 = vadd.f32 %v4314, %v4461
        %v4635 = vadd.f32 %v4315, %v4461
        %v4636 = vadd.f32 %v4316, %v4462
        %v4637 = vadd.f32 %v4317, %v4462
        %v4638 = vadd.f32 %v4318, %v4463
        %v4639 = vadd.f32 %v4319, %v4463
        %v4640 = vadd.f32 %v4320, %v4464
        %v4641 = vadd.f32 %v4321, %v4464
        %v4642 = vadd.f32 %v4322, %v4465
        %v4643 = vadd.f32 %v4323, %v4465
        %v4644 = vadd.f32 %v4324, %v4466
        %v4645 = vadd.f32 %v4325, %v4466
        %v4646 = vadd.f32 %v4326, %v4467
        %v4647 = vadd.f32 %v4327, %v4467
        %v4648 = vadd.f32 %v4328, %v4468
        %v4649 = vadd.f32 %v4329, %v4468
        %v4650 = vadd.f32 %v4330, %v4469
        %v4651 = vadd.f32 %v4331, %v4469
        %v4652 = vadd.f32 %v4332, %v4470
        %v4653 = vadd.f32 %v4333, %v4470
        %v4654 = vadd.f32 %v4334, %v4471
        %v4655 = vadd.f32 %v4335, %v4471
        %v4656 = vadd.f32 %v4336, %v4472
        %v4657 = vadd.f32 %v4337, %v4472
        %v4658 = vadd.f32 %v4338, %v4473
        %v4659 = vadd.f32 %v4339, %v4473
        %v4660 = vadd.f32 %v4340, %v4474
        %v4661 = vadd.f32 %v4341, %v4474
        %v4662 = vadd.f32 %v4342, %v4475
        %v4663 = vadd.f32 %v4343, %v4475
        %v4664 = vadd.f32 %v4344, %v4476
        %v4665 = vadd.f32 %v4345, %v4476
        %v4666 = vadd.f32 %v4346, %v4477
        %v4667 = vadd.f32 %v4347, %v4477
        %v4668 = vadd.f32 %v4348, %v4478
        %v4669 = vadd.f32 %v4349, %v4478
        %v4670 = vadd.f32 %v4350, %v4479
        %v4671 = vadd.f32 %v4351, %v4479
        %v4672 = vld [vmem:[%s5] sm:$0x1]
        %4674 = vset.pattern.permute.xlu0 0
        %4675 = vperm.xlu0 %4674, %v561
        %v4676 = vpop.permute.xlu0 %4675
        %4679 = vset.pattern.permute.xlu0 0
        %4680 = vperm.xlu0 %4679, %v562
        %v4681 = vpop.permute.xlu0 %4680
        %4684 = vset.pattern.permute.xlu0 0
        %4685 = vperm.xlu0 %4684, %v563
        %v4686 = vpop.permute.xlu0 %4685
        %4689 = vset.pattern.permute.xlu0 0
        %4690 = vperm.xlu0 %4689, %v564
        %v4691 = vpop.permute.xlu0 %4690
        %4694 = vset.pattern.permute.xlu0 0
        %4695 = vperm.xlu0 %4694, %v565
        %v4696 = vpop.permute.xlu0 %4695
        %4699 = vset.pattern.permute.xlu0 0
        %4700 = vperm.xlu0 %4699, %v566
        %v4701 = vpop.permute.xlu0 %4700
        %4704 = vset.pattern.permute.xlu0 0
        %4705 = vperm.xlu0 %4704, %v567
        %v4706 = vpop.permute.xlu0 %4705
        %4709 = vset.pattern.permute.xlu0 0
        %4710 = vperm.xlu0 %4709, %v568
        %v4711 = vpop.permute.xlu0 %4710
        %4714 = vset.pattern.permute.xlu0 0
        %4715 = vperm.xlu0 %4714, %v569
        %v4716 = vpop.permute.xlu0 %4715
        %4719 = vset.pattern.permute.xlu0 0
        %4720 = vperm.xlu0 %4719, %v570
        %v4721 = vpop.permute.xlu0 %4720
        %4724 = vset.pattern.permute.xlu0 0
        %4725 = vperm.xlu0 %4724, %v571
        %v4726 = vpop.permute.xlu0 %4725
        %4729 = vset.pattern.permute.xlu0 0
        %4730 = vperm.xlu0 %4729, %v572
        %v4731 = vpop.permute.xlu0 %4730
        %4734 = vset.pattern.permute.xlu0 0
        %4735 = vperm.xlu0 %4734, %v573
        %v4736 = vpop.permute.xlu0 %4735
        %4739 = vset.pattern.permute.xlu0 0
        %4740 = vperm.xlu0 %4739, %v574
        %v4741 = vpop.permute.xlu0 %4740
        %4744 = vset.pattern.permute.xlu0 0
        %4745 = vperm.xlu0 %4744, %v575
        %v4746 = vpop.permute.xlu0 %4745
        %4749 = vset.pattern.permute.xlu0 0
        %4750 = vperm.xlu0 %4749, %v576
        %v4751 = vpop.permute.xlu0 %4750
        %4754 = vset.pattern.permute.xlu0 0
        %4755 = vperm.xlu0 %4754, %v577
        %v4756 = vpop.permute.xlu0 %4755
        %4759 = vset.pattern.permute.xlu0 0
        %4760 = vperm.xlu0 %4759, %v578
        %v4761 = vpop.permute.xlu0 %4760
        %4764 = vset.pattern.permute.xlu0 0
        %4765 = vperm.xlu0 %4764, %v579
        %v4766 = vpop.permute.xlu0 %4765
        %4769 = vset.pattern.permute.xlu0 0
        %4770 = vperm.xlu0 %4769, %v580
        %v4771 = vpop.permute.xlu0 %4770
        %4774 = vset.pattern.permute.xlu0 0
        %4775 = vperm.xlu0 %4774, %v581
        %v4776 = vpop.permute.xlu0 %4775
        %4779 = vset.pattern.permute.xlu0 0
        %4780 = vperm.xlu0 %4779, %v582
        %v4781 = vpop.permute.xlu0 %4780
        %4784 = vset.pattern.permute.xlu0 0
        %4785 = vperm.xlu0 %4784, %v583
        %v4786 = vpop.permute.xlu0 %4785
        %4789 = vset.pattern.permute.xlu0 0
        %4790 = vperm.xlu0 %4789, %v584
        %v4791 = vpop.permute.xlu0 %4790
        %4794 = vset.pattern.permute.xlu0 0
        %4795 = vperm.xlu0 %4794, %v585
        %v4796 = vpop.permute.xlu0 %4795
        %4799 = vset.pattern.permute.xlu0 0
        %4800 = vperm.xlu0 %4799, %v586
        %v4801 = vpop.permute.xlu0 %4800
        %4804 = vset.pattern.permute.xlu0 0
        %4805 = vperm.xlu0 %4804, %v587
        %v4806 = vpop.permute.xlu0 %4805
        %4809 = vset.pattern.permute.xlu0 0
        %4810 = vperm.xlu0 %4809, %v588
        %v4811 = vpop.permute.xlu0 %4810
        %4814 = vset.pattern.permute.xlu0 0
        %4815 = vperm.xlu0 %4814, %v589
        %v4816 = vpop.permute.xlu0 %4815
        %4819 = vset.pattern.permute.xlu0 0
        %4820 = vperm.xlu0 %4819, %v590
        %v4821 = vpop.permute.xlu0 %4820
        %4824 = vset.pattern.permute.xlu0 0
        %4825 = vperm.xlu0 %4824, %v591
        %v4826 = vpop.permute.xlu0 %4825
        %4829 = vset.pattern.permute.xlu0 0
        %4830 = vperm.xlu0 %4829, %v592
        %v4831 = vpop.permute.xlu0 %4830
        %4834 = vset.pattern.permute.xlu0 0
        %4835 = vperm.xlu0 %4834, %v593
        %v4836 = vpop.permute.xlu0 %4835
        %4839 = vset.pattern.permute.xlu0 0
        %4840 = vperm.xlu0 %4839, %v594
        %v4841 = vpop.permute.xlu0 %4840
        %4844 = vset.pattern.permute.xlu0 0
        %4845 = vperm.xlu0 %4844, %v595
        %v4846 = vpop.permute.xlu0 %4845
        %4849 = vset.pattern.permute.xlu0 0
        %4850 = vperm.xlu0 %4849, %v596
        %v4851 = vpop.permute.xlu0 %4850
        %4854 = vset.pattern.permute.xlu0 0
        %4855 = vperm.xlu0 %4854, %v597
        %v4856 = vpop.permute.xlu0 %4855
        %4859 = vset.pattern.permute.xlu0 0
        %4860 = vperm.xlu0 %4859, %v598
        %v4861 = vpop.permute.xlu0 %4860
        %4864 = vset.pattern.permute.xlu0 0
        %4865 = vperm.xlu0 %4864, %v599
        %v4866 = vpop.permute.xlu0 %4865
        %4869 = vset.pattern.permute.xlu0 0
        %4870 = vperm.xlu0 %4869, %v600
        %v4871 = vpop.permute.xlu0 %4870
        %4874 = vset.pattern.permute.xlu0 0
        %4875 = vperm.xlu0 %4874, %v601
        %v4876 = vpop.permute.xlu0 %4875
        %4879 = vset.pattern.permute.xlu0 0
        %4880 = vperm.xlu0 %4879, %v602
        %v4881 = vpop.permute.xlu0 %4880
        %4884 = vset.pattern.permute.xlu0 0
        %4885 = vperm.xlu0 %4884, %v603
        %v4886 = vpop.permute.xlu0 %4885
        %4889 = vset.pattern.permute.xlu0 0
        %4890 = vperm.xlu0 %4889, %v604
        %v4891 = vpop.permute.xlu0 %4890
        %4894 = vset.pattern.permute.xlu0 0
        %4895 = vperm.xlu0 %4894, %v605
        %v4896 = vpop.permute.xlu0 %4895
        %4899 = vset.pattern.permute.xlu0 0
        %4900 = vperm.xlu0 %4899, %v606
        %v4901 = vpop.permute.xlu0 %4900
        %4904 = vset.pattern.permute.xlu0 0
        %4905 = vperm.xlu0 %4904, %v607
        %v4906 = vpop.permute.xlu0 %4905
        %4909 = vset.pattern.permute.xlu0 0
        %4910 = vperm.xlu0 %4909, %v608
        %v4911 = vpop.permute.xlu0 %4910
        %4914 = vset.pattern.permute.xlu0 0
        %4915 = vperm.xlu0 %4914, %v609
        %v4916 = vpop.permute.xlu0 %4915
        %4919 = vset.pattern.permute.xlu0 0
        %4920 = vperm.xlu0 %4919, %v610
        %v4921 = vpop.permute.xlu0 %4920
        %4924 = vset.pattern.permute.xlu0 0
        %4925 = vperm.xlu0 %4924, %v611
        %v4926 = vpop.permute.xlu0 %4925
        %4929 = vset.pattern.permute.xlu0 0
        %4930 = vperm.xlu0 %4929, %v612
        %v4931 = vpop.permute.xlu0 %4930
        %4934 = vset.pattern.permute.xlu0 0
        %4935 = vperm.xlu0 %4934, %v613
        %v4936 = vpop.permute.xlu0 %4935
        %4939 = vset.pattern.permute.xlu0 0
        %4940 = vperm.xlu0 %4939, %v614
        %v4941 = vpop.permute.xlu0 %4940
        %4944 = vset.pattern.permute.xlu0 0
        %4945 = vperm.xlu0 %4944, %v615
        %v4946 = vpop.permute.xlu0 %4945
        %4949 = vset.pattern.permute.xlu0 0
        %4950 = vperm.xlu0 %4949, %v616
        %v4951 = vpop.permute.xlu0 %4950
        %4954 = vset.pattern.permute.xlu0 0
        %4955 = vperm.xlu0 %4954, %v617
        %v4956 = vpop.permute.xlu0 %4955
        %4959 = vset.pattern.permute.xlu0 0
        %4960 = vperm.xlu0 %4959, %v618
        %v4961 = vpop.permute.xlu0 %4960
        %4964 = vset.pattern.permute.xlu0 0
        %4965 = vperm.xlu0 %4964, %v619
        %v4966 = vpop.permute.xlu0 %4965
        %4969 = vset.pattern.permute.xlu0 0
        %4970 = vperm.xlu0 %4969, %v620
        %v4971 = vpop.permute.xlu0 %4970
        %4974 = vset.pattern.permute.xlu0 0
        %4975 = vperm.xlu0 %4974, %v621
        %v4976 = vpop.permute.xlu0 %4975
        %4979 = vset.pattern.permute.xlu0 0
        %4980 = vperm.xlu0 %4979, %v622
        %v4981 = vpop.permute.xlu0 %4980
        %4984 = vset.pattern.permute.xlu0 0
        %4985 = vperm.xlu0 %4984, %v623
        %v4986 = vpop.permute.xlu0 %4985
        %4989 = vset.pattern.permute.xlu0 0
        %4990 = vperm.xlu0 %4989, %v624
        %v4991 = vpop.permute.xlu0 %4990
        %4994 = vset.pattern.permute.xlu0 0
        %4995 = vperm.xlu0 %4994, %v625
        %v4996 = vpop.permute.xlu0 %4995
        %4999 = vset.pattern.permute.xlu0 0
        %5000 = vperm.xlu0 %4999, %v626
        %v5001 = vpop.permute.xlu0 %5000
        %5004 = vset.pattern.permute.xlu0 0
        %5005 = vperm.xlu0 %5004, %v627
        %v5006 = vpop.permute.xlu0 %5005
        %5009 = vset.pattern.permute.xlu0 0
        %5010 = vperm.xlu0 %5009, %v628
        %v5011 = vpop.permute.xlu0 %5010
        %5014 = vset.pattern.permute.xlu0 0
        %5015 = vperm.xlu0 %5014, %v629
        %v5016 = vpop.permute.xlu0 %5015
        %5019 = vset.pattern.permute.xlu0 0
        %5020 = vperm.xlu0 %5019, %v630
        %v5021 = vpop.permute.xlu0 %5020
        %5024 = vset.pattern.permute.xlu0 0
        %5025 = vperm.xlu0 %5024, %v631
        %v5026 = vpop.permute.xlu0 %5025
        %5029 = vset.pattern.permute.xlu0 0
        %5030 = vperm.xlu0 %5029, %v632
        %v5031 = vpop.permute.xlu0 %5030
        %5034 = vset.pattern.permute.xlu0 0
        %5035 = vperm.xlu0 %5034, %v633
        %v5036 = vpop.permute.xlu0 %5035
        %5039 = vset.pattern.permute.xlu0 0
        %5040 = vperm.xlu0 %5039, %v634
        %v5041 = vpop.permute.xlu0 %5040
        %5044 = vset.pattern.permute.xlu0 0
        %5045 = vperm.xlu0 %5044, %v635
        %v5046 = vpop.permute.xlu0 %5045
        %5049 = vset.pattern.permute.xlu0 0
        %5050 = vperm.xlu0 %5049, %v636
        %v5051 = vpop.permute.xlu0 %5050
        %5054 = vset.pattern.permute.xlu0 0
        %5055 = vperm.xlu0 %5054, %v637
        %v5056 = vpop.permute.xlu0 %5055
        %5059 = vset.pattern.permute.xlu0 0
        %5060 = vperm.xlu0 %5059, %v638
        %v5061 = vpop.permute.xlu0 %5060
        %5064 = vset.pattern.permute.xlu0 0
        %5065 = vperm.xlu0 %5064, %v639
        %v5066 = vpop.permute.xlu0 %5065
        %5069 = vset.pattern.permute.xlu0 0
        %5070 = vperm.xlu0 %5069, %v640
        %v5071 = vpop.permute.xlu0 %5070
        %5074 = vset.pattern.permute.xlu0 0
        %5075 = vperm.xlu0 %5074, %v641
        %v5076 = vpop.permute.xlu0 %5075
        %5079 = vset.pattern.permute.xlu0 0
        %5080 = vperm.xlu0 %5079, %v642
        %v5081 = vpop.permute.xlu0 %5080
        %5084 = vset.pattern.permute.xlu0 0
        %5085 = vperm.xlu0 %5084, %v643
        %v5086 = vpop.permute.xlu0 %5085
        %5089 = vset.pattern.permute.xlu0 0
        %5090 = vperm.xlu0 %5089, %v644
        %v5091 = vpop.permute.xlu0 %5090
        %5094 = vset.pattern.permute.xlu0 0
        %5095 = vperm.xlu0 %5094, %v645
        %v5096 = vpop.permute.xlu0 %5095
        %5099 = vset.pattern.permute.xlu0 0
        %5100 = vperm.xlu0 %5099, %v646
        %v5101 = vpop.permute.xlu0 %5100
        %5104 = vset.pattern.permute.xlu0 0
        %5105 = vperm.xlu0 %5104, %v647
        %v5106 = vpop.permute.xlu0 %5105
        %5109 = vset.pattern.permute.xlu0 0
        %5110 = vperm.xlu0 %5109, %v648
        %v5111 = vpop.permute.xlu0 %5110
        %5114 = vset.pattern.permute.xlu0 0
        %5115 = vperm.xlu0 %5114, %v649
        %v5116 = vpop.permute.xlu0 %5115
        %5119 = vset.pattern.permute.xlu0 0
        %5120 = vperm.xlu0 %5119, %v650
        %v5121 = vpop.permute.xlu0 %5120
        %5124 = vset.pattern.permute.xlu0 0
        %5125 = vperm.xlu0 %5124, %v651
        %v5126 = vpop.permute.xlu0 %5125
        %5129 = vset.pattern.permute.xlu0 0
        %5130 = vperm.xlu0 %5129, %v652
        %v5131 = vpop.permute.xlu0 %5130
        %5134 = vset.pattern.permute.xlu0 0
        %5135 = vperm.xlu0 %5134, %v653
        %v5136 = vpop.permute.xlu0 %5135
        %5139 = vset.pattern.permute.xlu0 0
        %5140 = vperm.xlu0 %5139, %v654
        %v5141 = vpop.permute.xlu0 %5140
        %5144 = vset.pattern.permute.xlu0 0
        %5145 = vperm.xlu0 %5144, %v655
        %v5146 = vpop.permute.xlu0 %5145
        %5149 = vset.pattern.permute.xlu0 0
        %5150 = vperm.xlu0 %5149, %v656
        %v5151 = vpop.permute.xlu0 %5150
        %5154 = vset.pattern.permute.xlu0 0
        %5155 = vperm.xlu0 %5154, %v657
        %v5156 = vpop.permute.xlu0 %5155
        %5159 = vset.pattern.permute.xlu0 0
        %5160 = vperm.xlu0 %5159, %v658
        %v5161 = vpop.permute.xlu0 %5160
        %5164 = vset.pattern.permute.xlu0 0
        %5165 = vperm.xlu0 %5164, %v659
        %v5166 = vpop.permute.xlu0 %5165
        %5169 = vset.pattern.permute.xlu0 0
        %5170 = vperm.xlu0 %5169, %v660
        %v5171 = vpop.permute.xlu0 %5170
        %5174 = vset.pattern.permute.xlu0 0
        %5175 = vperm.xlu0 %5174, %v661
        %v5176 = vpop.permute.xlu0 %5175
        %5179 = vset.pattern.permute.xlu0 0
        %5180 = vperm.xlu0 %5179, %v662
        %v5181 = vpop.permute.xlu0 %5180
        %5184 = vset.pattern.permute.xlu0 0
        %5185 = vperm.xlu0 %5184, %v663
        %v5186 = vpop.permute.xlu0 %5185
        %5189 = vset.pattern.permute.xlu0 0
        %5190 = vperm.xlu0 %5189, %v664
        %v5191 = vpop.permute.xlu0 %5190
        %5194 = vset.pattern.permute.xlu0 0
        %5195 = vperm.xlu0 %5194, %v665
        %v5196 = vpop.permute.xlu0 %5195
        %5199 = vset.pattern.permute.xlu0 0
        %5200 = vperm.xlu0 %5199, %v666
        %v5201 = vpop.permute.xlu0 %5200
        %5204 = vset.pattern.permute.xlu0 0
        %5205 = vperm.xlu0 %5204, %v667
        %v5206 = vpop.permute.xlu0 %5205
        %5209 = vset.pattern.permute.xlu0 0
        %5210 = vperm.xlu0 %5209, %v668
        %v5211 = vpop.permute.xlu0 %5210
        %5214 = vset.pattern.permute.xlu0 0
        %5215 = vperm.xlu0 %5214, %v669
        %v5216 = vpop.permute.xlu0 %5215
        %5219 = vset.pattern.permute.xlu0 0
        %5220 = vperm.xlu0 %5219, %v670
        %v5221 = vpop.permute.xlu0 %5220
        %5224 = vset.pattern.permute.xlu0 0
        %5225 = vperm.xlu0 %5224, %v671
        %v5226 = vpop.permute.xlu0 %5225
        %5229 = vset.pattern.permute.xlu0 0
        %5230 = vperm.xlu0 %5229, %v672
        %v5231 = vpop.permute.xlu0 %5230
        %5234 = vset.pattern.permute.xlu0 0
        %5235 = vperm.xlu0 %5234, %v673
        %v5236 = vpop.permute.xlu0 %5235
        %5239 = vset.pattern.permute.xlu0 0
        %5240 = vperm.xlu0 %5239, %v674
        %v5241 = vpop.permute.xlu0 %5240
        %5244 = vset.pattern.permute.xlu0 0
        %5245 = vperm.xlu0 %5244, %v675
        %v5246 = vpop.permute.xlu0 %5245
        %5249 = vset.pattern.permute.xlu0 0
        %5250 = vperm.xlu0 %5249, %v676
        %v5251 = vpop.permute.xlu0 %5250
        %5254 = vset.pattern.permute.xlu0 0
        %5255 = vperm.xlu0 %5254, %v677
        %v5256 = vpop.permute.xlu0 %5255
        %5259 = vset.pattern.permute.xlu0 0
        %5260 = vperm.xlu0 %5259, %v678
        %v5261 = vpop.permute.xlu0 %5260
        %5264 = vset.pattern.permute.xlu0 0
        %5265 = vperm.xlu0 %5264, %v679
        %v5266 = vpop.permute.xlu0 %5265
        %5269 = vset.pattern.permute.xlu0 0
        %5270 = vperm.xlu0 %5269, %v680
        %v5271 = vpop.permute.xlu0 %5270
        %5274 = vset.pattern.permute.xlu0 0
        %5275 = vperm.xlu0 %5274, %v681
        %v5276 = vpop.permute.xlu0 %5275
        %5279 = vset.pattern.permute.xlu0 0
        %5280 = vperm.xlu0 %5279, %v682
        %v5281 = vpop.permute.xlu0 %5280
        %5284 = vset.pattern.permute.xlu0 0
        %5285 = vperm.xlu0 %5284, %v683
        %v5286 = vpop.permute.xlu0 %5285
        %5289 = vset.pattern.permute.xlu0 0
        %5290 = vperm.xlu0 %5289, %v684
        %v5291 = vpop.permute.xlu0 %5290
        %5294 = vset.pattern.permute.xlu0 0
        %5295 = vperm.xlu0 %5294, %v685
        %v5296 = vpop.permute.xlu0 %5295
        %5299 = vset.pattern.permute.xlu0 0
        %5300 = vperm.xlu0 %5299, %v686
        %v5301 = vpop.permute.xlu0 %5300
        %5304 = vset.pattern.permute.xlu0 0
        %5305 = vperm.xlu0 %5304, %v687
        %v5306 = vpop.permute.xlu0 %5305
        %5309 = vset.pattern.permute.xlu0 0
        %5310 = vperm.xlu0 %5309, %v688
        %v5311 = vpop.permute.xlu0 %5310
        %v5314 = vperm.slane %v4672, 0
        %v5316 = vmul.f32 %v4676, %v5314
        %v5317 = vmul.f32 %v4681, %v5314
        %v5318 = vmul.f32 %v4686, %v5314
        %v5319 = vmul.f32 %v4691, %v5314
        %v5320 = vmul.f32 %v4696, %v5314
        %v5321 = vmul.f32 %v4701, %v5314
        %v5322 = vmul.f32 %v4706, %v5314
        %v5323 = vmul.f32 %v4711, %v5314
        %v5324 = vmul.f32 %v4716, %v5314
        %v5325 = vmul.f32 %v4721, %v5314
        %v5326 = vmul.f32 %v4726, %v5314
        %v5327 = vmul.f32 %v4731, %v5314
        %v5328 = vmul.f32 %v4736, %v5314
        %v5329 = vmul.f32 %v4741, %v5314
        %v5330 = vmul.f32 %v4746, %v5314
        %v5331 = vmul.f32 %v4751, %v5314
        %v5332 = vmul.f32 %v4756, %v5314
        %v5333 = vmul.f32 %v4761, %v5314
        %v5334 = vmul.f32 %v4766, %v5314
        %v5335 = vmul.f32 %v4771, %v5314
        %v5336 = vmul.f32 %v4776, %v5314
        %v5337 = vmul.f32 %v4781, %v5314
        %v5338 = vmul.f32 %v4786, %v5314
        %v5339 = vmul.f32 %v4791, %v5314
        %v5340 = vmul.f32 %v4796, %v5314
        %v5341 = vmul.f32 %v4801, %v5314
        %v5342 = vmul.f32 %v4806, %v5314
        %v5343 = vmul.f32 %v4811, %v5314
        %v5344 = vmul.f32 %v4816, %v5314
        %v5345 = vmul.f32 %v4821, %v5314
        %v5346 = vmul.f32 %v4826, %v5314
        %v5347 = vmul.f32 %v4831, %v5314
        %v5348 = vmul.f32 %v4836, %v5314
        %v5349 = vmul.f32 %v4841, %v5314
        %v5350 = vmul.f32 %v4846, %v5314
        %v5351 = vmul.f32 %v4851, %v5314
        %v5352 = vmul.f32 %v4856, %v5314
        %v5353 = vmul.f32 %v4861, %v5314
        %v5354 = vmul.f32 %v4866, %v5314
        %v5355 = vmul.f32 %v4871, %v5314
        %v5356 = vmul.f32 %v4876, %v5314
        %v5357 = vmul.f32 %v4881, %v5314
        %v5358 = vmul.f32 %v4886, %v5314
        %v5359 = vmul.f32 %v4891, %v5314
        %v5360 = vmul.f32 %v4896, %v5314
        %v5361 = vmul.f32 %v4901, %v5314
        %v5362 = vmul.f32 %v4906, %v5314
        %v5363 = vmul.f32 %v4911, %v5314
        %v5364 = vmul.f32 %v4916, %v5314
        %v5365 = vmul.f32 %v4921, %v5314
        %v5366 = vmul.f32 %v4926, %v5314
        %v5367 = vmul.f32 %v4931, %v5314
        %v5368 = vmul.f32 %v4936, %v5314
        %v5369 = vmul.f32 %v4941, %v5314
        %v5370 = vmul.f32 %v4946, %v5314
        %v5371 = vmul.f32 %v4951, %v5314
        %v5372 = vmul.f32 %v4956, %v5314
        %v5373 = vmul.f32 %v4961, %v5314
        %v5374 = vmul.f32 %v4966, %v5314
        %v5375 = vmul.f32 %v4971, %v5314
        %v5376 = vmul.f32 %v4976, %v5314
        %v5377 = vmul.f32 %v4981, %v5314
        %v5378 = vmul.f32 %v4986, %v5314
        %v5379 = vmul.f32 %v4991, %v5314
        %v5380 = vmul.f32 %v4996, %v5314
        %v5381 = vmul.f32 %v5001, %v5314
        %v5382 = vmul.f32 %v5006, %v5314
        %v5383 = vmul.f32 %v5011, %v5314
        %v5384 = vmul.f32 %v5016, %v5314
        %v5385 = vmul.f32 %v5021, %v5314
        %v5386 = vmul.f32 %v5026, %v5314
        %v5387 = vmul.f32 %v5031, %v5314
        %v5388 = vmul.f32 %v5036, %v5314
        %v5389 = vmul.f32 %v5041, %v5314
        %v5390 = vmul.f32 %v5046, %v5314
        %v5391 = vmul.f32 %v5051, %v5314
        %v5392 = vmul.f32 %v5056, %v5314
        %v5393 = vmul.f32 %v5061, %v5314
        %v5394 = vmul.f32 %v5066, %v5314
        %v5395 = vmul.f32 %v5071, %v5314
        %v5396 = vmul.f32 %v5076, %v5314
        %v5397 = vmul.f32 %v5081, %v5314
        %v5398 = vmul.f32 %v5086, %v5314
        %v5399 = vmul.f32 %v5091, %v5314
        %v5400 = vmul.f32 %v5096, %v5314
        %v5401 = vmul.f32 %v5101, %v5314
        %v5402 = vmul.f32 %v5106, %v5314
        %v5403 = vmul.f32 %v5111, %v5314
        %v5404 = vmul.f32 %v5116, %v5314
        %v5405 = vmul.f32 %v5121, %v5314
        %v5406 = vmul.f32 %v5126, %v5314
        %v5407 = vmul.f32 %v5131, %v5314
        %v5408 = vmul.f32 %v5136, %v5314
        %v5409 = vmul.f32 %v5141, %v5314
        %v5410 = vmul.f32 %v5146, %v5314
        %v5411 = vmul.f32 %v5151, %v5314
        %v5412 = vmul.f32 %v5156, %v5314
        %v5413 = vmul.f32 %v5161, %v5314
        %v5414 = vmul.f32 %v5166, %v5314
        %v5415 = vmul.f32 %v5171, %v5314
        %v5416 = vmul.f32 %v5176, %v5314
        %v5417 = vmul.f32 %v5181, %v5314
        %v5418 = vmul.f32 %v5186, %v5314
        %v5419 = vmul.f32 %v5191, %v5314
        %v5420 = vmul.f32 %v5196, %v5314
        %v5421 = vmul.f32 %v5201, %v5314
        %v5422 = vmul.f32 %v5206, %v5314
        %v5423 = vmul.f32 %v5211, %v5314
        %v5424 = vmul.f32 %v5216, %v5314
        %v5425 = vmul.f32 %v5221, %v5314
        %v5426 = vmul.f32 %v5226, %v5314
        %v5427 = vmul.f32 %v5231, %v5314
        %v5428 = vmul.f32 %v5236, %v5314
        %v5429 = vmul.f32 %v5241, %v5314
        %v5430 = vmul.f32 %v5246, %v5314
        %v5431 = vmul.f32 %v5251, %v5314
        %v5432 = vmul.f32 %v5256, %v5314
        %v5433 = vmul.f32 %v5261, %v5314
        %v5434 = vmul.f32 %v5266, %v5314
        %v5435 = vmul.f32 %v5271, %v5314
        %v5436 = vmul.f32 %v5276, %v5314
        %v5437 = vmul.f32 %v5281, %v5314
        %v5438 = vmul.f32 %v5286, %v5314
        %v5439 = vmul.f32 %v5291, %v5314
        %v5440 = vmul.f32 %v5296, %v5314
        %v5441 = vmul.f32 %v5301, %v5314
        %v5442 = vmul.f32 %v5306, %v5314
        %v5443 = vmul.f32 %v5311, %v5314
        %v5444 = vadd.f32 %v4544, %v5316
        %v5445 = vadd.f32 %v4545, %v5317
        %v5446 = vadd.f32 %v4546, %v5318
        %v5447 = vadd.f32 %v4547, %v5319
        %v5448 = vadd.f32 %v4548, %v5320
        %v5449 = vadd.f32 %v4549, %v5321
        %v5450 = vadd.f32 %v4550, %v5322
        %v5451 = vadd.f32 %v4551, %v5323
        %v5452 = vadd.f32 %v4552, %v5324
        %v5453 = vadd.f32 %v4553, %v5325
        %v5454 = vadd.f32 %v4554, %v5326
        %v5455 = vadd.f32 %v4555, %v5327
        %v5456 = vadd.f32 %v4556, %v5328
        %v5457 = vadd.f32 %v4557, %v5329
        %v5458 = vadd.f32 %v4558, %v5330
        %v5459 = vadd.f32 %v4559, %v5331
        %v5460 = vadd.f32 %v4560, %v5332
        %v5461 = vadd.f32 %v4561, %v5333
        %v5462 = vadd.f32 %v4562, %v5334
        %v5463 = vadd.f32 %v4563, %v5335
        %v5464 = vadd.f32 %v4564, %v5336
        %v5465 = vadd.f32 %v4565, %v5337
        %v5466 = vadd.f32 %v4566, %v5338
        %v5467 = vadd.f32 %v4567, %v5339
        %v5468 = vadd.f32 %v4568, %v5340
        %v5469 = vadd.f32 %v4569, %v5341
        %v5470 = vadd.f32 %v4570, %v5342
        %v5471 = vadd.f32 %v4571, %v5343
        %v5472 = vadd.f32 %v4572, %v5344
        %v5473 = vadd.f32 %v4573, %v5345
        %v5474 = vadd.f32 %v4574, %v5346
        %v5475 = vadd.f32 %v4575, %v5347
        %v5476 = vadd.f32 %v4576, %v5348
        %v5477 = vadd.f32 %v4577, %v5349
        %v5478 = vadd.f32 %v4578, %v5350
        %v5479 = vadd.f32 %v4579, %v5351
        %v5480 = vadd.f32 %v4580, %v5352
        %v5481 = vadd.f32 %v4581, %v5353
        %v5482 = vadd.f32 %v4582, %v5354
        %v5483 = vadd.f32 %v4583, %v5355
        %v5484 = vadd.f32 %v4584, %v5356
        %v5485 = vadd.f32 %v4585, %v5357
        %v5486 = vadd.f32 %v4586, %v5358
        %v5487 = vadd.f32 %v4587, %v5359
        %v5488 = vadd.f32 %v4588, %v5360
        %v5489 = vadd.f32 %v4589, %v5361
        %v5490 = vadd.f32 %v4590, %v5362
        %v5491 = vadd.f32 %v4591, %v5363
        %v5492 = vadd.f32 %v4592, %v5364
        %v5493 = vadd.f32 %v4593, %v5365
        %v5494 = vadd.f32 %v4594, %v5366
        %v5495 = vadd.f32 %v4595, %v5367
        %v5496 = vadd.f32 %v4596, %v5368
        %v5497 = vadd.f32 %v4597, %v5369
        %v5498 = vadd.f32 %v4598, %v5370
        %v5499 = vadd.f32 %v4599, %v5371
        %v5500 = vadd.f32 %v4600, %v5372
        %v5501 = vadd.f32 %v4601, %v5373
        %v5502 = vadd.f32 %v4602, %v5374
        %v5503 = vadd.f32 %v4603, %v5375
        %v5504 = vadd.f32 %v4604, %v5376
        %v5505 = vadd.f32 %v4605, %v5377
        %v5506 = vadd.f32 %v4606, %v5378
        %v5507 = vadd.f32 %v4607, %v5379
        %v5508 = vadd.f32 %v4608, %v5380
        %v5509 = vadd.f32 %v4609, %v5381
        %v5510 = vadd.f32 %v4610, %v5382
        %v5511 = vadd.f32 %v4611, %v5383
        %v5512 = vadd.f32 %v4612, %v5384
        %v5513 = vadd.f32 %v4613, %v5385
        %v5514 = vadd.f32 %v4614, %v5386
        %v5515 = vadd.f32 %v4615, %v5387
        %v5516 = vadd.f32 %v4616, %v5388
        %v5517 = vadd.f32 %v4617, %v5389
        %v5518 = vadd.f32 %v4618, %v5390
        %v5519 = vadd.f32 %v4619, %v5391
        %v5520 = vadd.f32 %v4620, %v5392
        %v5521 = vadd.f32 %v4621, %v5393
        %v5522 = vadd.f32 %v4622, %v5394
        %v5523 = vadd.f32 %v4623, %v5395
        %v5524 = vadd.f32 %v4624, %v5396
        %v5525 = vadd.f32 %v4625, %v5397
        %v5526 = vadd.f32 %v4626, %v5398
        %v5527 = vadd.f32 %v4627, %v5399
        %v5528 = vadd.f32 %v4628, %v5400
        %v5529 = vadd.f32 %v4629, %v5401
        %v5530 = vadd.f32 %v4630, %v5402
        %v5531 = vadd.f32 %v4631, %v5403
        %v5532 = vadd.f32 %v4632, %v5404
        %v5533 = vadd.f32 %v4633, %v5405
        %v5534 = vadd.f32 %v4634, %v5406
        %v5535 = vadd.f32 %v4635, %v5407
        %v5536 = vadd.f32 %v4636, %v5408
        %v5537 = vadd.f32 %v4637, %v5409
        %v5538 = vadd.f32 %v4638, %v5410
        %v5539 = vadd.f32 %v4639, %v5411
        %v5540 = vadd.f32 %v4640, %v5412
        %v5541 = vadd.f32 %v4641, %v5413
        %v5542 = vadd.f32 %v4642, %v5414
        %v5543 = vadd.f32 %v4643, %v5415
        %v5544 = vadd.f32 %v4644, %v5416
        %v5545 = vadd.f32 %v4645, %v5417
        %v5546 = vadd.f32 %v4646, %v5418
        %v5547 = vadd.f32 %v4647, %v5419
        %v5548 = vadd.f32 %v4648, %v5420
        %v5549 = vadd.f32 %v4649, %v5421
        %v5550 = vadd.f32 %v4650, %v5422
        %v5551 = vadd.f32 %v4651, %v5423
        %v5552 = vadd.f32 %v4652, %v5424
        %v5553 = vadd.f32 %v4653, %v5425
        %v5554 = vadd.f32 %v4654, %v5426
        %v5555 = vadd.f32 %v4655, %v5427
        %v5556 = vadd.f32 %v4656, %v5428
        %v5557 = vadd.f32 %v4657, %v5429
        %v5558 = vadd.f32 %v4658, %v5430
        %v5559 = vadd.f32 %v4659, %v5431
        %v5560 = vadd.f32 %v4660, %v5432
        %v5561 = vadd.f32 %v4661, %v5433
        %v5562 = vadd.f32 %v4662, %v5434
        %v5563 = vadd.f32 %v4663, %v5435
        %v5564 = vadd.f32 %v4664, %v5436
        %v5565 = vadd.f32 %v4665, %v5437
        %v5566 = vadd.f32 %v4666, %v5438
        %v5567 = vadd.f32 %v4667, %v5439
        %v5568 = vadd.f32 %v4668, %v5440
        %v5569 = vadd.f32 %v4669, %v5441
        %v5570 = vadd.f32 %v4670, %v5442
        %v5571 = vadd.f32 %v4671, %v5443
        %v5572 = vld [vmem:[%s6] sm:$0x1]
        %v5574 = vperm.slane %v5572, 0
        %v5576 = vadd.f32 %v5444, %v5574
        %v5577 = vadd.f32 %v5445, %v5574
        %v5578 = vadd.f32 %v5446, %v5574
        %v5579 = vadd.f32 %v5447, %v5574
        %v5580 = vadd.f32 %v5448, %v5574
        %v5581 = vadd.f32 %v5449, %v5574
        %v5582 = vadd.f32 %v5450, %v5574
        %v5583 = vadd.f32 %v5451, %v5574
        %v5584 = vadd.f32 %v5452, %v5574
        %v5585 = vadd.f32 %v5453, %v5574
        %v5586 = vadd.f32 %v5454, %v5574
        %v5587 = vadd.f32 %v5455, %v5574
        %v5588 = vadd.f32 %v5456, %v5574
        %v5589 = vadd.f32 %v5457, %v5574
        %v5590 = vadd.f32 %v5458, %v5574
        %v5591 = vadd.f32 %v5459, %v5574
        %v5592 = vadd.f32 %v5460, %v5574
        %v5593 = vadd.f32 %v5461, %v5574
        %v5594 = vadd.f32 %v5462, %v5574
        %v5595 = vadd.f32 %v5463, %v5574
        %v5596 = vadd.f32 %v5464, %v5574
        %v5597 = vadd.f32 %v5465, %v5574
        %v5598 = vadd.f32 %v5466, %v5574
        %v5599 = vadd.f32 %v5467, %v5574
        %v5600 = vadd.f32 %v5468, %v5574
        %v5601 = vadd.f32 %v5469, %v5574
        %v5602 = vadd.f32 %v5470, %v5574
        %v5603 = vadd.f32 %v5471, %v5574
        %v5604 = vadd.f32 %v5472, %v5574
        %v5605 = vadd.f32 %v5473, %v5574
        %v5606 = vadd.f32 %v5474, %v5574
        %v5607 = vadd.f32 %v5475, %v5574
        %v5608 = vadd.f32 %v5476, %v5574
        %v5609 = vadd.f32 %v5477, %v5574
        %v5610 = vadd.f32 %v5478, %v5574
        %v5611 = vadd.f32 %v5479, %v5574
        %v5612 = vadd.f32 %v5480, %v5574
        %v5613 = vadd.f32 %v5481, %v5574
        %v5614 = vadd.f32 %v5482, %v5574
        %v5615 = vadd.f32 %v5483, %v5574
        %v5616 = vadd.f32 %v5484, %v5574
        %v5617 = vadd.f32 %v5485, %v5574
        %v5618 = vadd.f32 %v5486, %v5574
        %v5619 = vadd.f32 %v5487, %v5574
        %v5620 = vadd.f32 %v5488, %v5574
        %v5621 = vadd.f32 %v5489, %v5574
        %v5622 = vadd.f32 %v5490, %v5574
        %v5623 = vadd.f32 %v5491, %v5574
        %v5624 = vadd.f32 %v5492, %v5574
        %v5625 = vadd.f32 %v5493, %v5574
        %v5626 = vadd.f32 %v5494, %v5574
        %v5627 = vadd.f32 %v5495, %v5574
        %v5628 = vadd.f32 %v5496, %v5574
        %v5629 = vadd.f32 %v5497, %v5574
        %v5630 = vadd.f32 %v5498, %v5574
        %v5631 = vadd.f32 %v5499, %v5574
        %v5632 = vadd.f32 %v5500, %v5574
        %v5633 = vadd.f32 %v5501, %v5574
        %v5634 = vadd.f32 %v5502, %v5574
        %v5635 = vadd.f32 %v5503, %v5574
        %v5636 = vadd.f32 %v5504, %v5574
        %v5637 = vadd.f32 %v5505, %v5574
        %v5638 = vadd.f32 %v5506, %v5574
        %v5639 = vadd.f32 %v5507, %v5574
        %v5640 = vadd.f32 %v5508, %v5574
        %v5641 = vadd.f32 %v5509, %v5574
        %v5642 = vadd.f32 %v5510, %v5574
        %v5643 = vadd.f32 %v5511, %v5574
        %v5644 = vadd.f32 %v5512, %v5574
        %v5645 = vadd.f32 %v5513, %v5574
        %v5646 = vadd.f32 %v5514, %v5574
        %v5647 = vadd.f32 %v5515, %v5574
        %v5648 = vadd.f32 %v5516, %v5574
        %v5649 = vadd.f32 %v5517, %v5574
        %v5650 = vadd.f32 %v5518, %v5574
        %v5651 = vadd.f32 %v5519, %v5574
        %v5652 = vadd.f32 %v5520, %v5574
        %v5653 = vadd.f32 %v5521, %v5574
        %v5654 = vadd.f32 %v5522, %v5574
        %v5655 = vadd.f32 %v5523, %v5574
        %v5656 = vadd.f32 %v5524, %v5574
        %v5657 = vadd.f32 %v5525, %v5574
        %v5658 = vadd.f32 %v5526, %v5574
        %v5659 = vadd.f32 %v5527, %v5574
        %v5660 = vadd.f32 %v5528, %v5574
        %v5661 = vadd.f32 %v5529, %v5574
        %v5662 = vadd.f32 %v5530, %v5574
        %v5663 = vadd.f32 %v5531, %v5574
        %v5664 = vadd.f32 %v5532, %v5574
        %v5665 = vadd.f32 %v5533, %v5574
        %v5666 = vadd.f32 %v5534, %v5574
        %v5667 = vadd.f32 %v5535, %v5574
        %v5668 = vadd.f32 %v5536, %v5574
        %v5669 = vadd.f32 %v5537, %v5574
        %v5670 = vadd.f32 %v5538, %v5574
        %v5671 = vadd.f32 %v5539, %v5574
        %v5672 = vadd.f32 %v5540, %v5574
        %v5673 = vadd.f32 %v5541, %v5574
        %v5674 = vadd.f32 %v5542, %v5574
        %v5675 = vadd.f32 %v5543, %v5574
        %v5676 = vadd.f32 %v5544, %v5574
        %v5677 = vadd.f32 %v5545, %v5574
        %v5678 = vadd.f32 %v5546, %v5574
        %v5679 = vadd.f32 %v5547, %v5574
        %v5680 = vadd.f32 %v5548, %v5574
        %v5681 = vadd.f32 %v5549, %v5574
        %v5682 = vadd.f32 %v5550, %v5574
        %v5683 = vadd.f32 %v5551, %v5574
        %v5684 = vadd.f32 %v5552, %v5574
        %v5685 = vadd.f32 %v5553, %v5574
        %v5686 = vadd.f32 %v5554, %v5574
        %v5687 = vadd.f32 %v5555, %v5574
        %v5688 = vadd.f32 %v5556, %v5574
        %v5689 = vadd.f32 %v5557, %v5574
        %v5690 = vadd.f32 %v5558, %v5574
        %v5691 = vadd.f32 %v5559, %v5574
        %v5692 = vadd.f32 %v5560, %v5574
        %v5693 = vadd.f32 %v5561, %v5574
        %v5694 = vadd.f32 %v5562, %v5574
        %v5695 = vadd.f32 %v5563, %v5574
        %v5696 = vadd.f32 %v5564, %v5574
        %v5697 = vadd.f32 %v5565, %v5574
        %v5698 = vadd.f32 %v5566, %v5574
        %v5699 = vadd.f32 %v5567, %v5574
        %v5700 = vadd.f32 %v5568, %v5574
        %v5701 = vadd.f32 %v5569, %v5574
        %v5702 = vadd.f32 %v5570, %v5574
        %v5703 = vadd.f32 %v5571, %v5574
        %vm5704 = vcmask 64512
        %5705 = vst.msk [vmem:[%s367] sm:$0xff] %vm5704, %v5576
        %5706 = vst.msk [vmem:[%s367 + $0x8] sm:$0xff] %vm5704, %v5577
        %5707 = vst.msk [vmem:[%s367 + $0x10] sm:$0xff] %vm5704, %v5578
        %5708 = vst.msk [vmem:[%s367 + $0x18] sm:$0xff] %vm5704, %v5579
        %5709 = vst.msk [vmem:[%s367 + $0x20] sm:$0xff] %vm5704, %v5580
        %5710 = vst.msk [vmem:[%s367 + $0x28] sm:$0xff] %vm5704, %v5581
        %5711 = vst.msk [vmem:[%s367 + $0x30] sm:$0xff] %vm5704, %v5582
        %5712 = vst.msk [vmem:[%s367 + $0x38] sm:$0xff] %vm5704, %v5583
        %5713 = vst.msk [vmem:[%s367 + $0x40] sm:$0xff] %vm5704, %v5584
        %5714 = vst.msk [vmem:[%s367 + $0x48] sm:$0xff] %vm5704, %v5585
        %5715 = vst.msk [vmem:[%s367 + $0x50] sm:$0xff] %vm5704, %v5586
        %5716 = vst.msk [vmem:[%s367 + $0x58] sm:$0xff] %vm5704, %v5587
        %5717 = vst.msk [vmem:[%s367 + $0x60] sm:$0xff] %vm5704, %v5588
        %5718 = vst.msk [vmem:[%s367 + $0x68] sm:$0xff] %vm5704, %v5589
        %5719 = vst.msk [vmem:[%s367 + $0x70] sm:$0xff] %vm5704, %v5590
        %5720 = vst.msk [vmem:[%s367 + $0x78] sm:$0xff] %vm5704, %v5591
        %5721 = vst.msk [vmem:[%s367 + $0x80] sm:$0xff] %vm5704, %v5592
        %5722 = vst.msk [vmem:[%s367 + $0x88] sm:$0xff] %vm5704, %v5593
        %5723 = vst.msk [vmem:[%s367 + $0x90] sm:$0xff] %vm5704, %v5594
        %5724 = vst.msk [vmem:[%s367 + $0x98] sm:$0xff] %vm5704, %v5595
        %5725 = vst.msk [vmem:[%s367 + $0xa0] sm:$0xff] %vm5704, %v5596
        %5726 = vst.msk [vmem:[%s367 + $0xa8] sm:$0xff] %vm5704, %v5597
        %5727 = vst.msk [vmem:[%s367 + $0xb0] sm:$0xff] %vm5704, %v5598
        %5728 = vst.msk [vmem:[%s367 + $0xb8] sm:$0xff] %vm5704, %v5599
        %5729 = vst.msk [vmem:[%s367 + $0xc0] sm:$0xff] %vm5704, %v5600
        %5730 = vst.msk [vmem:[%s367 + $0xc8] sm:$0xff] %vm5704, %v5601
        %5731 = vst.msk [vmem:[%s367 + $0xd0] sm:$0xff] %vm5704, %v5602
        %5732 = vst.msk [vmem:[%s367 + $0xd8] sm:$0xff] %vm5704, %v5603
        %5733 = vst.msk [vmem:[%s367 + $0xe0] sm:$0xff] %vm5704, %v5604
        %5734 = vst.msk [vmem:[%s367 + $0xe8] sm:$0xff] %vm5704, %v5605
        %5735 = vst.msk [vmem:[%s367 + $0xf0] sm:$0xff] %vm5704, %v5606
        %5736 = vst.msk [vmem:[%s367 + $0xf8] sm:$0xff] %vm5704, %v5607
        %5737 = vst.msk [vmem:[%s367 + $0x100] sm:$0xff] %vm5704, %v5608
        %5738 = vst.msk [vmem:[%s367 + $0x108] sm:$0xff] %vm5704, %v5609
        %5739 = vst.msk [vmem:[%s367 + $0x110] sm:$0xff] %vm5704, %v5610
        %5740 = vst.msk [vmem:[%s367 + $0x118] sm:$0xff] %vm5704, %v5611
        %5741 = vst.msk [vmem:[%s367 + $0x120] sm:$0xff] %vm5704, %v5612
        %5742 = vst.msk [vmem:[%s367 + $0x128] sm:$0xff] %vm5704, %v5613
        %5743 = vst.msk [vmem:[%s367 + $0x130] sm:$0xff] %vm5704, %v5614
        %5744 = vst.msk [vmem:[%s367 + $0x138] sm:$0xff] %vm5704, %v5615
        %5745 = vst.msk [vmem:[%s367 + $0x140] sm:$0xff] %vm5704, %v5616
        %5746 = vst.msk [vmem:[%s367 + $0x148] sm:$0xff] %vm5704, %v5617
        %5747 = vst.msk [vmem:[%s367 + $0x150] sm:$0xff] %vm5704, %v5618
        %5748 = vst.msk [vmem:[%s367 + $0x158] sm:$0xff] %vm5704, %v5619
        %5749 = vst.msk [vmem:[%s367 + $0x160] sm:$0xff] %vm5704, %v5620
        %5750 = vst.msk [vmem:[%s367 + $0x168] sm:$0xff] %vm5704, %v5621
        %5751 = vst.msk [vmem:[%s367 + $0x170] sm:$0xff] %vm5704, %v5622
        %5752 = vst.msk [vmem:[%s367 + $0x178] sm:$0xff] %vm5704, %v5623
        %5753 = vst.msk [vmem:[%s367 + $0x180] sm:$0xff] %vm5704, %v5624
        %5754 = vst.msk [vmem:[%s367 + $0x188] sm:$0xff] %vm5704, %v5625
        %5755 = vst.msk [vmem:[%s367 + $0x190] sm:$0xff] %vm5704, %v5626
        %5756 = vst.msk [vmem:[%s367 + $0x198] sm:$0xff] %vm5704, %v5627
        %5757 = vst.msk [vmem:[%s367 + $0x1a0] sm:$0xff] %vm5704, %v5628
        %5758 = vst.msk [vmem:[%s367 + $0x1a8] sm:$0xff] %vm5704, %v5629
        %5759 = vst.msk [vmem:[%s367 + $0x1b0] sm:$0xff] %vm5704, %v5630
        %5760 = vst.msk [vmem:[%s367 + $0x1b8] sm:$0xff] %vm5704, %v5631
        %5761 = vst.msk [vmem:[%s367 + $0x1c0] sm:$0xff] %vm5704, %v5632
        %5762 = vst.msk [vmem:[%s367 + $0x1c8] sm:$0xff] %vm5704, %v5633
        %5763 = vst.msk [vmem:[%s367 + $0x1d0] sm:$0xff] %vm5704, %v5634
        %5764 = vst.msk [vmem:[%s367 + $0x1d8] sm:$0xff] %vm5704, %v5635
        %5765 = vst.msk [vmem:[%s367 + $0x1e0] sm:$0xff] %vm5704, %v5636
        %5766 = vst.msk [vmem:[%s367 + $0x1e8] sm:$0xff] %vm5704, %v5637
        %5767 = vst.msk [vmem:[%s367 + $0x1f0] sm:$0xff] %vm5704, %v5638
        %5768 = vst.msk [vmem:[%s367 + $0x1f8] sm:$0xff] %vm5704, %v5639
        %5769 = vst.msk [vmem:[%s367 + $0x200] sm:$0xff] %vm5704, %v5640
        %5770 = vst.msk [vmem:[%s367 + $0x208] sm:$0xff] %vm5704, %v5641
        %5771 = vst.msk [vmem:[%s367 + $0x210] sm:$0xff] %vm5704, %v5642
        %5772 = vst.msk [vmem:[%s367 + $0x218] sm:$0xff] %vm5704, %v5643
        %5773 = vst.msk [vmem:[%s367 + $0x220] sm:$0xff] %vm5704, %v5644
        %5774 = vst.msk [vmem:[%s367 + $0x228] sm:$0xff] %vm5704, %v5645
        %5775 = vst.msk [vmem:[%s367 + $0x230] sm:$0xff] %vm5704, %v5646
        %5776 = vst.msk [vmem:[%s367 + $0x238] sm:$0xff] %vm5704, %v5647
        %5777 = vst.msk [vmem:[%s367 + $0x240] sm:$0xff] %vm5704, %v5648
        %5778 = vst.msk [vmem:[%s367 + $0x248] sm:$0xff] %vm5704, %v5649
        %5779 = vst.msk [vmem:[%s367 + $0x250] sm:$0xff] %vm5704, %v5650
        %5780 = vst.msk [vmem:[%s367 + $0x258] sm:$0xff] %vm5704, %v5651
        %5781 = vst.msk [vmem:[%s367 + $0x260] sm:$0xff] %vm5704, %v5652
        %5782 = vst.msk [vmem:[%s367 + $0x268] sm:$0xff] %vm5704, %v5653
        %5783 = vst.msk [vmem:[%s367 + $0x270] sm:$0xff] %vm5704, %v5654
        %5784 = vst.msk [vmem:[%s367 + $0x278] sm:$0xff] %vm5704, %v5655
        %5785 = vst.msk [vmem:[%s367 + $0x280] sm:$0xff] %vm5704, %v5656
        %5786 = vst.msk [vmem:[%s367 + $0x288] sm:$0xff] %vm5704, %v5657
        %5787 = vst.msk [vmem:[%s367 + $0x290] sm:$0xff] %vm5704, %v5658
        %5788 = vst.msk [vmem:[%s367 + $0x298] sm:$0xff] %vm5704, %v5659
        %5789 = vst.msk [vmem:[%s367 + $0x2a0] sm:$0xff] %vm5704, %v5660
        %5790 = vst.msk [vmem:[%s367 + $0x2a8] sm:$0xff] %vm5704, %v5661
        %5791 = vst.msk [vmem:[%s367 + $0x2b0] sm:$0xff] %vm5704, %v5662
        %5792 = vst.msk [vmem:[%s367 + $0x2b8] sm:$0xff] %vm5704, %v5663
        %5793 = vst.msk [vmem:[%s367 + $0x2c0] sm:$0xff] %vm5704, %v5664
        %5794 = vst.msk [vmem:[%s367 + $0x2c8] sm:$0xff] %vm5704, %v5665
        %5795 = vst.msk [vmem:[%s367 + $0x2d0] sm:$0xff] %vm5704, %v5666
        %5796 = vst.msk [vmem:[%s367 + $0x2d8] sm:$0xff] %vm5704, %v5667
        %5797 = vst.msk [vmem:[%s367 + $0x2e0] sm:$0xff] %vm5704, %v5668
        %5798 = vst.msk [vmem:[%s367 + $0x2e8] sm:$0xff] %vm5704, %v5669
        %5799 = vst.msk [vmem:[%s367 + $0x2f0] sm:$0xff] %vm5704, %v5670
        %5800 = vst.msk [vmem:[%s367 + $0x2f8] sm:$0xff] %vm5704, %v5671
        %5801 = vst.msk [vmem:[%s367 + $0x300] sm:$0xff] %vm5704, %v5672
        %5802 = vst.msk [vmem:[%s367 + $0x308] sm:$0xff] %vm5704, %v5673
        %5803 = vst.msk [vmem:[%s367 + $0x310] sm:$0xff] %vm5704, %v5674
        %5804 = vst.msk [vmem:[%s367 + $0x318] sm:$0xff] %vm5704, %v5675
        %5805 = vst.msk [vmem:[%s367 + $0x320] sm:$0xff] %vm5704, %v5676
        %5806 = vst.msk [vmem:[%s367 + $0x328] sm:$0xff] %vm5704, %v5677
        %5807 = vst.msk [vmem:[%s367 + $0x330] sm:$0xff] %vm5704, %v5678
        %5808 = vst.msk [vmem:[%s367 + $0x338] sm:$0xff] %vm5704, %v5679
        %5809 = vst.msk [vmem:[%s367 + $0x340] sm:$0xff] %vm5704, %v5680
        %5810 = vst.msk [vmem:[%s367 + $0x348] sm:$0xff] %vm5704, %v5681
        %5811 = vst.msk [vmem:[%s367 + $0x350] sm:$0xff] %vm5704, %v5682
        %5812 = vst.msk [vmem:[%s367 + $0x358] sm:$0xff] %vm5704, %v5683
        %5813 = vst.msk [vmem:[%s367 + $0x360] sm:$0xff] %vm5704, %v5684
        %5814 = vst.msk [vmem:[%s367 + $0x368] sm:$0xff] %vm5704, %v5685
        %5815 = vst.msk [vmem:[%s367 + $0x370] sm:$0xff] %vm5704, %v5686
        %5816 = vst.msk [vmem:[%s367 + $0x378] sm:$0xff] %vm5704, %v5687
        %5817 = vst.msk [vmem:[%s367 + $0x380] sm:$0xff] %vm5704, %v5688
        %5818 = vst.msk [vmem:[%s367 + $0x388] sm:$0xff] %vm5704, %v5689
        %5819 = vst.msk [vmem:[%s367 + $0x390] sm:$0xff] %vm5704, %v5690
        %5820 = vst.msk [vmem:[%s367 + $0x398] sm:$0xff] %vm5704, %v5691
        %5821 = vst.msk [vmem:[%s367 + $0x3a0] sm:$0xff] %vm5704, %v5692
        %5822 = vst.msk [vmem:[%s367 + $0x3a8] sm:$0xff] %vm5704, %v5693
        %5823 = vst.msk [vmem:[%s367 + $0x3b0] sm:$0xff] %vm5704, %v5694
        %5824 = vst.msk [vmem:[%s367 + $0x3b8] sm:$0xff] %vm5704, %v5695
        %5825 = vst.msk [vmem:[%s367 + $0x3c0] sm:$0xff] %vm5704, %v5696
        %5826 = vst.msk [vmem:[%s367 + $0x3c8] sm:$0xff] %vm5704, %v5697
        %5827 = vst.msk [vmem:[%s367 + $0x3d0] sm:$0xff] %vm5704, %v5698
        %5828 = vst.msk [vmem:[%s367 + $0x3d8] sm:$0xff] %vm5704, %v5699
        %5829 = vst.msk [vmem:[%s367 + $0x3e0] sm:$0xff] %vm5704, %v5700
        %5830 = vst.msk [vmem:[%s367 + $0x3e8] sm:$0xff] %vm5704, %v5701
        %5831 = vst.msk [vmem:[%s367 + $0x3f0] sm:$0xff] %vm5704, %v5702
        %5832 = vst.msk [vmem:[%s367 + $0x3f8] sm:$0xff] %vm5704, %v5703
        %v5833 = vsel %vm5704, %v5576, 0.0
        %v5834 = vsel %vm5704, %v5577, 0.0
        %v5835 = vadd.f32 %v5833, %v5834
        %v5836 = vrot.slane %v5835, 4
        %v5837 = vadd.f32 %v5835, %v5836
        %v5838 = vrot.slane %v5837, 2
        %v5839 = vadd.f32 %v5837, %v5838
        %v5840 = vrot.slane %v5839, 1
        %v5841 = vadd.f32 %v5839, %v5840
        %v5842 = vsel %vm5704, %v5578, 0.0
        %v5843 = vsel %vm5704, %v5579, 0.0
        %v5844 = vadd.f32 %v5842, %v5843
        %v5845 = vrot.slane %v5844, 4
        %v5846 = vadd.f32 %v5844, %v5845
        %v5847 = vrot.slane %v5846, 2
        %v5848 = vadd.f32 %v5846, %v5847
        %v5849 = vrot.slane %v5848, 1
        %v5850 = vadd.f32 %v5848, %v5849
        %v5851 = vsel %vm5704, %v5580, 0.0
        %v5852 = vsel %vm5704, %v5581, 0.0
        %v5853 = vadd.f32 %v5851, %v5852
        %v5854 = vrot.slane %v5853, 4
        %v5855 = vadd.f32 %v5853, %v5854
        %v5856 = vrot.slane %v5855, 2
        %v5857 = vadd.f32 %v5855, %v5856
        %v5858 = vrot.slane %v5857, 1
        %v5859 = vadd.f32 %v5857, %v5858
        %v5860 = vsel %vm5704, %v5582, 0.0
        %v5861 = vsel %vm5704, %v5583, 0.0
        %v5862 = vadd.f32 %v5860, %v5861
        %v5863 = vrot.slane %v5862, 4
        %v5864 = vadd.f32 %v5862, %v5863
        %v5865 = vrot.slane %v5864, 2
        %v5866 = vadd.f32 %v5864, %v5865
        %v5867 = vrot.slane %v5866, 1
        %v5868 = vadd.f32 %v5866, %v5867
        %v5869 = vsel %vm5704, %v5584, 0.0
        %v5870 = vsel %vm5704, %v5585, 0.0
        %v5871 = vadd.f32 %v5869, %v5870
        %v5872 = vrot.slane %v5871, 4
        %v5873 = vadd.f32 %v5871, %v5872
        %v5874 = vrot.slane %v5873, 2
        %v5875 = vadd.f32 %v5873, %v5874
        %v5876 = vrot.slane %v5875, 1
        %v5877 = vadd.f32 %v5875, %v5876
        %v5878 = vsel %vm5704, %v5586, 0.0
        %v5879 = vsel %vm5704, %v5587, 0.0
        %v5880 = vadd.f32 %v5878, %v5879
        %v5881 = vrot.slane %v5880, 4
        %v5882 = vadd.f32 %v5880, %v5881
        %v5883 = vrot.slane %v5882, 2
        %v5884 = vadd.f32 %v5882, %v5883
        %v5885 = vrot.slane %v5884, 1
        %v5886 = vadd.f32 %v5884, %v5885
        %v5887 = vsel %vm5704, %v5588, 0.0
        %v5888 = vsel %vm5704, %v5589, 0.0
        %v5889 = vadd.f32 %v5887, %v5888
        %v5890 = vrot.slane %v5889, 4
        %v5891 = vadd.f32 %v5889, %v5890
        %v5892 = vrot.slane %v5891, 2
        %v5893 = vadd.f32 %v5891, %v5892
        %v5894 = vrot.slane %v5893, 1
        %v5895 = vadd.f32 %v5893, %v5894
        %v5896 = vsel %vm5704, %v5590, 0.0
        %v5897 = vsel %vm5704, %v5591, 0.0
        %v5898 = vadd.f32 %v5896, %v5897
        %v5899 = vrot.slane %v5898, 4
        %v5900 = vadd.f32 %v5898, %v5899
        %v5901 = vrot.slane %v5900, 2
        %v5902 = vadd.f32 %v5900, %v5901
        %v5903 = vrot.slane %v5902, 1
        %v5904 = vadd.f32 %v5902, %v5903
        %v5905 = vsel %vm5704, %v5592, 0.0
        %v5906 = vsel %vm5704, %v5593, 0.0
        %v5907 = vadd.f32 %v5905, %v5906
        %v5908 = vrot.slane %v5907, 4
        %v5909 = vadd.f32 %v5907, %v5908
        %v5910 = vrot.slane %v5909, 2
        %v5911 = vadd.f32 %v5909, %v5910
        %v5912 = vrot.slane %v5911, 1
        %v5913 = vadd.f32 %v5911, %v5912
        %v5914 = vsel %vm5704, %v5594, 0.0
        %v5915 = vsel %vm5704, %v5595, 0.0
        %v5916 = vadd.f32 %v5914, %v5915
        %v5917 = vrot.slane %v5916, 4
        %v5918 = vadd.f32 %v5916, %v5917
        %v5919 = vrot.slane %v5918, 2
        %v5920 = vadd.f32 %v5918, %v5919
        %v5921 = vrot.slane %v5920, 1
        %v5922 = vadd.f32 %v5920, %v5921
        %v5923 = vsel %vm5704, %v5596, 0.0
        %v5924 = vsel %vm5704, %v5597, 0.0
        %v5925 = vadd.f32 %v5923, %v5924
        %v5926 = vrot.slane %v5925, 4
        %v5927 = vadd.f32 %v5925, %v5926
        %v5928 = vrot.slane %v5927, 2
        %v5929 = vadd.f32 %v5927, %v5928
        %v5930 = vrot.slane %v5929, 1
        %v5931 = vadd.f32 %v5929, %v5930
        %v5932 = vsel %vm5704, %v5598, 0.0
        %v5933 = vsel %vm5704, %v5599, 0.0
        %v5934 = vadd.f32 %v5932, %v5933
        %v5935 = vrot.slane %v5934, 4
        %v5936 = vadd.f32 %v5934, %v5935
        %v5937 = vrot.slane %v5936, 2
        %v5938 = vadd.f32 %v5936, %v5937
        %v5939 = vrot.slane %v5938, 1
        %v5940 = vadd.f32 %v5938, %v5939
        %v5941 = vsel %vm5704, %v5600, 0.0
        %v5942 = vsel %vm5704, %v5601, 0.0
        %v5943 = vadd.f32 %v5941, %v5942
        %v5944 = vrot.slane %v5943, 4
        %v5945 = vadd.f32 %v5943, %v5944
        %v5946 = vrot.slane %v5945, 2
        %v5947 = vadd.f32 %v5945, %v5946
        %v5948 = vrot.slane %v5947, 1
        %v5949 = vadd.f32 %v5947, %v5948
        %v5950 = vsel %vm5704, %v5602, 0.0
        %v5951 = vsel %vm5704, %v5603, 0.0
        %v5952 = vadd.f32 %v5950, %v5951
        %v5953 = vrot.slane %v5952, 4
        %v5954 = vadd.f32 %v5952, %v5953
        %v5955 = vrot.slane %v5954, 2
        %v5956 = vadd.f32 %v5954, %v5955
        %v5957 = vrot.slane %v5956, 1
        %v5958 = vadd.f32 %v5956, %v5957
        %v5959 = vsel %vm5704, %v5604, 0.0
        %v5960 = vsel %vm5704, %v5605, 0.0
        %v5961 = vadd.f32 %v5959, %v5960
        %v5962 = vrot.slane %v5961, 4
        %v5963 = vadd.f32 %v5961, %v5962
        %v5964 = vrot.slane %v5963, 2
        %v5965 = vadd.f32 %v5963, %v5964
        %v5966 = vrot.slane %v5965, 1
        %v5967 = vadd.f32 %v5965, %v5966
        %v5968 = vsel %vm5704, %v5606, 0.0
        %v5969 = vsel %vm5704, %v5607, 0.0
        %v5970 = vadd.f32 %v5968, %v5969
        %v5971 = vrot.slane %v5970, 4
        %v5972 = vadd.f32 %v5970, %v5971
        %v5973 = vrot.slane %v5972, 2
        %v5974 = vadd.f32 %v5972, %v5973
        %v5975 = vrot.slane %v5974, 1
        %v5976 = vadd.f32 %v5974, %v5975
        %v5977 = vsel %vm5704, %v5608, 0.0
        %v5978 = vsel %vm5704, %v5609, 0.0
        %v5979 = vadd.f32 %v5977, %v5978
        %v5980 = vrot.slane %v5979, 4
        %v5981 = vadd.f32 %v5979, %v5980
        %v5982 = vrot.slane %v5981, 2
        %v5983 = vadd.f32 %v5981, %v5982
        %v5984 = vrot.slane %v5983, 1
        %v5985 = vadd.f32 %v5983, %v5984
        %v5986 = vsel %vm5704, %v5610, 0.0
        %v5987 = vsel %vm5704, %v5611, 0.0
        %v5988 = vadd.f32 %v5986, %v5987
        %v5989 = vrot.slane %v5988, 4
        %v5990 = vadd.f32 %v5988, %v5989
        %v5991 = vrot.slane %v5990, 2
        %v5992 = vadd.f32 %v5990, %v5991
        %v5993 = vrot.slane %v5992, 1
        %v5994 = vadd.f32 %v5992, %v5993
        %v5995 = vsel %vm5704, %v5612, 0.0
        %v5996 = vsel %vm5704, %v5613, 0.0
        %v5997 = vadd.f32 %v5995, %v5996
        %v5998 = vrot.slane %v5997, 4
        %v5999 = vadd.f32 %v5997, %v5998
        %v6000 = vrot.slane %v5999, 2
        %v6001 = vadd.f32 %v5999, %v6000
        %v6002 = vrot.slane %v6001, 1
        %v6003 = vadd.f32 %v6001, %v6002
        %v6004 = vsel %vm5704, %v5614, 0.0
        %v6005 = vsel %vm5704, %v5615, 0.0
        %v6006 = vadd.f32 %v6004, %v6005
        %v6007 = vrot.slane %v6006, 4
        %v6008 = vadd.f32 %v6006, %v6007
        %v6009 = vrot.slane %v6008, 2
        %v6010 = vadd.f32 %v6008, %v6009
        %v6011 = vrot.slane %v6010, 1
        %v6012 = vadd.f32 %v6010, %v6011
        %v6013 = vsel %vm5704, %v5616, 0.0
        %v6014 = vsel %vm5704, %v5617, 0.0
        %v6015 = vadd.f32 %v6013, %v6014
        %v6016 = vrot.slane %v6015, 4
        %v6017 = vadd.f32 %v6015, %v6016
        %v6018 = vrot.slane %v6017, 2
        %v6019 = vadd.f32 %v6017, %v6018
        %v6020 = vrot.slane %v6019, 1
        %v6021 = vadd.f32 %v6019, %v6020
        %v6022 = vsel %vm5704, %v5618, 0.0
        %v6023 = vsel %vm5704, %v5619, 0.0
        %v6024 = vadd.f32 %v6022, %v6023
        %v6025 = vrot.slane %v6024, 4
        %v6026 = vadd.f32 %v6024, %v6025
        %v6027 = vrot.slane %v6026, 2
        %v6028 = vadd.f32 %v6026, %v6027
        %v6029 = vrot.slane %v6028, 1
        %v6030 = vadd.f32 %v6028, %v6029
        %v6031 = vsel %vm5704, %v5620, 0.0
        %v6032 = vsel %vm5704, %v5621, 0.0
        %v6033 = vadd.f32 %v6031, %v6032
        %v6034 = vrot.slane %v6033, 4
        %v6035 = vadd.f32 %v6033, %v6034
        %v6036 = vrot.slane %v6035, 2
        %v6037 = vadd.f32 %v6035, %v6036
        %v6038 = vrot.slane %v6037, 1
        %v6039 = vadd.f32 %v6037, %v6038
        %v6040 = vsel %vm5704, %v5622, 0.0
        %v6041 = vsel %vm5704, %v5623, 0.0
        %v6042 = vadd.f32 %v6040, %v6041
        %v6043 = vrot.slane %v6042, 4
        %v6044 = vadd.f32 %v6042, %v6043
        %v6045 = vrot.slane %v6044, 2
        %v6046 = vadd.f32 %v6044, %v6045
        %v6047 = vrot.slane %v6046, 1
        %v6048 = vadd.f32 %v6046, %v6047
        %v6049 = vsel %vm5704, %v5624, 0.0
        %v6050 = vsel %vm5704, %v5625, 0.0
        %v6051 = vadd.f32 %v6049, %v6050
        %v6052 = vrot.slane %v6051, 4
        %v6053 = vadd.f32 %v6051, %v6052
        %v6054 = vrot.slane %v6053, 2
        %v6055 = vadd.f32 %v6053, %v6054
        %v6056 = vrot.slane %v6055, 1
        %v6057 = vadd.f32 %v6055, %v6056
        %v6058 = vsel %vm5704, %v5626, 0.0
        %v6059 = vsel %vm5704, %v5627, 0.0
        %v6060 = vadd.f32 %v6058, %v6059
        %v6061 = vrot.slane %v6060, 4
        %v6062 = vadd.f32 %v6060, %v6061
        %v6063 = vrot.slane %v6062, 2
        %v6064 = vadd.f32 %v6062, %v6063
        %v6065 = vrot.slane %v6064, 1
        %v6066 = vadd.f32 %v6064, %v6065
        %v6067 = vsel %vm5704, %v5628, 0.0
        %v6068 = vsel %vm5704, %v5629, 0.0
        %v6069 = vadd.f32 %v6067, %v6068
        %v6070 = vrot.slane %v6069, 4
        %v6071 = vadd.f32 %v6069, %v6070
        %v6072 = vrot.slane %v6071, 2
        %v6073 = vadd.f32 %v6071, %v6072
        %v6074 = vrot.slane %v6073, 1
        %v6075 = vadd.f32 %v6073, %v6074
        %v6076 = vsel %vm5704, %v5630, 0.0
        %v6077 = vsel %vm5704, %v5631, 0.0
        %v6078 = vadd.f32 %v6076, %v6077
        %v6079 = vrot.slane %v6078, 4
        %v6080 = vadd.f32 %v6078, %v6079
        %v6081 = vrot.slane %v6080, 2
        %v6082 = vadd.f32 %v6080, %v6081
        %v6083 = vrot.slane %v6082, 1
        %v6084 = vadd.f32 %v6082, %v6083
        %v6085 = vsel %vm5704, %v5632, 0.0
        %v6086 = vsel %vm5704, %v5633, 0.0
        %v6087 = vadd.f32 %v6085, %v6086
        %v6088 = vrot.slane %v6087, 4
        %v6089 = vadd.f32 %v6087, %v6088
        %v6090 = vrot.slane %v6089, 2
        %v6091 = vadd.f32 %v6089, %v6090
        %v6092 = vrot.slane %v6091, 1
        %v6093 = vadd.f32 %v6091, %v6092
        %v6094 = vsel %vm5704, %v5634, 0.0
        %v6095 = vsel %vm5704, %v5635, 0.0
        %v6096 = vadd.f32 %v6094, %v6095
        %v6097 = vrot.slane %v6096, 4
        %v6098 = vadd.f32 %v6096, %v6097
        %v6099 = vrot.slane %v6098, 2
        %v6100 = vadd.f32 %v6098, %v6099
        %v6101 = vrot.slane %v6100, 1
        %v6102 = vadd.f32 %v6100, %v6101
        %v6103 = vsel %vm5704, %v5636, 0.0
        %v6104 = vsel %vm5704, %v5637, 0.0
        %v6105 = vadd.f32 %v6103, %v6104
        %v6106 = vrot.slane %v6105, 4
        %v6107 = vadd.f32 %v6105, %v6106
        %v6108 = vrot.slane %v6107, 2
        %v6109 = vadd.f32 %v6107, %v6108
        %v6110 = vrot.slane %v6109, 1
        %v6111 = vadd.f32 %v6109, %v6110
        %v6112 = vsel %vm5704, %v5638, 0.0
        %v6113 = vsel %vm5704, %v5639, 0.0
        %v6114 = vadd.f32 %v6112, %v6113
        %v6115 = vrot.slane %v6114, 4
        %v6116 = vadd.f32 %v6114, %v6115
        %v6117 = vrot.slane %v6116, 2
        %v6118 = vadd.f32 %v6116, %v6117
        %v6119 = vrot.slane %v6118, 1
        %v6120 = vadd.f32 %v6118, %v6119
        %v6121 = vsel %vm5704, %v5640, 0.0
        %v6122 = vsel %vm5704, %v5641, 0.0
        %v6123 = vadd.f32 %v6121, %v6122
        %v6124 = vrot.slane %v6123, 4
        %v6125 = vadd.f32 %v6123, %v6124
        %v6126 = vrot.slane %v6125, 2
        %v6127 = vadd.f32 %v6125, %v6126
        %v6128 = vrot.slane %v6127, 1
        %v6129 = vadd.f32 %v6127, %v6128
        %v6130 = vsel %vm5704, %v5642, 0.0
        %v6131 = vsel %vm5704, %v5643, 0.0
        %v6132 = vadd.f32 %v6130, %v6131
        %v6133 = vrot.slane %v6132, 4
        %v6134 = vadd.f32 %v6132, %v6133
        %v6135 = vrot.slane %v6134, 2
        %v6136 = vadd.f32 %v6134, %v6135
        %v6137 = vrot.slane %v6136, 1
        %v6138 = vadd.f32 %v6136, %v6137
        %v6139 = vsel %vm5704, %v5644, 0.0
        %v6140 = vsel %vm5704, %v5645, 0.0
        %v6141 = vadd.f32 %v6139, %v6140
        %v6142 = vrot.slane %v6141, 4
        %v6143 = vadd.f32 %v6141, %v6142
        %v6144 = vrot.slane %v6143, 2
        %v6145 = vadd.f32 %v6143, %v6144
        %v6146 = vrot.slane %v6145, 1
        %v6147 = vadd.f32 %v6145, %v6146
        %v6148 = vsel %vm5704, %v5646, 0.0
        %v6149 = vsel %vm5704, %v5647, 0.0
        %v6150 = vadd.f32 %v6148, %v6149
        %v6151 = vrot.slane %v6150, 4
        %v6152 = vadd.f32 %v6150, %v6151
        %v6153 = vrot.slane %v6152, 2
        %v6154 = vadd.f32 %v6152, %v6153
        %v6155 = vrot.slane %v6154, 1
        %v6156 = vadd.f32 %v6154, %v6155
        %v6157 = vsel %vm5704, %v5648, 0.0
        %v6158 = vsel %vm5704, %v5649, 0.0
        %v6159 = vadd.f32 %v6157, %v6158
        %v6160 = vrot.slane %v6159, 4
        %v6161 = vadd.f32 %v6159, %v6160
        %v6162 = vrot.slane %v6161, 2
        %v6163 = vadd.f32 %v6161, %v6162
        %v6164 = vrot.slane %v6163, 1
        %v6165 = vadd.f32 %v6163, %v6164
        %v6166 = vsel %vm5704, %v5650, 0.0
        %v6167 = vsel %vm5704, %v5651, 0.0
        %v6168 = vadd.f32 %v6166, %v6167
        %v6169 = vrot.slane %v6168, 4
        %v6170 = vadd.f32 %v6168, %v6169
        %v6171 = vrot.slane %v6170, 2
        %v6172 = vadd.f32 %v6170, %v6171
        %v6173 = vrot.slane %v6172, 1
        %v6174 = vadd.f32 %v6172, %v6173
        %v6175 = vsel %vm5704, %v5652, 0.0
        %v6176 = vsel %vm5704, %v5653, 0.0
        %v6177 = vadd.f32 %v6175, %v6176
        %v6178 = vrot.slane %v6177, 4
        %v6179 = vadd.f32 %v6177, %v6178
        %v6180 = vrot.slane %v6179, 2
        %v6181 = vadd.f32 %v6179, %v6180
        %v6182 = vrot.slane %v6181, 1
        %v6183 = vadd.f32 %v6181, %v6182
        %v6184 = vsel %vm5704, %v5654, 0.0
        %v6185 = vsel %vm5704, %v5655, 0.0
        %v6186 = vadd.f32 %v6184, %v6185
        %v6187 = vrot.slane %v6186, 4
        %v6188 = vadd.f32 %v6186, %v6187
        %v6189 = vrot.slane %v6188, 2
        %v6190 = vadd.f32 %v6188, %v6189
        %v6191 = vrot.slane %v6190, 1
        %v6192 = vadd.f32 %v6190, %v6191
        %v6193 = vsel %vm5704, %v5656, 0.0
        %v6194 = vsel %vm5704, %v5657, 0.0
        %v6195 = vadd.f32 %v6193, %v6194
        %v6196 = vrot.slane %v6195, 4
        %v6197 = vadd.f32 %v6195, %v6196
        %v6198 = vrot.slane %v6197, 2
        %v6199 = vadd.f32 %v6197, %v6198
        %v6200 = vrot.slane %v6199, 1
        %v6201 = vadd.f32 %v6199, %v6200
        %v6202 = vsel %vm5704, %v5658, 0.0
        %v6203 = vsel %vm5704, %v5659, 0.0
        %v6204 = vadd.f32 %v6202, %v6203
        %v6205 = vrot.slane %v6204, 4
        %v6206 = vadd.f32 %v6204, %v6205
        %v6207 = vrot.slane %v6206, 2
        %v6208 = vadd.f32 %v6206, %v6207
        %v6209 = vrot.slane %v6208, 1
        %v6210 = vadd.f32 %v6208, %v6209
        %v6211 = vsel %vm5704, %v5660, 0.0
        %v6212 = vsel %vm5704, %v5661, 0.0
        %v6213 = vadd.f32 %v6211, %v6212
        %v6214 = vrot.slane %v6213, 4
        %v6215 = vadd.f32 %v6213, %v6214
        %v6216 = vrot.slane %v6215, 2
        %v6217 = vadd.f32 %v6215, %v6216
        %v6218 = vrot.slane %v6217, 1
        %v6219 = vadd.f32 %v6217, %v6218
        %v6220 = vsel %vm5704, %v5662, 0.0
        %v6221 = vsel %vm5704, %v5663, 0.0
        %v6222 = vadd.f32 %v6220, %v6221
        %v6223 = vrot.slane %v6222, 4
        %v6224 = vadd.f32 %v6222, %v6223
        %v6225 = vrot.slane %v6224, 2
        %v6226 = vadd.f32 %v6224, %v6225
        %v6227 = vrot.slane %v6226, 1
        %v6228 = vadd.f32 %v6226, %v6227
        %v6229 = vsel %vm5704, %v5664, 0.0
        %v6230 = vsel %vm5704, %v5665, 0.0
        %v6231 = vadd.f32 %v6229, %v6230
        %v6232 = vrot.slane %v6231, 4
        %v6233 = vadd.f32 %v6231, %v6232
        %v6234 = vrot.slane %v6233, 2
        %v6235 = vadd.f32 %v6233, %v6234
        %v6236 = vrot.slane %v6235, 1
        %v6237 = vadd.f32 %v6235, %v6236
        %v6238 = vsel %vm5704, %v5666, 0.0
        %v6239 = vsel %vm5704, %v5667, 0.0
        %v6240 = vadd.f32 %v6238, %v6239
        %v6241 = vrot.slane %v6240, 4
        %v6242 = vadd.f32 %v6240, %v6241
        %v6243 = vrot.slane %v6242, 2
        %v6244 = vadd.f32 %v6242, %v6243
        %v6245 = vrot.slane %v6244, 1
        %v6246 = vadd.f32 %v6244, %v6245
        %v6247 = vsel %vm5704, %v5668, 0.0
        %v6248 = vsel %vm5704, %v5669, 0.0
        %v6249 = vadd.f32 %v6247, %v6248
        %v6250 = vrot.slane %v6249, 4
        %v6251 = vadd.f32 %v6249, %v6250
        %v6252 = vrot.slane %v6251, 2
        %v6253 = vadd.f32 %v6251, %v6252
        %v6254 = vrot.slane %v6253, 1
        %v6255 = vadd.f32 %v6253, %v6254
        %v6256 = vsel %vm5704, %v5670, 0.0
        %v6257 = vsel %vm5704, %v5671, 0.0
        %v6258 = vadd.f32 %v6256, %v6257
        %v6259 = vrot.slane %v6258, 4
        %v6260 = vadd.f32 %v6258, %v6259
        %v6261 = vrot.slane %v6260, 2
        %v6262 = vadd.f32 %v6260, %v6261
        %v6263 = vrot.slane %v6262, 1
        %v6264 = vadd.f32 %v6262, %v6263
        %v6265 = vsel %vm5704, %v5672, 0.0
        %v6266 = vsel %vm5704, %v5673, 0.0
        %v6267 = vadd.f32 %v6265, %v6266
        %v6268 = vrot.slane %v6267, 4
        %v6269 = vadd.f32 %v6267, %v6268
        %v6270 = vrot.slane %v6269, 2
        %v6271 = vadd.f32 %v6269, %v6270
        %v6272 = vrot.slane %v6271, 1
        %v6273 = vadd.f32 %v6271, %v6272
        %v6274 = vsel %vm5704, %v5674, 0.0
        %v6275 = vsel %vm5704, %v5675, 0.0
        %v6276 = vadd.f32 %v6274, %v6275
        %v6277 = vrot.slane %v6276, 4
        %v6278 = vadd.f32 %v6276, %v6277
        %v6279 = vrot.slane %v6278, 2
        %v6280 = vadd.f32 %v6278, %v6279
        %v6281 = vrot.slane %v6280, 1
        %v6282 = vadd.f32 %v6280, %v6281
        %v6283 = vsel %vm5704, %v5676, 0.0
        %v6284 = vsel %vm5704, %v5677, 0.0
        %v6285 = vadd.f32 %v6283, %v6284
        %v6286 = vrot.slane %v6285, 4
        %v6287 = vadd.f32 %v6285, %v6286
        %v6288 = vrot.slane %v6287, 2
        %v6289 = vadd.f32 %v6287, %v6288
        %v6290 = vrot.slane %v6289, 1
        %v6291 = vadd.f32 %v6289, %v6290
        %v6292 = vsel %vm5704, %v5678, 0.0
        %v6293 = vsel %vm5704, %v5679, 0.0
        %v6294 = vadd.f32 %v6292, %v6293
        %v6295 = vrot.slane %v6294, 4
        %v6296 = vadd.f32 %v6294, %v6295
        %v6297 = vrot.slane %v6296, 2
        %v6298 = vadd.f32 %v6296, %v6297
        %v6299 = vrot.slane %v6298, 1
        %v6300 = vadd.f32 %v6298, %v6299
        %v6301 = vsel %vm5704, %v5680, 0.0
        %v6302 = vsel %vm5704, %v5681, 0.0
        %v6303 = vadd.f32 %v6301, %v6302
        %v6304 = vrot.slane %v6303, 4
        %v6305 = vadd.f32 %v6303, %v6304
        %v6306 = vrot.slane %v6305, 2
        %v6307 = vadd.f32 %v6305, %v6306
        %v6308 = vrot.slane %v6307, 1
        %v6309 = vadd.f32 %v6307, %v6308
        %v6310 = vsel %vm5704, %v5682, 0.0
        %v6311 = vsel %vm5704, %v5683, 0.0
        %v6312 = vadd.f32 %v6310, %v6311
        %v6313 = vrot.slane %v6312, 4
        %v6314 = vadd.f32 %v6312, %v6313
        %v6315 = vrot.slane %v6314, 2
        %v6316 = vadd.f32 %v6314, %v6315
        %v6317 = vrot.slane %v6316, 1
        %v6318 = vadd.f32 %v6316, %v6317
        %v6319 = vsel %vm5704, %v5684, 0.0
        %v6320 = vsel %vm5704, %v5685, 0.0
        %v6321 = vadd.f32 %v6319, %v6320
        %v6322 = vrot.slane %v6321, 4
        %v6323 = vadd.f32 %v6321, %v6322
        %v6324 = vrot.slane %v6323, 2
        %v6325 = vadd.f32 %v6323, %v6324
        %v6326 = vrot.slane %v6325, 1
        %v6327 = vadd.f32 %v6325, %v6326
        %v6328 = vsel %vm5704, %v5686, 0.0
        %v6329 = vsel %vm5704, %v5687, 0.0
        %v6330 = vadd.f32 %v6328, %v6329
        %v6331 = vrot.slane %v6330, 4
        %v6332 = vadd.f32 %v6330, %v6331
        %v6333 = vrot.slane %v6332, 2
        %v6334 = vadd.f32 %v6332, %v6333
        %v6335 = vrot.slane %v6334, 1
        %v6336 = vadd.f32 %v6334, %v6335
        %v6337 = vsel %vm5704, %v5688, 0.0
        %v6338 = vsel %vm5704, %v5689, 0.0
        %v6339 = vadd.f32 %v6337, %v6338
        %v6340 = vrot.slane %v6339, 4
        %v6341 = vadd.f32 %v6339, %v6340
        %v6342 = vrot.slane %v6341, 2
        %v6343 = vadd.f32 %v6341, %v6342
        %v6344 = vrot.slane %v6343, 1
        %v6345 = vadd.f32 %v6343, %v6344
        %v6346 = vsel %vm5704, %v5690, 0.0
        %v6347 = vsel %vm5704, %v5691, 0.0
        %v6348 = vadd.f32 %v6346, %v6347
        %v6349 = vrot.slane %v6348, 4
        %v6350 = vadd.f32 %v6348, %v6349
        %v6351 = vrot.slane %v6350, 2
        %v6352 = vadd.f32 %v6350, %v6351
        %v6353 = vrot.slane %v6352, 1
        %v6354 = vadd.f32 %v6352, %v6353
        %v6355 = vsel %vm5704, %v5692, 0.0
        %v6356 = vsel %vm5704, %v5693, 0.0
        %v6357 = vadd.f32 %v6355, %v6356
        %v6358 = vrot.slane %v6357, 4
        %v6359 = vadd.f32 %v6357, %v6358
        %v6360 = vrot.slane %v6359, 2
        %v6361 = vadd.f32 %v6359, %v6360
        %v6362 = vrot.slane %v6361, 1
        %v6363 = vadd.f32 %v6361, %v6362
        %v6364 = vsel %vm5704, %v5694, 0.0
        %v6365 = vsel %vm5704, %v5695, 0.0
        %v6366 = vadd.f32 %v6364, %v6365
        %v6367 = vrot.slane %v6366, 4
        %v6368 = vadd.f32 %v6366, %v6367
        %v6369 = vrot.slane %v6368, 2
        %v6370 = vadd.f32 %v6368, %v6369
        %v6371 = vrot.slane %v6370, 1
        %v6372 = vadd.f32 %v6370, %v6371
        %v6373 = vsel %vm5704, %v5696, 0.0
        %v6374 = vsel %vm5704, %v5697, 0.0
        %v6375 = vadd.f32 %v6373, %v6374
        %v6376 = vrot.slane %v6375, 4
        %v6377 = vadd.f32 %v6375, %v6376
        %v6378 = vrot.slane %v6377, 2
        %v6379 = vadd.f32 %v6377, %v6378
        %v6380 = vrot.slane %v6379, 1
        %v6381 = vadd.f32 %v6379, %v6380
        %v6382 = vsel %vm5704, %v5698, 0.0
        %v6383 = vsel %vm5704, %v5699, 0.0
        %v6384 = vadd.f32 %v6382, %v6383
        %v6385 = vrot.slane %v6384, 4
        %v6386 = vadd.f32 %v6384, %v6385
        %v6387 = vrot.slane %v6386, 2
        %v6388 = vadd.f32 %v6386, %v6387
        %v6389 = vrot.slane %v6388, 1
        %v6390 = vadd.f32 %v6388, %v6389
        %v6391 = vsel %vm5704, %v5700, 0.0
        %v6392 = vsel %vm5704, %v5701, 0.0
        %v6393 = vadd.f32 %v6391, %v6392
        %v6394 = vrot.slane %v6393, 4
        %v6395 = vadd.f32 %v6393, %v6394
        %v6396 = vrot.slane %v6395, 2
        %v6397 = vadd.f32 %v6395, %v6396
        %v6398 = vrot.slane %v6397, 1
        %v6399 = vadd.f32 %v6397, %v6398
        %v6400 = vsel %vm5704, %v5702, 0.0
        %v6401 = vsel %vm5704, %v5703, 0.0
        %v6402 = vadd.f32 %v6400, %v6401
        %v6403 = vrot.slane %v6402, 4
        %v6404 = vadd.f32 %v6402, %v6403
        %v6405 = vrot.slane %v6404, 2
        %v6406 = vadd.f32 %v6404, %v6405
        %v6407 = vrot.slane %v6406, 1
        %v6408 = vadd.f32 %v6406, %v6407
        %v6409 = vmul.f32 %v5576, %v5576
        %v6410 = vmul.f32 %v5577, %v5577
        %v6411 = vmul.f32 %v5578, %v5578
        %v6412 = vmul.f32 %v5579, %v5579
        %v6413 = vmul.f32 %v5580, %v5580
        %v6414 = vmul.f32 %v5581, %v5581
        %v6415 = vmul.f32 %v5582, %v5582
        %v6416 = vmul.f32 %v5583, %v5583
        %v6417 = vmul.f32 %v5584, %v5584
        %v6418 = vmul.f32 %v5585, %v5585
        %v6419 = vmul.f32 %v5586, %v5586
        %v6420 = vmul.f32 %v5587, %v5587
        %v6421 = vmul.f32 %v5588, %v5588
        %v6422 = vmul.f32 %v5589, %v5589
        %v6423 = vmul.f32 %v5590, %v5590
        %v6424 = vmul.f32 %v5591, %v5591
        %v6425 = vmul.f32 %v5592, %v5592
        %v6426 = vmul.f32 %v5593, %v5593
        %v6427 = vmul.f32 %v5594, %v5594
        %v6428 = vmul.f32 %v5595, %v5595
        %v6429 = vmul.f32 %v5596, %v5596
        %v6430 = vmul.f32 %v5597, %v5597
        %v6431 = vmul.f32 %v5598, %v5598
        %v6432 = vmul.f32 %v5599, %v5599
        %v6433 = vmul.f32 %v5600, %v5600
        %v6434 = vmul.f32 %v5601, %v5601
        %v6435 = vmul.f32 %v5602, %v5602
        %v6436 = vmul.f32 %v5603, %v5603
        %v6437 = vmul.f32 %v5604, %v5604
        %v6438 = vmul.f32 %v5605, %v5605
        %v6439 = vmul.f32 %v5606, %v5606
        %v6440 = vmul.f32 %v5607, %v5607
        %v6441 = vmul.f32 %v5608, %v5608
        %v6442 = vmul.f32 %v5609, %v5609
        %v6443 = vmul.f32 %v5610, %v5610
        %v6444 = vmul.f32 %v5611, %v5611
        %v6445 = vmul.f32 %v5612, %v5612
        %v6446 = vmul.f32 %v5613, %v5613
        %v6447 = vmul.f32 %v5614, %v5614
        %v6448 = vmul.f32 %v5615, %v5615
        %v6449 = vmul.f32 %v5616, %v5616
        %v6450 = vmul.f32 %v5617, %v5617
        %v6451 = vmul.f32 %v5618, %v5618
        %v6452 = vmul.f32 %v5619, %v5619
        %v6453 = vmul.f32 %v5620, %v5620
        %v6454 = vmul.f32 %v5621, %v5621
        %v6455 = vmul.f32 %v5622, %v5622
        %v6456 = vmul.f32 %v5623, %v5623
        %v6457 = vmul.f32 %v5624, %v5624
        %v6458 = vmul.f32 %v5625, %v5625
        %v6459 = vmul.f32 %v5626, %v5626
        %v6460 = vmul.f32 %v5627, %v5627
        %v6461 = vmul.f32 %v5628, %v5628
        %v6462 = vmul.f32 %v5629, %v5629
        %v6463 = vmul.f32 %v5630, %v5630
        %v6464 = vmul.f32 %v5631, %v5631
        %v6465 = vmul.f32 %v5632, %v5632
        %v6466 = vmul.f32 %v5633, %v5633
        %v6467 = vmul.f32 %v5634, %v5634
        %v6468 = vmul.f32 %v5635, %v5635
        %v6469 = vmul.f32 %v5636, %v5636
        %v6470 = vmul.f32 %v5637, %v5637
        %v6471 = vmul.f32 %v5638, %v5638
        %v6472 = vmul.f32 %v5639, %v5639
        %v6473 = vmul.f32 %v5640, %v5640
        %v6474 = vmul.f32 %v5641, %v5641
        %v6475 = vmul.f32 %v5642, %v5642
        %v6476 = vmul.f32 %v5643, %v5643
        %v6477 = vmul.f32 %v5644, %v5644
        %v6478 = vmul.f32 %v5645, %v5645
        %v6479 = vmul.f32 %v5646, %v5646
        %v6480 = vmul.f32 %v5647, %v5647
        %v6481 = vmul.f32 %v5648, %v5648
        %v6482 = vmul.f32 %v5649, %v5649
        %v6483 = vmul.f32 %v5650, %v5650
        %v6484 = vmul.f32 %v5651, %v5651
        %v6485 = vmul.f32 %v5652, %v5652
        %v6486 = vmul.f32 %v5653, %v5653
        %v6487 = vmul.f32 %v5654, %v5654
        %v6488 = vmul.f32 %v5655, %v5655
        %v6489 = vmul.f32 %v5656, %v5656
        %v6490 = vmul.f32 %v5657, %v5657
        %v6491 = vmul.f32 %v5658, %v5658
        %v6492 = vmul.f32 %v5659, %v5659
        %v6493 = vmul.f32 %v5660, %v5660
        %v6494 = vmul.f32 %v5661, %v5661
        %v6495 = vmul.f32 %v5662, %v5662
        %v6496 = vmul.f32 %v5663, %v5663
        %v6497 = vmul.f32 %v5664, %v5664
        %v6498 = vmul.f32 %v5665, %v5665
        %v6499 = vmul.f32 %v5666, %v5666
        %v6500 = vmul.f32 %v5667, %v5667
        %v6501 = vmul.f32 %v5668, %v5668
        %v6502 = vmul.f32 %v5669, %v5669
        %v6503 = vmul.f32 %v5670, %v5670
        %v6504 = vmul.f32 %v5671, %v5671
        %v6505 = vmul.f32 %v5672, %v5672
        %v6506 = vmul.f32 %v5673, %v5673
        %v6507 = vmul.f32 %v5674, %v5674
        %v6508 = vmul.f32 %v5675, %v5675
        %v6509 = vmul.f32 %v5676, %v5676
        %v6510 = vmul.f32 %v5677, %v5677
        %v6511 = vmul.f32 %v5678, %v5678
        %v6512 = vmul.f32 %v5679, %v5679
        %v6513 = vmul.f32 %v5680, %v5680
        %v6514 = vmul.f32 %v5681, %v5681
        %v6515 = vmul.f32 %v5682, %v5682
        %v6516 = vmul.f32 %v5683, %v5683
        %v6517 = vmul.f32 %v5684, %v5684
        %v6518 = vmul.f32 %v5685, %v5685
        %v6519 = vmul.f32 %v5686, %v5686
        %v6520 = vmul.f32 %v5687, %v5687
        %v6521 = vmul.f32 %v5688, %v5688
        %v6522 = vmul.f32 %v5689, %v5689
        %v6523 = vmul.f32 %v5690, %v5690
        %v6524 = vmul.f32 %v5691, %v5691
        %v6525 = vmul.f32 %v5692, %v5692
        %v6526 = vmul.f32 %v5693, %v5693
        %v6527 = vmul.f32 %v5694, %v5694
        %v6528 = vmul.f32 %v5695, %v5695
        %v6529 = vmul.f32 %v5696, %v5696
        %v6530 = vmul.f32 %v5697, %v5697
        %v6531 = vmul.f32 %v5698, %v5698
        %v6532 = vmul.f32 %v5699, %v5699
        %v6533 = vmul.f32 %v5700, %v5700
        %v6534 = vmul.f32 %v5701, %v5701
        %v6535 = vmul.f32 %v5702, %v5702
        %v6536 = vmul.f32 %v5703, %v5703
        %v6537 = vsel %vm5704, %v6409, 0.0
        %v6538 = vsel %vm5704, %v6410, 0.0
        %v6539 = vadd.f32 %v6537, %v6538
        %v6540 = vrot.slane %v6539, 4
        %v6541 = vadd.f32 %v6539, %v6540
        %v6542 = vrot.slane %v6541, 2
        %v6543 = vadd.f32 %v6541, %v6542
        %v6544 = vrot.slane %v6543, 1
        %v6545 = vadd.f32 %v6543, %v6544
        %v6546 = vsel %vm5704, %v6411, 0.0
        %v6547 = vsel %vm5704, %v6412, 0.0
        %v6548 = vadd.f32 %v6546, %v6547
        %v6549 = vrot.slane %v6548, 4
        %v6550 = vadd.f32 %v6548, %v6549
        %v6551 = vrot.slane %v6550, 2
        %v6552 = vadd.f32 %v6550, %v6551
        %v6553 = vrot.slane %v6552, 1
        %v6554 = vadd.f32 %v6552, %v6553
        %v6555 = vsel %vm5704, %v6413, 0.0
        %v6556 = vsel %vm5704, %v6414, 0.0
        %v6557 = vadd.f32 %v6555, %v6556
        %v6558 = vrot.slane %v6557, 4
        %v6559 = vadd.f32 %v6557, %v6558
        %v6560 = vrot.slane %v6559, 2
        %v6561 = vadd.f32 %v6559, %v6560
        %v6562 = vrot.slane %v6561, 1
        %v6563 = vadd.f32 %v6561, %v6562
        %v6564 = vsel %vm5704, %v6415, 0.0
        %v6565 = vsel %vm5704, %v6416, 0.0
        %v6566 = vadd.f32 %v6564, %v6565
        %v6567 = vrot.slane %v6566, 4
        %v6568 = vadd.f32 %v6566, %v6567
        %v6569 = vrot.slane %v6568, 2
        %v6570 = vadd.f32 %v6568, %v6569
        %v6571 = vrot.slane %v6570, 1
        %v6572 = vadd.f32 %v6570, %v6571
        %v6573 = vsel %vm5704, %v6417, 0.0
        %v6574 = vsel %vm5704, %v6418, 0.0
        %v6575 = vadd.f32 %v6573, %v6574
        %v6576 = vrot.slane %v6575, 4
        %v6577 = vadd.f32 %v6575, %v6576
        %v6578 = vrot.slane %v6577, 2
        %v6579 = vadd.f32 %v6577, %v6578
        %v6580 = vrot.slane %v6579, 1
        %v6581 = vadd.f32 %v6579, %v6580
        %v6582 = vsel %vm5704, %v6419, 0.0
        %v6583 = vsel %vm5704, %v6420, 0.0
        %v6584 = vadd.f32 %v6582, %v6583
        %v6585 = vrot.slane %v6584, 4
        %v6586 = vadd.f32 %v6584, %v6585
        %v6587 = vrot.slane %v6586, 2
        %v6588 = vadd.f32 %v6586, %v6587
        %v6589 = vrot.slane %v6588, 1
        %v6590 = vadd.f32 %v6588, %v6589
        %v6591 = vsel %vm5704, %v6421, 0.0
        %v6592 = vsel %vm5704, %v6422, 0.0
        %v6593 = vadd.f32 %v6591, %v6592
        %v6594 = vrot.slane %v6593, 4
        %v6595 = vadd.f32 %v6593, %v6594
        %v6596 = vrot.slane %v6595, 2
        %v6597 = vadd.f32 %v6595, %v6596
        %v6598 = vrot.slane %v6597, 1
        %v6599 = vadd.f32 %v6597, %v6598
        %v6600 = vsel %vm5704, %v6423, 0.0
        %v6601 = vsel %vm5704, %v6424, 0.0
        %v6602 = vadd.f32 %v6600, %v6601
        %v6603 = vrot.slane %v6602, 4
        %v6604 = vadd.f32 %v6602, %v6603
        %v6605 = vrot.slane %v6604, 2
        %v6606 = vadd.f32 %v6604, %v6605
        %v6607 = vrot.slane %v6606, 1
        %v6608 = vadd.f32 %v6606, %v6607
        %v6609 = vsel %vm5704, %v6425, 0.0
        %v6610 = vsel %vm5704, %v6426, 0.0
        %v6611 = vadd.f32 %v6609, %v6610
        %v6612 = vrot.slane %v6611, 4
        %v6613 = vadd.f32 %v6611, %v6612
        %v6614 = vrot.slane %v6613, 2
        %v6615 = vadd.f32 %v6613, %v6614
        %v6616 = vrot.slane %v6615, 1
        %v6617 = vadd.f32 %v6615, %v6616
        %v6618 = vsel %vm5704, %v6427, 0.0
        %v6619 = vsel %vm5704, %v6428, 0.0
        %v6620 = vadd.f32 %v6618, %v6619
        %v6621 = vrot.slane %v6620, 4
        %v6622 = vadd.f32 %v6620, %v6621
        %v6623 = vrot.slane %v6622, 2
        %v6624 = vadd.f32 %v6622, %v6623
        %v6625 = vrot.slane %v6624, 1
        %v6626 = vadd.f32 %v6624, %v6625
        %v6627 = vsel %vm5704, %v6429, 0.0
        %v6628 = vsel %vm5704, %v6430, 0.0
        %v6629 = vadd.f32 %v6627, %v6628
        %v6630 = vrot.slane %v6629, 4
        %v6631 = vadd.f32 %v6629, %v6630
        %v6632 = vrot.slane %v6631, 2
        %v6633 = vadd.f32 %v6631, %v6632
        %v6634 = vrot.slane %v6633, 1
        %v6635 = vadd.f32 %v6633, %v6634
        %v6636 = vsel %vm5704, %v6431, 0.0
        %v6637 = vsel %vm5704, %v6432, 0.0
        %v6638 = vadd.f32 %v6636, %v6637
        %v6639 = vrot.slane %v6638, 4
        %v6640 = vadd.f32 %v6638, %v6639
        %v6641 = vrot.slane %v6640, 2
        %v6642 = vadd.f32 %v6640, %v6641
        %v6643 = vrot.slane %v6642, 1
        %v6644 = vadd.f32 %v6642, %v6643
        %v6645 = vsel %vm5704, %v6433, 0.0
        %v6646 = vsel %vm5704, %v6434, 0.0
        %v6647 = vadd.f32 %v6645, %v6646
        %v6648 = vrot.slane %v6647, 4
        %v6649 = vadd.f32 %v6647, %v6648
        %v6650 = vrot.slane %v6649, 2
        %v6651 = vadd.f32 %v6649, %v6650
        %v6652 = vrot.slane %v6651, 1
        %v6653 = vadd.f32 %v6651, %v6652
        %v6654 = vsel %vm5704, %v6435, 0.0
        %v6655 = vsel %vm5704, %v6436, 0.0
        %v6656 = vadd.f32 %v6654, %v6655
        %v6657 = vrot.slane %v6656, 4
        %v6658 = vadd.f32 %v6656, %v6657
        %v6659 = vrot.slane %v6658, 2
        %v6660 = vadd.f32 %v6658, %v6659
        %v6661 = vrot.slane %v6660, 1
        %v6662 = vadd.f32 %v6660, %v6661
        %v6663 = vsel %vm5704, %v6437, 0.0
        %v6664 = vsel %vm5704, %v6438, 0.0
        %v6665 = vadd.f32 %v6663, %v6664
        %v6666 = vrot.slane %v6665, 4
        %v6667 = vadd.f32 %v6665, %v6666
        %v6668 = vrot.slane %v6667, 2
        %v6669 = vadd.f32 %v6667, %v6668
        %v6670 = vrot.slane %v6669, 1
        %v6671 = vadd.f32 %v6669, %v6670
        %v6672 = vsel %vm5704, %v6439, 0.0
        %v6673 = vsel %vm5704, %v6440, 0.0
        %v6674 = vadd.f32 %v6672, %v6673
        %v6675 = vrot.slane %v6674, 4
        %v6676 = vadd.f32 %v6674, %v6675
        %v6677 = vrot.slane %v6676, 2
        %v6678 = vadd.f32 %v6676, %v6677
        %v6679 = vrot.slane %v6678, 1
        %v6680 = vadd.f32 %v6678, %v6679
        %v6681 = vsel %vm5704, %v6441, 0.0
        %v6682 = vsel %vm5704, %v6442, 0.0
        %v6683 = vadd.f32 %v6681, %v6682
        %v6684 = vrot.slane %v6683, 4
        %v6685 = vadd.f32 %v6683, %v6684
        %v6686 = vrot.slane %v6685, 2
        %v6687 = vadd.f32 %v6685, %v6686
        %v6688 = vrot.slane %v6687, 1
        %v6689 = vadd.f32 %v6687, %v6688
        %v6690 = vsel %vm5704, %v6443, 0.0
        %v6691 = vsel %vm5704, %v6444, 0.0
        %v6692 = vadd.f32 %v6690, %v6691
        %v6693 = vrot.slane %v6692, 4
        %v6694 = vadd.f32 %v6692, %v6693
        %v6695 = vrot.slane %v6694, 2
        %v6696 = vadd.f32 %v6694, %v6695
        %v6697 = vrot.slane %v6696, 1
        %v6698 = vadd.f32 %v6696, %v6697
        %v6699 = vsel %vm5704, %v6445, 0.0
        %v6700 = vsel %vm5704, %v6446, 0.0
        %v6701 = vadd.f32 %v6699, %v6700
        %v6702 = vrot.slane %v6701, 4
        %v6703 = vadd.f32 %v6701, %v6702
        %v6704 = vrot.slane %v6703, 2
        %v6705 = vadd.f32 %v6703, %v6704
        %v6706 = vrot.slane %v6705, 1
        %v6707 = vadd.f32 %v6705, %v6706
        %v6708 = vsel %vm5704, %v6447, 0.0
        %v6709 = vsel %vm5704, %v6448, 0.0
        %v6710 = vadd.f32 %v6708, %v6709
        %v6711 = vrot.slane %v6710, 4
        %v6712 = vadd.f32 %v6710, %v6711
        %v6713 = vrot.slane %v6712, 2
        %v6714 = vadd.f32 %v6712, %v6713
        %v6715 = vrot.slane %v6714, 1
        %v6716 = vadd.f32 %v6714, %v6715
        %v6717 = vsel %vm5704, %v6449, 0.0
        %v6718 = vsel %vm5704, %v6450, 0.0
        %v6719 = vadd.f32 %v6717, %v6718
        %v6720 = vrot.slane %v6719, 4
        %v6721 = vadd.f32 %v6719, %v6720
        %v6722 = vrot.slane %v6721, 2
        %v6723 = vadd.f32 %v6721, %v6722
        %v6724 = vrot.slane %v6723, 1
        %v6725 = vadd.f32 %v6723, %v6724
        %v6726 = vsel %vm5704, %v6451, 0.0
        %v6727 = vsel %vm5704, %v6452, 0.0
        %v6728 = vadd.f32 %v6726, %v6727
        %v6729 = vrot.slane %v6728, 4
        %v6730 = vadd.f32 %v6728, %v6729
        %v6731 = vrot.slane %v6730, 2
        %v6732 = vadd.f32 %v6730, %v6731
        %v6733 = vrot.slane %v6732, 1
        %v6734 = vadd.f32 %v6732, %v6733
        %v6735 = vsel %vm5704, %v6453, 0.0
        %v6736 = vsel %vm5704, %v6454, 0.0
        %v6737 = vadd.f32 %v6735, %v6736
        %v6738 = vrot.slane %v6737, 4
        %v6739 = vadd.f32 %v6737, %v6738
        %v6740 = vrot.slane %v6739, 2
        %v6741 = vadd.f32 %v6739, %v6740
        %v6742 = vrot.slane %v6741, 1
        %v6743 = vadd.f32 %v6741, %v6742
        %v6744 = vsel %vm5704, %v6455, 0.0
        %v6745 = vsel %vm5704, %v6456, 0.0
        %v6746 = vadd.f32 %v6744, %v6745
        %v6747 = vrot.slane %v6746, 4
        %v6748 = vadd.f32 %v6746, %v6747
        %v6749 = vrot.slane %v6748, 2
        %v6750 = vadd.f32 %v6748, %v6749
        %v6751 = vrot.slane %v6750, 1
        %v6752 = vadd.f32 %v6750, %v6751
        %v6753 = vsel %vm5704, %v6457, 0.0
        %v6754 = vsel %vm5704, %v6458, 0.0
        %v6755 = vadd.f32 %v6753, %v6754
        %v6756 = vrot.slane %v6755, 4
        %v6757 = vadd.f32 %v6755, %v6756
        %v6758 = vrot.slane %v6757, 2
        %v6759 = vadd.f32 %v6757, %v6758
        %v6760 = vrot.slane %v6759, 1
        %v6761 = vadd.f32 %v6759, %v6760
        %v6762 = vsel %vm5704, %v6459, 0.0
        %v6763 = vsel %vm5704, %v6460, 0.0
        %v6764 = vadd.f32 %v6762, %v6763
        %v6765 = vrot.slane %v6764, 4
        %v6766 = vadd.f32 %v6764, %v6765
        %v6767 = vrot.slane %v6766, 2
        %v6768 = vadd.f32 %v6766, %v6767
        %v6769 = vrot.slane %v6768, 1
        %v6770 = vadd.f32 %v6768, %v6769
        %v6771 = vsel %vm5704, %v6461, 0.0
        %v6772 = vsel %vm5704, %v6462, 0.0
        %v6773 = vadd.f32 %v6771, %v6772
        %v6774 = vrot.slane %v6773, 4
        %v6775 = vadd.f32 %v6773, %v6774
        %v6776 = vrot.slane %v6775, 2
        %v6777 = vadd.f32 %v6775, %v6776
        %v6778 = vrot.slane %v6777, 1
        %v6779 = vadd.f32 %v6777, %v6778
        %v6780 = vsel %vm5704, %v6463, 0.0
        %v6781 = vsel %vm5704, %v6464, 0.0
        %v6782 = vadd.f32 %v6780, %v6781
        %v6783 = vrot.slane %v6782, 4
        %v6784 = vadd.f32 %v6782, %v6783
        %v6785 = vrot.slane %v6784, 2
        %v6786 = vadd.f32 %v6784, %v6785
        %v6787 = vrot.slane %v6786, 1
        %v6788 = vadd.f32 %v6786, %v6787
        %v6789 = vsel %vm5704, %v6465, 0.0
        %v6790 = vsel %vm5704, %v6466, 0.0
        %v6791 = vadd.f32 %v6789, %v6790
        %v6792 = vrot.slane %v6791, 4
        %v6793 = vadd.f32 %v6791, %v6792
        %v6794 = vrot.slane %v6793, 2
        %v6795 = vadd.f32 %v6793, %v6794
        %v6796 = vrot.slane %v6795, 1
        %v6797 = vadd.f32 %v6795, %v6796
        %v6798 = vsel %vm5704, %v6467, 0.0
        %v6799 = vsel %vm5704, %v6468, 0.0
        %v6800 = vadd.f32 %v6798, %v6799
        %v6801 = vrot.slane %v6800, 4
        %v6802 = vadd.f32 %v6800, %v6801
        %v6803 = vrot.slane %v6802, 2
        %v6804 = vadd.f32 %v6802, %v6803
        %v6805 = vrot.slane %v6804, 1
        %v6806 = vadd.f32 %v6804, %v6805
        %v6807 = vsel %vm5704, %v6469, 0.0
        %v6808 = vsel %vm5704, %v6470, 0.0
        %v6809 = vadd.f32 %v6807, %v6808
        %v6810 = vrot.slane %v6809, 4
        %v6811 = vadd.f32 %v6809, %v6810
        %v6812 = vrot.slane %v6811, 2
        %v6813 = vadd.f32 %v6811, %v6812
        %v6814 = vrot.slane %v6813, 1
        %v6815 = vadd.f32 %v6813, %v6814
        %v6816 = vsel %vm5704, %v6471, 0.0
        %v6817 = vsel %vm5704, %v6472, 0.0
        %v6818 = vadd.f32 %v6816, %v6817
        %v6819 = vrot.slane %v6818, 4
        %v6820 = vadd.f32 %v6818, %v6819
        %v6821 = vrot.slane %v6820, 2
        %v6822 = vadd.f32 %v6820, %v6821
        %v6823 = vrot.slane %v6822, 1
        %v6824 = vadd.f32 %v6822, %v6823
        %v6825 = vsel %vm5704, %v6473, 0.0
        %v6826 = vsel %vm5704, %v6474, 0.0
        %v6827 = vadd.f32 %v6825, %v6826
        %v6828 = vrot.slane %v6827, 4
        %v6829 = vadd.f32 %v6827, %v6828
        %v6830 = vrot.slane %v6829, 2
        %v6831 = vadd.f32 %v6829, %v6830
        %v6832 = vrot.slane %v6831, 1
        %v6833 = vadd.f32 %v6831, %v6832
        %v6834 = vsel %vm5704, %v6475, 0.0
        %v6835 = vsel %vm5704, %v6476, 0.0
        %v6836 = vadd.f32 %v6834, %v6835
        %v6837 = vrot.slane %v6836, 4
        %v6838 = vadd.f32 %v6836, %v6837
        %v6839 = vrot.slane %v6838, 2
        %v6840 = vadd.f32 %v6838, %v6839
        %v6841 = vrot.slane %v6840, 1
        %v6842 = vadd.f32 %v6840, %v6841
        %v6843 = vsel %vm5704, %v6477, 0.0
        %v6844 = vsel %vm5704, %v6478, 0.0
        %v6845 = vadd.f32 %v6843, %v6844
        %v6846 = vrot.slane %v6845, 4
        %v6847 = vadd.f32 %v6845, %v6846
        %v6848 = vrot.slane %v6847, 2
        %v6849 = vadd.f32 %v6847, %v6848
        %v6850 = vrot.slane %v6849, 1
        %v6851 = vadd.f32 %v6849, %v6850
        %v6852 = vsel %vm5704, %v6479, 0.0
        %v6853 = vsel %vm5704, %v6480, 0.0
        %v6854 = vadd.f32 %v6852, %v6853
        %v6855 = vrot.slane %v6854, 4
        %v6856 = vadd.f32 %v6854, %v6855
        %v6857 = vrot.slane %v6856, 2
        %v6858 = vadd.f32 %v6856, %v6857
        %v6859 = vrot.slane %v6858, 1
        %v6860 = vadd.f32 %v6858, %v6859
        %v6861 = vsel %vm5704, %v6481, 0.0
        %v6862 = vsel %vm5704, %v6482, 0.0
        %v6863 = vadd.f32 %v6861, %v6862
        %v6864 = vrot.slane %v6863, 4
        %v6865 = vadd.f32 %v6863, %v6864
        %v6866 = vrot.slane %v6865, 2
        %v6867 = vadd.f32 %v6865, %v6866
        %v6868 = vrot.slane %v6867, 1
        %v6869 = vadd.f32 %v6867, %v6868
        %v6870 = vsel %vm5704, %v6483, 0.0
        %v6871 = vsel %vm5704, %v6484, 0.0
        %v6872 = vadd.f32 %v6870, %v6871
        %v6873 = vrot.slane %v6872, 4
        %v6874 = vadd.f32 %v6872, %v6873
        %v6875 = vrot.slane %v6874, 2
        %v6876 = vadd.f32 %v6874, %v6875
        %v6877 = vrot.slane %v6876, 1
        %v6878 = vadd.f32 %v6876, %v6877
        %v6879 = vsel %vm5704, %v6485, 0.0
        %v6880 = vsel %vm5704, %v6486, 0.0
        %v6881 = vadd.f32 %v6879, %v6880
        %v6882 = vrot.slane %v6881, 4
        %v6883 = vadd.f32 %v6881, %v6882
        %v6884 = vrot.slane %v6883, 2
        %v6885 = vadd.f32 %v6883, %v6884
        %v6886 = vrot.slane %v6885, 1
        %v6887 = vadd.f32 %v6885, %v6886
        %v6888 = vsel %vm5704, %v6487, 0.0
        %v6889 = vsel %vm5704, %v6488, 0.0
        %v6890 = vadd.f32 %v6888, %v6889
        %v6891 = vrot.slane %v6890, 4
        %v6892 = vadd.f32 %v6890, %v6891
        %v6893 = vrot.slane %v6892, 2
        %v6894 = vadd.f32 %v6892, %v6893
        %v6895 = vrot.slane %v6894, 1
        %v6896 = vadd.f32 %v6894, %v6895
        %v6897 = vsel %vm5704, %v6489, 0.0
        %v6898 = vsel %vm5704, %v6490, 0.0
        %v6899 = vadd.f32 %v6897, %v6898
        %v6900 = vrot.slane %v6899, 4
        %v6901 = vadd.f32 %v6899, %v6900
        %v6902 = vrot.slane %v6901, 2
        %v6903 = vadd.f32 %v6901, %v6902
        %v6904 = vrot.slane %v6903, 1
        %v6905 = vadd.f32 %v6903, %v6904
        %v6906 = vsel %vm5704, %v6491, 0.0
        %v6907 = vsel %vm5704, %v6492, 0.0
        %v6908 = vadd.f32 %v6906, %v6907
        %v6909 = vrot.slane %v6908, 4
        %v6910 = vadd.f32 %v6908, %v6909
        %v6911 = vrot.slane %v6910, 2
        %v6912 = vadd.f32 %v6910, %v6911
        %v6913 = vrot.slane %v6912, 1
        %v6914 = vadd.f32 %v6912, %v6913
        %v6915 = vsel %vm5704, %v6493, 0.0
        %v6916 = vsel %vm5704, %v6494, 0.0
        %v6917 = vadd.f32 %v6915, %v6916
        %v6918 = vrot.slane %v6917, 4
        %v6919 = vadd.f32 %v6917, %v6918
        %v6920 = vrot.slane %v6919, 2
        %v6921 = vadd.f32 %v6919, %v6920
        %v6922 = vrot.slane %v6921, 1
        %v6923 = vadd.f32 %v6921, %v6922
        %v6924 = vsel %vm5704, %v6495, 0.0
        %v6925 = vsel %vm5704, %v6496, 0.0
        %v6926 = vadd.f32 %v6924, %v6925
        %v6927 = vrot.slane %v6926, 4
        %v6928 = vadd.f32 %v6926, %v6927
        %v6929 = vrot.slane %v6928, 2
        %v6930 = vadd.f32 %v6928, %v6929
        %v6931 = vrot.slane %v6930, 1
        %v6932 = vadd.f32 %v6930, %v6931
        %v6933 = vsel %vm5704, %v6497, 0.0
        %v6934 = vsel %vm5704, %v6498, 0.0
        %v6935 = vadd.f32 %v6933, %v6934
        %v6936 = vrot.slane %v6935, 4
        %v6937 = vadd.f32 %v6935, %v6936
        %v6938 = vrot.slane %v6937, 2
        %v6939 = vadd.f32 %v6937, %v6938
        %v6940 = vrot.slane %v6939, 1
        %v6941 = vadd.f32 %v6939, %v6940
        %v6942 = vsel %vm5704, %v6499, 0.0
        %v6943 = vsel %vm5704, %v6500, 0.0
        %v6944 = vadd.f32 %v6942, %v6943
        %v6945 = vrot.slane %v6944, 4
        %v6946 = vadd.f32 %v6944, %v6945
        %v6947 = vrot.slane %v6946, 2
        %v6948 = vadd.f32 %v6946, %v6947
        %v6949 = vrot.slane %v6948, 1
        %v6950 = vadd.f32 %v6948, %v6949
        %v6951 = vsel %vm5704, %v6501, 0.0
        %v6952 = vsel %vm5704, %v6502, 0.0
        %v6953 = vadd.f32 %v6951, %v6952
        %v6954 = vrot.slane %v6953, 4
        %v6955 = vadd.f32 %v6953, %v6954
        %v6956 = vrot.slane %v6955, 2
        %v6957 = vadd.f32 %v6955, %v6956
        %v6958 = vrot.slane %v6957, 1
        %v6959 = vadd.f32 %v6957, %v6958
        %v6960 = vsel %vm5704, %v6503, 0.0
        %v6961 = vsel %vm5704, %v6504, 0.0
        %v6962 = vadd.f32 %v6960, %v6961
        %v6963 = vrot.slane %v6962, 4
        %v6964 = vadd.f32 %v6962, %v6963
        %v6965 = vrot.slane %v6964, 2
        %v6966 = vadd.f32 %v6964, %v6965
        %v6967 = vrot.slane %v6966, 1
        %v6968 = vadd.f32 %v6966, %v6967
        %v6969 = vsel %vm5704, %v6505, 0.0
        %v6970 = vsel %vm5704, %v6506, 0.0
        %v6971 = vadd.f32 %v6969, %v6970
        %v6972 = vrot.slane %v6971, 4
        %v6973 = vadd.f32 %v6971, %v6972
        %v6974 = vrot.slane %v6973, 2
        %v6975 = vadd.f32 %v6973, %v6974
        %v6976 = vrot.slane %v6975, 1
        %v6977 = vadd.f32 %v6975, %v6976
        %v6978 = vsel %vm5704, %v6507, 0.0
        %v6979 = vsel %vm5704, %v6508, 0.0
        %v6980 = vadd.f32 %v6978, %v6979
        %v6981 = vrot.slane %v6980, 4
        %v6982 = vadd.f32 %v6980, %v6981
        %v6983 = vrot.slane %v6982, 2
        %v6984 = vadd.f32 %v6982, %v6983
        %v6985 = vrot.slane %v6984, 1
        %v6986 = vadd.f32 %v6984, %v6985
        %v6987 = vsel %vm5704, %v6509, 0.0
        %v6988 = vsel %vm5704, %v6510, 0.0
        %v6989 = vadd.f32 %v6987, %v6988
        %v6990 = vrot.slane %v6989, 4
        %v6991 = vadd.f32 %v6989, %v6990
        %v6992 = vrot.slane %v6991, 2
        %v6993 = vadd.f32 %v6991, %v6992
        %v6994 = vrot.slane %v6993, 1
        %v6995 = vadd.f32 %v6993, %v6994
        %v6996 = vsel %vm5704, %v6511, 0.0
        %v6997 = vsel %vm5704, %v6512, 0.0
        %v6998 = vadd.f32 %v6996, %v6997
        %v6999 = vrot.slane %v6998, 4
        %v7000 = vadd.f32 %v6998, %v6999
        %v7001 = vrot.slane %v7000, 2
        %v7002 = vadd.f32 %v7000, %v7001
        %v7003 = vrot.slane %v7002, 1
        %v7004 = vadd.f32 %v7002, %v7003
        %v7005 = vsel %vm5704, %v6513, 0.0
        %v7006 = vsel %vm5704, %v6514, 0.0
        %v7007 = vadd.f32 %v7005, %v7006
        %v7008 = vrot.slane %v7007, 4
        %v7009 = vadd.f32 %v7007, %v7008
        %v7010 = vrot.slane %v7009, 2
        %v7011 = vadd.f32 %v7009, %v7010
        %v7012 = vrot.slane %v7011, 1
        %v7013 = vadd.f32 %v7011, %v7012
        %v7014 = vsel %vm5704, %v6515, 0.0
        %v7015 = vsel %vm5704, %v6516, 0.0
        %v7016 = vadd.f32 %v7014, %v7015
        %v7017 = vrot.slane %v7016, 4
        %v7018 = vadd.f32 %v7016, %v7017
        %v7019 = vrot.slane %v7018, 2
        %v7020 = vadd.f32 %v7018, %v7019
        %v7021 = vrot.slane %v7020, 1
        %v7022 = vadd.f32 %v7020, %v7021
        %v7023 = vsel %vm5704, %v6517, 0.0
        %v7024 = vsel %vm5704, %v6518, 0.0
        %v7025 = vadd.f32 %v7023, %v7024
        %v7026 = vrot.slane %v7025, 4
        %v7027 = vadd.f32 %v7025, %v7026
        %v7028 = vrot.slane %v7027, 2
        %v7029 = vadd.f32 %v7027, %v7028
        %v7030 = vrot.slane %v7029, 1
        %v7031 = vadd.f32 %v7029, %v7030
        %v7032 = vsel %vm5704, %v6519, 0.0
        %v7033 = vsel %vm5704, %v6520, 0.0
        %v7034 = vadd.f32 %v7032, %v7033
        %v7035 = vrot.slane %v7034, 4
        %v7036 = vadd.f32 %v7034, %v7035
        %v7037 = vrot.slane %v7036, 2
        %v7038 = vadd.f32 %v7036, %v7037
        %v7039 = vrot.slane %v7038, 1
        %v7040 = vadd.f32 %v7038, %v7039
        %v7041 = vsel %vm5704, %v6521, 0.0
        %v7042 = vsel %vm5704, %v6522, 0.0
        %v7043 = vadd.f32 %v7041, %v7042
        %v7044 = vrot.slane %v7043, 4
        %v7045 = vadd.f32 %v7043, %v7044
        %v7046 = vrot.slane %v7045, 2
        %v7047 = vadd.f32 %v7045, %v7046
        %v7048 = vrot.slane %v7047, 1
        %v7049 = vadd.f32 %v7047, %v7048
        %v7050 = vsel %vm5704, %v6523, 0.0
        %v7051 = vsel %vm5704, %v6524, 0.0
        %v7052 = vadd.f32 %v7050, %v7051
        %v7053 = vrot.slane %v7052, 4
        %v7054 = vadd.f32 %v7052, %v7053
        %v7055 = vrot.slane %v7054, 2
        %v7056 = vadd.f32 %v7054, %v7055
        %v7057 = vrot.slane %v7056, 1
        %v7058 = vadd.f32 %v7056, %v7057
        %v7059 = vsel %vm5704, %v6525, 0.0
        %v7060 = vsel %vm5704, %v6526, 0.0
        %v7061 = vadd.f32 %v7059, %v7060
        %v7062 = vrot.slane %v7061, 4
        %v7063 = vadd.f32 %v7061, %v7062
        %v7064 = vrot.slane %v7063, 2
        %v7065 = vadd.f32 %v7063, %v7064
        %v7066 = vrot.slane %v7065, 1
        %v7067 = vadd.f32 %v7065, %v7066
        %v7068 = vsel %vm5704, %v6527, 0.0
        %v7069 = vsel %vm5704, %v6528, 0.0
        %v7070 = vadd.f32 %v7068, %v7069
        %v7071 = vrot.slane %v7070, 4
        %v7072 = vadd.f32 %v7070, %v7071
        %v7073 = vrot.slane %v7072, 2
        %v7074 = vadd.f32 %v7072, %v7073
        %v7075 = vrot.slane %v7074, 1
        %v7076 = vadd.f32 %v7074, %v7075
        %v7077 = vsel %vm5704, %v6529, 0.0
        %v7078 = vsel %vm5704, %v6530, 0.0
        %v7079 = vadd.f32 %v7077, %v7078
        %v7080 = vrot.slane %v7079, 4
        %v7081 = vadd.f32 %v7079, %v7080
        %v7082 = vrot.slane %v7081, 2
        %v7083 = vadd.f32 %v7081, %v7082
        %v7084 = vrot.slane %v7083, 1
        %v7085 = vadd.f32 %v7083, %v7084
        %v7086 = vsel %vm5704, %v6531, 0.0
        %v7087 = vsel %vm5704, %v6532, 0.0
        %v7088 = vadd.f32 %v7086, %v7087
        %v7089 = vrot.slane %v7088, 4
        %v7090 = vadd.f32 %v7088, %v7089
        %v7091 = vrot.slane %v7090, 2
        %v7092 = vadd.f32 %v7090, %v7091
        %v7093 = vrot.slane %v7092, 1
        %v7094 = vadd.f32 %v7092, %v7093
        %v7095 = vsel %vm5704, %v6533, 0.0
        %v7096 = vsel %vm5704, %v6534, 0.0
        %v7097 = vadd.f32 %v7095, %v7096
        %v7098 = vrot.slane %v7097, 4
        %v7099 = vadd.f32 %v7097, %v7098
        %v7100 = vrot.slane %v7099, 2
        %v7101 = vadd.f32 %v7099, %v7100
        %v7102 = vrot.slane %v7101, 1
        %v7103 = vadd.f32 %v7101, %v7102
        %v7104 = vsel %vm5704, %v6535, 0.0
        %v7105 = vsel %vm5704, %v6536, 0.0
        %v7106 = vadd.f32 %v7104, %v7105
        %v7107 = vrot.slane %v7106, 4
        %v7108 = vadd.f32 %v7106, %v7107
        %v7109 = vrot.slane %v7108, 2
        %v7110 = vadd.f32 %v7108, %v7109
        %v7111 = vrot.slane %v7110, 1
        %v7112 = vadd.f32 %v7110, %v7111
        %v7113 = vlaneseq
        %v7114 = vshrl.u32 %v7113, 7
        %v7115 = vadd.s32 %v7114, 8
        %v7116 = vadd.s32 %v7114, 16
        %v7117 = vadd.s32 %v7114, 24
        %v7118 = vadd.s32 %v7114, 32
        %v7119 = vadd.s32 %v7114, 40
        %v7120 = vadd.s32 %v7114, 48
        %v7121 = vadd.s32 %v7114, 56
        %s7122 = smul.u32 %s23, 64
        %v7123 = vstv %s7122
        %v7124 = vadd.s32 %v7114, %v7123
        %v7125 = vadd.s32 %v7115, %v7123
        %v7126 = vadd.s32 %v7116, %v7123
        %v7127 = vadd.s32 %v7117, %v7123
        %v7128 = vadd.s32 %v7118, %v7123
        %v7129 = vadd.s32 %v7119, %v7123
        %v7130 = vadd.s32 %v7120, %v7123
        %v7131 = vadd.s32 %v7121, %v7123
        %vm7132 = vcmp.lt.s32.totalorder %v7124, 128
        %vm7133 = vcmp.lt.s32.totalorder %v7125, 128
        %vm7134 = vcmp.lt.s32.totalorder %v7126, 128
        %vm7135 = vcmp.lt.s32.totalorder %v7127, 128
        %vm7136 = vcmp.lt.s32.totalorder %v7128, 128
        %vm7137 = vcmp.lt.s32.totalorder %v7129, 128
        %vm7138 = vcmp.lt.s32.totalorder %v7130, 128
        %vm7139 = vcmp.lt.s32.totalorder %v7131, 128
        %v7140 = vsel %vm7132, 1, 0
        %v7141 = vsel %vm7133, 1, 0
        %v7142 = vsel %vm7134, 1, 0
        %v7143 = vsel %vm7135, 1, 0
        %v7144 = vsel %vm7136, 1, 0
        %v7145 = vsel %vm7137, 1, 0
        %v7146 = vsel %vm7138, 1, 0
        %v7147 = vsel %vm7139, 1, 0
        %vm7148 = vcmp.eq.s32.totalorder %v7140, 1
        %vm7149 = vcmp.eq.s32.totalorder %v7141, 1
        %vm7150 = vcmp.eq.s32.totalorder %v7142, 1
        %vm7151 = vcmp.eq.s32.totalorder %v7143, 1
        %vm7152 = vcmp.eq.s32.totalorder %v7144, 1
        %vm7153 = vcmp.eq.s32.totalorder %v7145, 1
        %vm7154 = vcmp.eq.s32.totalorder %v7146, 1
        %vm7155 = vcmp.eq.s32.totalorder %v7147, 1
        %vm7220 = vcmask 1041409
        %v7221 = vsel %vm7220, %v5850, %v5841
        %vm7222 = vcmask 1042434
        %v7223 = vsel %vm7222, %v5859, %v7221
        %vm7224 = vcmask 1043459
        %v7225 = vsel %vm7224, %v5868, %v7223
        %vm7226 = vcmask 1044484
        %v7227 = vsel %vm7226, %v5877, %v7225
        %vm7228 = vcmask 1045509
        %v7229 = vsel %vm7228, %v5886, %v7227
        %vm7230 = vcmask 1046534
        %v7231 = vsel %vm7230, %v5895, %v7229
        %vm7232 = vcmask 1047559
        %v7233 = vsel %vm7232, %v5904, %v7231
        %v7234 = vsel %vm7220, %v5922, %v5913
        %v7235 = vsel %vm7222, %v5931, %v7234
        %v7236 = vsel %vm7224, %v5940, %v7235
        %v7237 = vsel %vm7226, %v5949, %v7236
        %v7238 = vsel %vm7228, %v5958, %v7237
        %v7239 = vsel %vm7230, %v5967, %v7238
        %v7240 = vsel %vm7232, %v5976, %v7239
        %v7241 = vsel %vm7220, %v5994, %v5985
        %v7242 = vsel %vm7222, %v6003, %v7241
        %v7243 = vsel %vm7224, %v6012, %v7242
        %v7244 = vsel %vm7226, %v6021, %v7243
        %v7245 = vsel %vm7228, %v6030, %v7244
        %v7246 = vsel %vm7230, %v6039, %v7245
        %v7247 = vsel %vm7232, %v6048, %v7246
        %v7248 = vsel %vm7220, %v6066, %v6057
        %v7249 = vsel %vm7222, %v6075, %v7248
        %v7250 = vsel %vm7224, %v6084, %v7249
        %v7251 = vsel %vm7226, %v6093, %v7250
        %v7252 = vsel %vm7228, %v6102, %v7251
        %v7253 = vsel %vm7230, %v6111, %v7252
        %v7254 = vsel %vm7232, %v6120, %v7253
        %v7255 = vsel %vm7220, %v6138, %v6129
        %v7256 = vsel %vm7222, %v6147, %v7255
        %v7257 = vsel %vm7224, %v6156, %v7256
        %v7258 = vsel %vm7226, %v6165, %v7257
        %v7259 = vsel %vm7228, %v6174, %v7258
        %v7260 = vsel %vm7230, %v6183, %v7259
        %v7261 = vsel %vm7232, %v6192, %v7260
        %v7262 = vsel %vm7220, %v6210, %v6201
        %v7263 = vsel %vm7222, %v6219, %v7262
        %v7264 = vsel %vm7224, %v6228, %v7263
        %v7265 = vsel %vm7226, %v6237, %v7264
        %v7266 = vsel %vm7228, %v6246, %v7265
        %v7267 = vsel %vm7230, %v6255, %v7266
        %v7268 = vsel %vm7232, %v6264, %v7267
        %v7269 = vsel %vm7220, %v6282, %v6273
        %v7270 = vsel %vm7222, %v6291, %v7269
        %v7271 = vsel %vm7224, %v6300, %v7270
        %v7272 = vsel %vm7226, %v6309, %v7271
        %v7273 = vsel %vm7228, %v6318, %v7272
        %v7274 = vsel %vm7230, %v6327, %v7273
        %v7275 = vsel %vm7232, %v6336, %v7274
        %v7276 = vsel %vm7220, %v6354, %v6345
        %v7277 = vsel %vm7222, %v6363, %v7276
        %v7278 = vsel %vm7224, %v6372, %v7277
        %v7279 = vsel %vm7226, %v6381, %v7278
        %v7280 = vsel %vm7228, %v6390, %v7279
        %v7281 = vsel %vm7230, %v6399, %v7280
        %v7282 = vsel %vm7232, %v6408, %v7281
        %v7291 = vsel %vm7148, %v7233, 0.0
        %v7292 = vsel %vm7149, %v7240, 0.0
        %v7293 = vsel %vm7150, %v7247, 0.0
        %v7294 = vsel %vm7151, %v7254, 0.0
        %v7295 = vsel %vm7152, %v7261, 0.0
        %v7296 = vsel %vm7153, %v7268, 0.0
        %v7297 = vsel %vm7154, %v7275, 0.0
        %v7298 = vsel %vm7155, %v7282, 0.0
        %v7299 = vsel %vm5704, %v7291, 0.0
        %v7300 = vsel %vm5704, %v7292, 0.0
        %v7301 = vadd.f32 %v7299, %v7300
        %v7302 = vsel %vm5704, %v7293, 0.0
        %v7303 = vadd.f32 %v7301, %v7302
        %v7304 = vsel %vm5704, %v7294, 0.0
        %v7305 = vadd.f32 %v7303, %v7304
        %v7306 = vsel %vm5704, %v7295, 0.0
        %v7307 = vadd.f32 %v7305, %v7306
        %v7308 = vsel %vm5704, %v7296, 0.0
        %v7309 = vadd.f32 %v7307, %v7308
        %v7310 = vsel %vm5704, %v7297, 0.0
        %v7311 = vadd.f32 %v7309, %v7310
        %v7312 = vsel %vm5704, %v7298, 0.0
        %v7313 = vadd.f32 %v7311, %v7312
        %v7314 = vrot.slane %v7313, 4
        %v7315 = vadd.f32 %v7313, %v7314
        %v7316 = vrot.slane %v7315, 2
        %v7317 = vadd.f32 %v7315, %v7316
        %v7318 = vrot.slane %v7317, 1
        %v7319 = vadd.f32 %v7317, %v7318
        %v7384 = vsel %vm7220, %v6554, %v6545
        %v7385 = vsel %vm7222, %v6563, %v7384
        %v7386 = vsel %vm7224, %v6572, %v7385
        %v7387 = vsel %vm7226, %v6581, %v7386
        %v7388 = vsel %vm7228, %v6590, %v7387
        %v7389 = vsel %vm7230, %v6599, %v7388
        %v7390 = vsel %vm7232, %v6608, %v7389
        %v7391 = vsel %vm7220, %v6626, %v6617
        %v7392 = vsel %vm7222, %v6635, %v7391
        %v7393 = vsel %vm7224, %v6644, %v7392
        %v7394 = vsel %vm7226, %v6653, %v7393
        %v7395 = vsel %vm7228, %v6662, %v7394
        %v7396 = vsel %vm7230, %v6671, %v7395
        %v7397 = vsel %vm7232, %v6680, %v7396
        %v7398 = vsel %vm7220, %v6698, %v6689
        %v7399 = vsel %vm7222, %v6707, %v7398
        %v7400 = vsel %vm7224, %v6716, %v7399
        %v7401 = vsel %vm7226, %v6725, %v7400
        %v7402 = vsel %vm7228, %v6734, %v7401
        %v7403 = vsel %vm7230, %v6743, %v7402
        %v7404 = vsel %vm7232, %v6752, %v7403
        %v7405 = vsel %vm7220, %v6770, %v6761
        %v7406 = vsel %vm7222, %v6779, %v7405
        %v7407 = vsel %vm7224, %v6788, %v7406
        %v7408 = vsel %vm7226, %v6797, %v7407
        %v7409 = vsel %vm7228, %v6806, %v7408
        %v7410 = vsel %vm7230, %v6815, %v7409
        %v7411 = vsel %vm7232, %v6824, %v7410
        %v7412 = vsel %vm7220, %v6842, %v6833
        %v7413 = vsel %vm7222, %v6851, %v7412
        %v7414 = vsel %vm7224, %v6860, %v7413
        %v7415 = vsel %vm7226, %v6869, %v7414
        %v7416 = vsel %vm7228, %v6878, %v7415
        %v7417 = vsel %vm7230, %v6887, %v7416
        %v7418 = vsel %vm7232, %v6896, %v7417
        %v7419 = vsel %vm7220, %v6914, %v6905
        %v7420 = vsel %vm7222, %v6923, %v7419
        %v7421 = vsel %vm7224, %v6932, %v7420
        %v7422 = vsel %vm7226, %v6941, %v7421
        %v7423 = vsel %vm7228, %v6950, %v7422
        %v7424 = vsel %vm7230, %v6959, %v7423
        %v7425 = vsel %vm7232, %v6968, %v7424
        %v7426 = vsel %vm7220, %v6986, %v6977
        %v7427 = vsel %vm7222, %v6995, %v7426
        %v7428 = vsel %vm7224, %v7004, %v7427
        %v7429 = vsel %vm7226, %v7013, %v7428
        %v7430 = vsel %vm7228, %v7022, %v7429
        %v7431 = vsel %vm7230, %v7031, %v7430
        %v7432 = vsel %vm7232, %v7040, %v7431
        %v7433 = vsel %vm7220, %v7058, %v7049
        %v7434 = vsel %vm7222, %v7067, %v7433
        %v7435 = vsel %vm7224, %v7076, %v7434
        %v7436 = vsel %vm7226, %v7085, %v7435
        %v7437 = vsel %vm7228, %v7094, %v7436
        %v7438 = vsel %vm7230, %v7103, %v7437
        %v7439 = vsel %vm7232, %v7112, %v7438
        %v7448 = vsel %vm7148, %v7390, 0.0
        %v7449 = vsel %vm7149, %v7397, 0.0
        %v7450 = vsel %vm7150, %v7404, 0.0
        %v7451 = vsel %vm7151, %v7411, 0.0
        %v7452 = vsel %vm7152, %v7418, 0.0
        %v7453 = vsel %vm7153, %v7425, 0.0
        %v7454 = vsel %vm7154, %v7432, 0.0
        %v7455 = vsel %vm7155, %v7439, 0.0
        %v7456 = vsel %vm5704, %v7448, 0.0
        %v7457 = vsel %vm5704, %v7449, 0.0
        %v7458 = vadd.f32 %v7456, %v7457
        %v7459 = vsel %vm5704, %v7450, 0.0
        %v7460 = vadd.f32 %v7458, %v7459
        %v7461 = vsel %vm5704, %v7451, 0.0
        %v7462 = vadd.f32 %v7460, %v7461
        %v7463 = vsel %vm5704, %v7452, 0.0
        %v7464 = vadd.f32 %v7462, %v7463
        %v7465 = vsel %vm5704, %v7453, 0.0
        %v7466 = vadd.f32 %v7464, %v7465
        %v7467 = vsel %vm5704, %v7454, 0.0
        %v7468 = vadd.f32 %v7466, %v7467
        %v7469 = vsel %vm5704, %v7455, 0.0
        %v7470 = vadd.f32 %v7468, %v7469
        %v7471 = vrot.slane %v7470, 4
        %v7472 = vadd.f32 %v7470, %v7471
        %v7473 = vrot.slane %v7472, 2
        %v7474 = vadd.f32 %v7472, %v7473
        %v7475 = vrot.slane %v7474, 1
        %v7476 = vadd.f32 %v7474, %v7475
        %vm7477 = vcmask 1040384
        %v7478 = vsel %vm7477, %v7319, %v7476
        %vm7479 = vcmask 58368
        %7480 = vst.msk [vmem:[%s342] sm:$0x3] %vm7479, %v7478
        %s7481 = smul.u32 64, %s23
        %p7482 = scmp.lt.s32.totalorder %s7481, 127
        %s7483 = scalar_select %p7482, %s7481, 127
        %s7484 = smul.addr %s7483, 2
        %s7485 = smul.addr %s7484, 8
        %s7486 = scalar_lea.vmem %s7, %s7485
        %s7487 = sand.u32 %s219, 1
        %s7488 = scalar_lea.sflag [#allocation3], %s7487
        %s7489 = sand.u32 %s219, 1
        %s7490 = smul.addr %s7489, 2
        %s7491 = scalar_lea.vmem [#allocation2], %s7490
        // Predicated region
        $region49: #{tpu_custom_call.1} parent=47 // pred_check
          %p7492 = pneg %p203
        $region50: #{tpu_custom_call.1} parent=47 // pred_check_branch
          %7494 = sbr.rel (%p7492) target = $region52
        $region51: #{tpu_custom_call.1} parent=47 // pred_region
          %s7495 = smul.u32 64, %s23
        $region52: #{tpu_custom_call.1} parent=47 // pred_fallthru
          _
        // Predicated region
        $region53: #{tpu_custom_call.1} parent=47 // pred_check
          %p7496 = pneg %p229
        $region54: #{tpu_custom_call.1} parent=47 // pred_check_branch
          %7498 = sbr.rel (%p7496) target = $region56
        $region55: #{tpu_custom_call.1} parent=47 // pred_region
          %7500 = vsyncadd %s7488, 0
          %s7501 = smul.addr %s23, 2
          %s7502 = scalar_lea.hbm %s8, %s7501
          %s7504 = sshll.u32 %s7491, 4
          %s7505 = int_to_ptr.vmem [resolvable:$true] %s7504
          %s7506 = sshll.u32 %s7502, 4
          %s7507 = int_to_ptr.hbm [resolvable:$true] %s7506
          %7509 = dma.vmem_to_hbm [thread:$0]  %s7505, 32, %s7507, %s7488
        $region56: #{tpu_custom_call.1} parent=47 // pred_fallthru
          _
      $region48: #{tpu_custom_call.1} parent=5 // pred_fallthru
        _
      %p7510 = scmp.le.s32.totalorder 2, %s18
      // Predicated region
      $region57: #{tpu_custom_call.1} parent=5 // pred_check
        %p7511 = pneg %p7510
      $region58: #{tpu_custom_call.1} parent=5 // pred_check_branch
        %7513 = sbr.rel (%p7511) target = $region60
      $region59: #{tpu_custom_call.1} parent=5 // pred_region
        %s7514 = ssub.s32 %s18, 2
        // Predicated region
        $region61: #{tpu_custom_call.1} parent=59 // pred_check
          %p7515 = pneg %p209
        $region62: #{tpu_custom_call.1} parent=59 // pred_check_branch
          %7517 = sbr.rel (%p7515) target = $region64
        $region63: #{tpu_custom_call.1} parent=59 // pred_region
          %s7518 = smul.u32 64, %s24
          %p7519 = scmp.lt.s32.totalorder %s7518, 127
          %s7520 = scalar_select %p7519, %s7518, 127
          %s7521 = smul.addr %s7520, 2
          %s7522 = smul.addr %s7521, 8
          %s7523 = scalar_lea.vmem %s7, %s7522
        $region64: #{tpu_custom_call.1} parent=59 // pred_fallthru
          _
        // Predicated region
        $region65: #{tpu_custom_call.1} parent=59 // pred_check
          %p7524 = pneg %p235
        $region66: #{tpu_custom_call.1} parent=59 // pred_check_branch
          %7526 = sbr.rel (%p7524) target = $region68
        $region67: #{tpu_custom_call.1} parent=59 // pred_region
          %s7527 = sand.u32 %s220, 1
          %s7528 = scalar_lea.sflag [#allocation3], %s7527
          %s7529 = sand.u32 %s220, 1
          %s7530 = smul.addr %s7529, 2
          %s7531 = scalar_lea.vmem [#allocation2], %s7530
          %7533 = dma.done %s7528, 32
        $region68: #{tpu_custom_call.1} parent=59 // pred_fallthru
          _
      $region60: #{tpu_custom_call.1} parent=5 // pred_fallthru
        _
    $region6: #{tpu_custom_call.1} parent=1 // loop_footer
      %s22 = sadd.s32 1, %s18
    $region7: #{tpu_custom_call.1} parent=1 // loop_footer_branch
      %17 = sbr.rel target = $region3
    $region8: #{tpu_custom_call.1} parent=1 // loop_exit
      _
    %7534 = vsyncpa [#allocation3], 1
    %s7535 = scalar_lea.sflag [#allocation3], 1
    %7536 = vsyncpa %s7535, 1

</llo_original>
